<compile_context>
chip_gen: v7x
topology: tpu7x:2x2x1
jax: 0.10.0
libtpu: 0.0.40
codegen_flags: <defaults>
</compile_context>

<pallas_src>
import functools

import jax
import jax.numpy as jnp
from jax.experimental import pallas as pl
from jax.experimental.pallas import tpu as pltpu

# ---------------- synthetic config (small, consistent with BERT layer shapes) ----
NUM_LAYERS = 2
HIDDEN = 32
NUM_HEADS = 4
HEAD_DIM = HIDDEN // NUM_HEADS
INTERMEDIATE = 64
BATCH = 2
SEQ = 8
LN_EPS = 1e-12
DTYPE = jnp.float32

_INV_SQRT2 = 0.7071067811865476


# ---------------- fused encoder kernel (grid axis = batch / sequence) -----------
def _encoder_kernel(x_ref, mask_ref,
                    qkv_w_ref, qkv_b_ref, ao_w_ref, ao_b_ref,
                    ln1_g_ref, ln1_b_ref, i_w_ref, i_b_ref,
                    o_w_ref, o_b_ref, ln2_g_ref, ln2_b_ref,
                    out_ref, *, n_layers, nH, eps):
    S, H = x_ref.shape                     # one whole sequence per grid step
    dH = H // nH
    mask = mask_ref[...]                   # [1, S] additive mask (broadcast over q & heads)

    def layer_norm(y, g, beta):
        mean = jnp.mean(y, axis=-1, keepdims=True)
        var = jnp.mean((y - mean) ** 2, axis=-1, keepdims=True)
        return (y - mean) * jax.lax.rsqrt(var + eps) * g + beta

    def layer_step(l, h):
        # ---- head-major fused QKV projection (batched over heads, no transposes).
        # The 1/sqrt(dH) scale is already folded into the Q columns on the host.
        hb = jnp.broadcast_to(h[None], (nH, S, H))
        qkv = jnp.einsum('hsd,hdk->hsk', hb, qkv_w_ref[l],
                         preferred_element_type=jnp.float32) + qkv_b_ref[l]   # [nH,S,3dH]
        q = qkv[:, :, :dH]
        k = qkv[:, :, dH:2 * dH]
        v = qkv[:, :, 2 * dH:]

        # ---- attention: all heads in single batched contractions ----------------
        s = jnp.einsum('hqd,hkd->hqk', q, k,
                       preferred_element_type=jnp.float32) + mask            # [nH,S,S]
        s = s - jnp.max(s, axis=-1, keepdims=True)
        p = jnp.exp(s)
        p = p / jnp.sum(p, axis=-1, keepdims=True)        # exact divide (per review)
        ctx = jnp.einsum('hqk,hkd->hqd', p, v,
                         preferred_element_type=jnp.float32)                 # [nH,S,dH]

        # ---- attention output dense (per-head partial matmuls summed over heads),
        #      residual + LayerNorm ------------------------------------------------
        attn = jnp.einsum('hqd,hdo->hqo', ctx, ao_w_ref[l],
                          preferred_element_type=jnp.float32)                # [nH,S,H]
        attn = jnp.sum(attn, axis=0) + ao_b_ref[l]                           # [S, H]
        h1 = layer_norm(attn + h, ln1_g_ref[l], ln1_b_ref[l])

        # ---- FFN: dense + exact erf GELU + dense, residual + LayerNorm ----------
        inter = jnp.dot(h1, i_w_ref[l],
                        preferred_element_type=jnp.float32) + i_b_ref[l]     # [S, I]
        inter = 0.5 * inter * (1.0 + jax.lax.erf(inter * _INV_SQRT2))
        out = jnp.dot(inter, o_w_ref[l],
                      preferred_element_type=jnp.float32) + o_b_ref[l]       # [S, H]
        return layer_norm(out + h1, ln2_g_ref[l], ln2_b_ref[l])

    h = jax.lax.fori_loop(0, n_layers, layer_step,
                          x_ref[...].astype(jnp.float32), unroll=True)
    out_ref[...] = h.astype(out_ref.dtype)


def bert_encoder(hidden_states, attention_mask, params):
    """hidden_states: [B, S, H], attention_mask: [B, S] (1 = attend, 0 = pad)."""
    B, S, H = hidden_states.shape
    L = len(params)
    nH, dH = NUM_HEADS, HEAD_DIM
    scale = 1.0 / (dH ** 0.5)

    # extended additive mask, same convention as HF get_extended_attention_mask
    ext_mask = ((1.0 - attention_mask.astype(DTYPE)) * -10000.0).reshape(B, 1, S)
    x = hidden_states.astype(DTYPE)

    # ---- stack per-layer weights; QKV / attn-output re-packed head-major -------
    def qkv_w_head_major(p):
        qw = (p["q_w"] * scale).reshape(H, nH, dH)      # fold attention scale into Q
        kw = p["k_w"].reshape(H, nH, dH)
        vw = p["v_w"].reshape(H, nH, dH)
        w = jnp.concatenate([qw, kw, vw], axis=-1)       # [H, nH, 3dH]
        return jnp.transpose(w, (1, 0, 2))               # [nH, H, 3dH]

    def qkv_b_head_major(p):
        qb = (p["q_b"] * scale).reshape(nH, 1, dH)
        kb = p["k_b"].reshape(nH, 1, dH)
        vb = p["v_b"].reshape(nH, 1, dH)
        return jnp.concatenate([qb, kb, vb], axis=-1)    # [nH, 1, 3dH]

    qkv_w = jnp.stack([qkv_w_head_major(p) for p in params])           # [L,nH,H,3dH]
    qkv_b = jnp.stack([qkv_b_head_major(p) for p in params])           # [L,nH,1,3dH]
    ao_w = jnp.stack([p["ao_w"].reshape(nH, dH, H) for p in params])   # [L,nH,dH,H]
    ao_b = jnp.stack([p["ao_b"][None, :] for p in params])             # [L,1,H]
    ln1_g = jnp.stack([p["ln1_g"][None, :] for p in params])
    ln1_b = jnp.stack([p["ln1_b"][None, :] for p in params])
    i_w = jnp.stack([p["i_w"] for p in params])                        # [L,H,I]
    i_b = jnp.stack([p["i_b"][None, :] for p in params])               # [L,1,I]
    o_w = jnp.stack([p["o_w"] for p in params])                        # [L,I,H]
    o_b = jnp.stack([p["o_b"][None, :] for p in params])               # [L,1,H]
    ln2_g = jnp.stack([p["ln2_g"][None, :] for p in params])
    ln2_b = jnp.stack([p["ln2_b"][None, :] for p in params])
    # TODO(synk): at real BERT sizes cast the stacked matmul weights to bfloat16
    # (MXU-native, halves VMEM/DMA) and tile the FFN K/N dims over a grid axis so
    # double-buffered weights fit v7x's 64 MiB VMEM.

    weights = (qkv_w, qkv_b, ao_w, ao_b, ln1_g, ln1_b,
               i_w, i_b, o_w, o_b, ln2_g, ln2_b)

    def full_spec(a):
        # whole (stacked) weight resident in VMEM; same block every grid step
        zeros = (0,) * a.ndim
        return pl.BlockSpec(a.shape, lambda b, _z=zeros: _z)

    seq_spec = pl.BlockSpec((None, S, H), lambda b: (b, 0, 0))   # one sequence / step
    mask_spec = pl.BlockSpec((None, 1, S), lambda b: (b, 0, 0))

    kernel = functools.partial(_encoder_kernel, n_layers=L, nH=nH, eps=LN_EPS)

    out = pl.pallas_call(
        kernel,
        out_shape=jax.ShapeDtypeStruct((B, S, H), DTYPE),
        grid=(B,),                                 # sequences are independent
        in_specs=[seq_spec, mask_spec] + [full_spec(w) for w in weights],
        out_specs=seq_spec,
        compiler_params=pltpu.CompilerParams(
            dimension_semantics=("parallel",),     # engages both TCs on v7x
            vmem_limit_bytes=32 * 1024 * 1024,
        ),
    )(x, ext_mask, *weights)

    return out   # last_hidden_state [B, S, H]


# ---------------- parameter init (deterministic, in-script) ----------------------
def init_params(key):
    params = []
    for _ in range(NUM_LAYERS):
        layer = {}
        for name, shape in [
            ("q_w", (HIDDEN, HIDDEN)), ("k_w", (HIDDEN, HIDDEN)),
            ("v_w", (HIDDEN, HIDDEN)), ("ao_w", (HIDDEN, HIDDEN)),
            ("i_w", (HIDDEN, INTERMEDIATE)), ("o_w", (INTERMEDIATE, HIDDEN)),
        ]:
            key, sub = jax.random.split(key)
            layer[name] = (0.02 * jax.random.normal(sub, shape)).astype(DTYPE)
        layer["q_b"] = jnp.zeros((HIDDEN,), DTYPE)
        layer["k_b"] = jnp.zeros((HIDDEN,), DTYPE)
        layer["v_b"] = jnp.zeros((HIDDEN,), DTYPE)
        layer["ao_b"] = jnp.zeros((HIDDEN,), DTYPE)
        layer["i_b"] = jnp.zeros((INTERMEDIATE,), DTYPE)
        layer["o_b"] = jnp.zeros((HIDDEN,), DTYPE)
        layer["ln1_g"] = jnp.ones((HIDDEN,), DTYPE)
        layer["ln1_b"] = jnp.zeros((HIDDEN,), DTYPE)
        layer["ln2_g"] = jnp.ones((HIDDEN,), DTYPE)
        layer["ln2_b"] = jnp.zeros((HIDDEN,), DTYPE)
        params.append(layer)
    return params


# ---------------- pure-JAX reference (for sanity check) --------------------------
def reference_encoder(hidden_states, attention_mask, params):
    B, S, H = hidden_states.shape
    ext = ((1.0 - attention_mask.astype(DTYPE)) * -10000.0).reshape(B, 1, 1, S)
    h = hidden_states
    for p in params:
        def lin(x, w, b):
            return x @ w + b
        q = lin(h, p["q_w"], p["q_b"]).reshape(B, S, NUM_HEADS, HEAD_DIM).transpose(0, 2, 1, 3)
        k = lin(h, p["k_w"], p["k_b"]).reshape(B, S, NUM_HEADS, HEAD_DIM).transpose(0, 2, 1, 3)
        v = lin(h, p["v_w"], p["v_b"]).reshape(B, S, NUM_HEADS, HEAD_DIM).transpose(0, 2, 1, 3)
        s = jnp.einsum("bhqd,bhkd->bhqk", q, k) / (HEAD_DIM ** 0.5) + ext
        pmat = jax.nn.softmax(s, axis=-1)
        ctx = jnp.einsum("bhqk,bhkd->bhqd", pmat, v).transpose(0, 2, 1, 3).reshape(B, S, H)
        ao = lin(ctx, p["ao_w"], p["ao_b"])

        def ln(x, g, b):
            m = x.mean(-1, keepdims=True)
            var = ((x - m) ** 2).mean(-1, keepdims=True)
            return (x - m) * jax.lax.rsqrt(var + LN_EPS) * g + b
        a1 = ln(ao + h, p["ln1_g"], p["ln1_b"])
        ig = a1 @ p["i_w"] + p["i_b"]
        ig = jax.nn.gelu(ig, approximate=False)   # exact erf GELU (HF 'gelu')
        o = ig @ p["o_w"] + p["o_b"]
        h = ln(o + a1, p["ln2_g"], p["ln2_b"])
    return h


# ---------------- main ------------------------------------------------------------
if __name__ == "__main__":
    key = jax.random.PRNGKey(0)
    key, k_h, k_p = jax.random.split(key, 3)
    hidden_states = jax.random.normal(k_h, (BATCH, SEQ, HIDDEN), dtype=DTYPE)
    attention_mask = jnp.ones((BATCH, SEQ), dtype=DTYPE).at[1, SEQ - 2:].set(0.0)
    params = init_params(k_p)

    out = bert_encoder(hidden_states, attention_mask, params)
    out = jax.block_until_ready(out)

    ref = reference_encoder(hidden_states, attention_mask, params)
    assert out.shape == (BATCH, SEQ, HIDDEN)
    # Softmax divide and GELU are exact now; remaining differences come only
    # from MXU default matmul precision / accumulation-order differences.
    assert jnp.allclose(out, ref, atol=2e-3, rtol=2e-3), "mismatch vs JAX reference"

    print("KERNEL_OK")
</pallas_src>

<mosaic_0001>
module attributes {stable_mosaic.version = 11 : i64} {
  func.func @_encoder_kernel(%arg0: i32, %arg1: memref<1x8x32xf32, #tpu.memory_space<vmem>>, %arg2: memref<1x1x8xf32, #tpu.memory_space<vmem>>, %arg3: memref<2x4x32x24xf32, #tpu.memory_space<vmem>>, %arg4: memref<2x4x1x24xf32, #tpu.memory_space<vmem>>, %arg5: memref<2x4x8x32xf32, #tpu.memory_space<vmem>>, %arg6: memref<2x1x32xf32, #tpu.memory_space<vmem>>, %arg7: memref<2x1x32xf32, #tpu.memory_space<vmem>>, %arg8: memref<2x1x32xf32, #tpu.memory_space<vmem>>, %arg9: memref<2x32x64xf32, #tpu.memory_space<vmem>>, %arg10: memref<2x1x64xf32, #tpu.memory_space<vmem>>, %arg11: memref<2x64x32xf32, #tpu.memory_space<vmem>>, %arg12: memref<2x1x32xf32, #tpu.memory_space<vmem>>, %arg13: memref<2x1x32xf32, #tpu.memory_space<vmem>>, %arg14: memref<2x1x32xf32, #tpu.memory_space<vmem>>, %arg15: memref<1x8x32xf32, #tpu.memory_space<vmem>>) attributes {dimension_semantics = [#tpu.dimension_semantics<parallel>], iteration_bounds = array<i64: 2>, scalar_prefetch = 0 : i64, scratch_operands = 0 : i64, tpu.core_type = #tpu.core_type<tc>, window_params = [{transform_indices = @transform_0, window_bounds = array<i64: 1, 8, 32>}, {transform_indices = @transform_1, window_bounds = array<i64: 1, 1, 8>}, {pipeline_mode = #tpu.pipeline_mode<synchronous>, transform_indices = @transform_2, window_bounds = array<i64: 2, 4, 32, 24>}, {pipeline_mode = #tpu.pipeline_mode<synchronous>, transform_indices = @transform_3, window_bounds = array<i64: 2, 4, 1, 24>}, {pipeline_mode = #tpu.pipeline_mode<synchronous>, transform_indices = @transform_4, window_bounds = array<i64: 2, 4, 8, 32>}, {pipeline_mode = #tpu.pipeline_mode<synchronous>, transform_indices = @transform_5, window_bounds = array<i64: 2, 1, 32>}, {pipeline_mode = #tpu.pipeline_mode<synchronous>, transform_indices = @transform_6, window_bounds = array<i64: 2, 1, 32>}, {pipeline_mode = #tpu.pipeline_mode<synchronous>, transform_indices = @transform_7, window_bounds = array<i64: 2, 1, 32>}, {pipeline_mode = #tpu.pipeline_mode<synchronous>, transform_indices = @transform_8, window_bounds = array<i64: 2, 32, 64>}, {pipeline_mode = #tpu.pipeline_mode<synchronous>, transform_indices = @transform_9, window_bounds = array<i64: 2, 1, 64>}, {pipeline_mode = #tpu.pipeline_mode<synchronous>, transform_indices = @transform_10, window_bounds = array<i64: 2, 64, 32>}, {pipeline_mode = #tpu.pipeline_mode<synchronous>, transform_indices = @transform_11, window_bounds = array<i64: 2, 1, 32>}, {pipeline_mode = #tpu.pipeline_mode<synchronous>, transform_indices = @transform_12, window_bounds = array<i64: 2, 1, 32>}, {pipeline_mode = #tpu.pipeline_mode<synchronous>, transform_indices = @transform_13, window_bounds = array<i64: 2, 1, 32>}, {transform_indices = @transform_14, window_bounds = array<i64: 1, 8, 32>}]} {
    %c0 = arith.constant 0 : index
    %c0_0 = arith.constant 0 : index
    %c0_1 = arith.constant 0 : index
    %0 = vector.load %arg2[%c0, %c0_0, %c0_1] : memref<1x1x8xf32, #tpu.memory_space<vmem>>, vector<1x1x8xf32>
    %1 = vector.shape_cast %0 : vector<1x1x8xf32> to vector<1x8xf32>
    %c0_2 = arith.constant 0 : index
    %c0_3 = arith.constant 0 : index
    %c0_4 = arith.constant 0 : index
    %2 = vector.load %arg1[%c0_2, %c0_3, %c0_4] : memref<1x8x32xf32, #tpu.memory_space<vmem>>, vector<1x8x32xf32>
    %3 = vector.shape_cast %2 : vector<1x8x32xf32> to vector<8x32xf32>
    %c0_i32 = arith.constant 0 : i32
    %4 = vector.shape_cast %3 : vector<8x32xf32> to vector<1x8x32xf32>
    %5 = vector.shape_cast %4 : vector<1x8x32xf32> to vector<1x8x32xf32>
    %6 = vector.broadcast %5 : vector<1x8x32xf32> to vector<4x8x32xf32>
    %7 = arith.index_cast %c0_i32 : i32 to index
    %c0_5 = arith.constant 0 : index
    %c0_6 = arith.constant 0 : index
    %c0_7 = arith.constant 0 : index
    %8 = vector.load %arg3[%7, %c0_5, %c0_6, %c0_7] : memref<2x4x32x24xf32, #tpu.memory_space<vmem>>, vector<1x4x32x24xf32>
    %9 = vector.shape_cast %8 : vector<1x4x32x24xf32> to vector<4x32x24xf32>
    "tpu.trace_start"() <{level = 10 : i32, message = "hsd,hdk->hsk"}> : () -> ()
    %cst = arith.constant dense<0.000000e+00> : vector<4x8x24xf32>
    %10 = tpu.matmul %6, %9, %cst {dimension_numbers = #tpu.dot_dimension_numbers<[2], [1], [1], [2], [0, 0, 0, 1, 1, 2], [0], [0]>} : vector<4x8x32xf32>, vector<4x32x24xf32>, vector<4x8x24xf32> -> vector<4x8x24xf32>
    "tpu.trace_stop"() : () -> ()
    %11 = arith.index_cast %c0_i32 : i32 to index
    %c0_8 = arith.constant 0 : index
    %c0_9 = arith.constant 0 : index
    %c0_10 = arith.constant 0 : index
    %12 = vector.load %arg4[%11, %c0_8, %c0_9, %c0_10] : memref<2x4x1x24xf32, #tpu.memory_space<vmem>>, vector<1x4x1x24xf32>
    %13 = vector.shape_cast %12 : vector<1x4x1x24xf32> to vector<4x1x24xf32>
    %14 = vector.broadcast %13 : vector<4x1x24xf32> to vector<4x8x24xf32>
    %15 = arith.addf %10, %14 : vector<4x8x24xf32>
    %16 = vector.extract_strided_slice %15 {offsets = [0, 0, 0], sizes = [4, 8, 8], strides = [1, 1, 1]} : vector<4x8x24xf32> to vector<4x8x8xf32>
    %17 = vector.extract_strided_slice %15 {offsets = [0, 0, 8], sizes = [4, 8, 8], strides = [1, 1, 1]} : vector<4x8x24xf32> to vector<4x8x8xf32>
    %18 = vector.extract_strided_slice %15 {offsets = [0, 0, 16], sizes = [4, 8, 8], strides = [1, 1, 1]} : vector<4x8x24xf32> to vector<4x8x8xf32>
    "tpu.trace_start"() <{level = 10 : i32, message = "hqd,hkd->hqk"}> : () -> ()
    %cst_11 = arith.constant dense<0.000000e+00> : vector<4x8x8xf32>
    %19 = tpu.matmul %16, %17, %cst_11 {dimension_numbers = #tpu.dot_dimension_numbers<[2], [2], [1], [1], [0, 0, 0, 1, 1, 1], [0], [0]>} : vector<4x8x8xf32>, vector<4x8x8xf32>, vector<4x8x8xf32> -> vector<4x8x8xf32>
    "tpu.trace_stop"() : () -> ()
    %20 = vector.shape_cast %1 : vector<1x8xf32> to vector<1x1x8xf32>
    %21 = vector.broadcast %20 : vector<1x1x8xf32> to vector<4x8x8xf32>
    %22 = arith.addf %19, %21 : vector<4x8x8xf32>
    %cst_12 = arith.constant dense<0xFF800000> : vector<4x8xf32>
    %23 = vector.multi_reduction <maximumf>, %22, %cst_12 [2] : vector<4x8x8xf32> to vector<4x8xf32>
    %24 = vector.shape_cast %23 : vector<4x8xf32> to vector<4x8x1xf32>
    %25 = vector.broadcast %24 : vector<4x8x1xf32> to vector<4x8x8xf32>
    %26 = arith.subf %22, %25 : vector<4x8x8xf32>
    %27 = math.exp %26 : vector<4x8x8xf32>
    %cst_13 = arith.constant dense<0.000000e+00> : vector<4x8xf32>
    %28 = vector.multi_reduction <add>, %27, %cst_13 [2] : vector<4x8x8xf32> to vector<4x8xf32>
    %29 = vector.shape_cast %28 : vector<4x8xf32> to vector<4x8x1xf32>
    %30 = vector.broadcast %29 : vector<4x8x1xf32> to vector<4x8x8xf32>
    %31 = arith.divf %27, %30 : vector<4x8x8xf32>
    "tpu.trace_start"() <{level = 10 : i32, message = "hqk,hkd->hqd"}> : () -> ()
    %cst_14 = arith.constant dense<0.000000e+00> : vector<4x8x8xf32>
    %32 = tpu.matmul %31, %18, %cst_14 {dimension_numbers = #tpu.dot_dimension_numbers<[2], [1], [1], [2], [0, 0, 0, 1, 1, 2], [0], [0]>} : vector<4x8x8xf32>, vector<4x8x8xf32>, vector<4x8x8xf32> -> vector<4x8x8xf32>
    "tpu.trace_stop"() : () -> ()
    %33 = arith.index_cast %c0_i32 : i32 to index
    %c0_15 = arith.constant 0 : index
    %c0_16 = arith.constant 0 : index
    %c0_17 = arith.constant 0 : index
    %34 = vector.load %arg5[%33, %c0_15, %c0_16, %c0_17] : memref<2x4x8x32xf32, #tpu.memory_space<vmem>>, vector<1x4x8x32xf32>
    %35 = vector.shape_cast %34 : vector<1x4x8x32xf32> to vector<4x8x32xf32>
    "tpu.trace_start"() <{level = 10 : i32, message = "hqd,hdo->hqo"}> : () -> ()
    %cst_18 = arith.constant dense<0.000000e+00> : vector<4x8x32xf32>
    %36 = tpu.matmul %32, %35, %cst_18 {dimension_numbers = #tpu.dot_dimension_numbers<[2], [1], [1], [2], [0, 0, 0, 1, 1, 2], [0], [0]>} : vector<4x8x8xf32>, vector<4x8x32xf32>, vector<4x8x32xf32> -> vector<4x8x32xf32>
    "tpu.trace_stop"() : () -> ()
    %cst_19 = arith.constant dense<0.000000e+00> : vector<8x32xf32>
    %37 = vector.multi_reduction <add>, %36, %cst_19 [0] : vector<4x8x32xf32> to vector<8x32xf32>
    %38 = arith.index_cast %c0_i32 : i32 to index
    %c0_20 = arith.constant 0 : index
    %c0_21 = arith.constant 0 : index
    %39 = vector.load %arg6[%38, %c0_20, %c0_21] : memref<2x1x32xf32, #tpu.memory_space<vmem>>, vector<1x1x32xf32>
    %40 = vector.shape_cast %39 : vector<1x1x32xf32> to vector<1x32xf32>
    %41 = vector.broadcast %40 : vector<1x32xf32> to vector<8x32xf32>
    %42 = arith.addf %37, %41 : vector<8x32xf32>
    %43 = arith.addf %42, %3 : vector<8x32xf32>
    %44 = arith.index_cast %c0_i32 : i32 to index
    %c0_22 = arith.constant 0 : index
    %c0_23 = arith.constant 0 : index
    %45 = vector.load %arg7[%44, %c0_22, %c0_23] : memref<2x1x32xf32, #tpu.memory_space<vmem>>, vector<1x1x32xf32>
    %46 = vector.shape_cast %45 : vector<1x1x32xf32> to vector<1x32xf32>
    %47 = arith.index_cast %c0_i32 : i32 to index
    %c0_24 = arith.constant 0 : index
    %c0_25 = arith.constant 0 : index
    %48 = vector.load %arg8[%47, %c0_24, %c0_25] : memref<2x1x32xf32, #tpu.memory_space<vmem>>, vector<1x1x32xf32>
    %49 = vector.shape_cast %48 : vector<1x1x32xf32> to vector<1x32xf32>
    %cst_26 = arith.constant dense<0.000000e+00> : vector<8xf32>
    %50 = vector.multi_reduction <add>, %43, %cst_26 [1] : vector<8x32xf32> to vector<8xf32>
    %51 = vector.shape_cast %50 : vector<8xf32> to vector<8x1xf32>
    %cst_27 = arith.constant 3.200000e+01 : f32
    %52 = vector.broadcast %cst_27 : f32 to vector<8x1xf32>
    %53 = arith.divf %51, %52 : vector<8x1xf32>
    %54 = vector.broadcast %53 : vector<8x1xf32> to vector<8x32xf32>
    %55 = arith.subf %43, %54 : vector<8x32xf32>
    %56 = arith.mulf %55, %55 : vector<8x32xf32>
    %cst_28 = arith.constant dense<0.000000e+00> : vector<8xf32>
    %57 = vector.multi_reduction <add>, %56, %cst_28 [1] : vector<8x32xf32> to vector<8xf32>
    %58 = vector.shape_cast %57 : vector<8xf32> to vector<8x1xf32>
    %cst_29 = arith.constant 3.200000e+01 : f32
    %59 = vector.broadcast %cst_29 : f32 to vector<8x1xf32>
    %60 = arith.divf %58, %59 : vector<8x1xf32>
    %61 = vector.broadcast %53 : vector<8x1xf32> to vector<8x32xf32>
    %62 = arith.subf %43, %61 : vector<8x32xf32>
    %cst_30 = arith.constant 9.99999996E-13 : f32
    %63 = vector.broadcast %cst_30 : f32 to vector<8x1xf32>
    %64 = arith.addf %60, %63 : vector<8x1xf32>
    %65 = math.rsqrt %64 : vector<8x1xf32>
    %66 = vector.broadcast %65 : vector<8x1xf32> to vector<8x32xf32>
    %67 = arith.mulf %62, %66 : vector<8x32xf32>
    %68 = vector.broadcast %46 : vector<1x32xf32> to vector<8x32xf32>
    %69 = arith.mulf %67, %68 : vector<8x32xf32>
    %70 = vector.broadcast %49 : vector<1x32xf32> to vector<8x32xf32>
    %71 = arith.addf %69, %70 : vector<8x32xf32>
    %72 = arith.index_cast %c0_i32 : i32 to index
    %c0_31 = arith.constant 0 : index
    %c0_32 = arith.constant 0 : index
    %73 = vector.load %arg9[%72, %c0_31, %c0_32] : memref<2x32x64xf32, #tpu.memory_space<vmem>>, vector<1x32x64xf32>
    %74 = vector.shape_cast %73 : vector<1x32x64xf32> to vector<32x64xf32>
    %cst_33 = arith.constant dense<0.000000e+00> : vector<8x64xf32>
    %75 = tpu.matmul %71, %74, %cst_33 {dimension_numbers = #tpu.dot_dimension_numbers<[1], [0], [0], [1], [0, 0, 1, 1], [], []>} : vector<8x32xf32>, vector<32x64xf32>, vector<8x64xf32> -> vector<8x64xf32>
    %76 = arith.index_cast %c0_i32 : i32 to index
    %c0_34 = arith.constant 0 : index
    %c0_35 = arith.constant 0 : index
    %77 = vector.load %arg10[%76, %c0_34, %c0_35] : memref<2x1x64xf32, #tpu.memory_space<vmem>>, vector<1x1x64xf32>
    %78 = vector.shape_cast %77 : vector<1x1x64xf32> to vector<1x64xf32>
    %79 = vector.broadcast %78 : vector<1x64xf32> to vector<8x64xf32>
    %80 = arith.addf %75, %79 : vector<8x64xf32>
    %cst_36 = arith.constant 5.000000e-01 : f32
    %81 = vector.broadcast %cst_36 : f32 to vector<8x64xf32>
    %82 = arith.mulf %81, %80 : vector<8x64xf32>
    %cst_37 = arith.constant 0.707106769 : f32
    %83 = vector.broadcast %cst_37 : f32 to vector<8x64xf32>
    %84 = arith.mulf %80, %83 : vector<8x64xf32>
    %85 = math.erf %84 : vector<8x64xf32>
    %cst_38 = arith.constant 1.000000e+00 : f32
    %86 = vector.broadcast %cst_38 : f32 to vector<8x64xf32>
    %87 = arith.addf %86, %85 : vector<8x64xf32>
    %88 = arith.mulf %82, %87 : vector<8x64xf32>
    %89 = arith.index_cast %c0_i32 : i32 to index
    %c0_39 = arith.constant 0 : index
    %c0_40 = arith.constant 0 : index
    %90 = vector.load %arg11[%89, %c0_39, %c0_40] : memref<2x64x32xf32, #tpu.memory_space<vmem>>, vector<1x64x32xf32>
    %91 = vector.shape_cast %90 : vector<1x64x32xf32> to vector<64x32xf32>
    %cst_41 = arith.constant dense<0.000000e+00> : vector<8x32xf32>
    %92 = tpu.matmul %88, %91, %cst_41 {dimension_numbers = #tpu.dot_dimension_numbers<[1], [0], [0], [1], [0, 0, 1, 1], [], []>} : vector<8x64xf32>, vector<64x32xf32>, vector<8x32xf32> -> vector<8x32xf32>
    %93 = arith.index_cast %c0_i32 : i32 to index
    %c0_42 = arith.constant 0 : index
    %c0_43 = arith.constant 0 : index
    %94 = vector.load %arg12[%93, %c0_42, %c0_43] : memref<2x1x32xf32, #tpu.memory_space<vmem>>, vector<1x1x32xf32>
    %95 = vector.shape_cast %94 : vector<1x1x32xf32> to vector<1x32xf32>
    %96 = vector.broadcast %95 : vector<1x32xf32> to vector<8x32xf32>
    %97 = arith.addf %92, %96 : vector<8x32xf32>
    %98 = arith.addf %97, %71 : vector<8x32xf32>
    %99 = arith.index_cast %c0_i32 : i32 to index
    %c0_44 = arith.constant 0 : index
    %c0_45 = arith.constant 0 : index
    %100 = vector.load %arg13[%99, %c0_44, %c0_45] : memref<2x1x32xf32, #tpu.memory_space<vmem>>, vector<1x1x32xf32>
    %101 = vector.shape_cast %100 : vector<1x1x32xf32> to vector<1x32xf32>
    %102 = arith.index_cast %c0_i32 : i32 to index
    %c0_46 = arith.constant 0 : index
    %c0_47 = arith.constant 0 : index
    %103 = vector.load %arg14[%102, %c0_46, %c0_47] : memref<2x1x32xf32, #tpu.memory_space<vmem>>, vector<1x1x32xf32>
    %104 = vector.shape_cast %103 : vector<1x1x32xf32> to vector<1x32xf32>
    %cst_48 = arith.constant dense<0.000000e+00> : vector<8xf32>
    %105 = vector.multi_reduction <add>, %98, %cst_48 [1] : vector<8x32xf32> to vector<8xf32>
    %106 = vector.shape_cast %105 : vector<8xf32> to vector<8x1xf32>
    %cst_49 = arith.constant 3.200000e+01 : f32
    %107 = vector.broadcast %cst_49 : f32 to vector<8x1xf32>
    %108 = arith.divf %106, %107 : vector<8x1xf32>
    %109 = vector.broadcast %108 : vector<8x1xf32> to vector<8x32xf32>
    %110 = arith.subf %98, %109 : vector<8x32xf32>
    %111 = arith.mulf %110, %110 : vector<8x32xf32>
    %cst_50 = arith.constant dense<0.000000e+00> : vector<8xf32>
    %112 = vector.multi_reduction <add>, %111, %cst_50 [1] : vector<8x32xf32> to vector<8xf32>
    %113 = vector.shape_cast %112 : vector<8xf32> to vector<8x1xf32>
    %cst_51 = arith.constant 3.200000e+01 : f32
    %114 = vector.broadcast %cst_51 : f32 to vector<8x1xf32>
    %115 = arith.divf %113, %114 : vector<8x1xf32>
    %116 = vector.broadcast %108 : vector<8x1xf32> to vector<8x32xf32>
    %117 = arith.subf %98, %116 : vector<8x32xf32>
    %cst_52 = arith.constant 9.99999996E-13 : f32
    %118 = vector.broadcast %cst_52 : f32 to vector<8x1xf32>
    %119 = arith.addf %115, %118 : vector<8x1xf32>
    %120 = math.rsqrt %119 : vector<8x1xf32>
    %121 = vector.broadcast %120 : vector<8x1xf32> to vector<8x32xf32>
    %122 = arith.mulf %117, %121 : vector<8x32xf32>
    %123 = vector.broadcast %101 : vector<1x32xf32> to vector<8x32xf32>
    %124 = arith.mulf %122, %123 : vector<8x32xf32>
    %125 = vector.broadcast %104 : vector<1x32xf32> to vector<8x32xf32>
    %126 = arith.addf %124, %125 : vector<8x32xf32>
    %c1_i32 = arith.constant 1 : i32
    %127 = vector.shape_cast %126 : vector<8x32xf32> to vector<1x8x32xf32>
    %128 = vector.shape_cast %127 : vector<1x8x32xf32> to vector<1x8x32xf32>
    %129 = vector.broadcast %128 : vector<1x8x32xf32> to vector<4x8x32xf32>
    %130 = arith.index_cast %c1_i32 : i32 to index
    %c0_53 = arith.constant 0 : index
    %c0_54 = arith.constant 0 : index
    %c0_55 = arith.constant 0 : index
    %131 = vector.load %arg3[%130, %c0_53, %c0_54, %c0_55] : memref<2x4x32x24xf32, #tpu.memory_space<vmem>>, vector<1x4x32x24xf32>
    %132 = vector.shape_cast %131 : vector<1x4x32x24xf32> to vector<4x32x24xf32>
    "tpu.trace_start"() <{level = 10 : i32, message = "hsd,hdk->hsk"}> : () -> ()
    %cst_56 = arith.constant dense<0.000000e+00> : vector<4x8x24xf32>
    %133 = tpu.matmul %129, %132, %cst_56 {dimension_numbers = #tpu.dot_dimension_numbers<[2], [1], [1], [2], [0, 0, 0, 1, 1, 2], [0], [0]>} : vector<4x8x32xf32>, vector<4x32x24xf32>, vector<4x8x24xf32> -> vector<4x8x24xf32>
    "tpu.trace_stop"() : () -> ()
    %134 = arith.index_cast %c1_i32 : i32 to index
    %c0_57 = arith.constant 0 : index
    %c0_58 = arith.constant 0 : index
    %c0_59 = arith.constant 0 : index
    %135 = vector.load %arg4[%134, %c0_57, %c0_58, %c0_59] : memref<2x4x1x24xf32, #tpu.memory_space<vmem>>, vector<1x4x1x24xf32>
    %136 = vector.shape_cast %135 : vector<1x4x1x24xf32> to vector<4x1x24xf32>
    %137 = vector.broadcast %136 : vector<4x1x24xf32> to vector<4x8x24xf32>
    %138 = arith.addf %133, %137 : vector<4x8x24xf32>
    %139 = vector.extract_strided_slice %138 {offsets = [0, 0, 0], sizes = [4, 8, 8], strides = [1, 1, 1]} : vector<4x8x24xf32> to vector<4x8x8xf32>
    %140 = vector.extract_strided_slice %138 {offsets = [0, 0, 8], sizes = [4, 8, 8], strides = [1, 1, 1]} : vector<4x8x24xf32> to vector<4x8x8xf32>
    %141 = vector.extract_strided_slice %138 {offsets = [0, 0, 16], sizes = [4, 8, 8], strides = [1, 1, 1]} : vector<4x8x24xf32> to vector<4x8x8xf32>
    "tpu.trace_start"() <{level = 10 : i32, message = "hqd,hkd->hqk"}> : () -> ()
    %cst_60 = arith.constant dense<0.000000e+00> : vector<4x8x8xf32>
    %142 = tpu.matmul %139, %140, %cst_60 {dimension_numbers = #tpu.dot_dimension_numbers<[2], [2], [1], [1], [0, 0, 0, 1, 1, 1], [0], [0]>} : vector<4x8x8xf32>, vector<4x8x8xf32>, vector<4x8x8xf32> -> vector<4x8x8xf32>
    "tpu.trace_stop"() : () -> ()
    %143 = vector.shape_cast %1 : vector<1x8xf32> to vector<1x1x8xf32>
    %144 = vector.broadcast %143 : vector<1x1x8xf32> to vector<4x8x8xf32>
    %145 = arith.addf %142, %144 : vector<4x8x8xf32>
    %cst_61 = arith.constant dense<0xFF800000> : vector<4x8xf32>
    %146 = vector.multi_reduction <maximumf>, %145, %cst_61 [2] : vector<4x8x8xf32> to vector<4x8xf32>
    %147 = vector.shape_cast %146 : vector<4x8xf32> to vector<4x8x1xf32>
    %148 = vector.broadcast %147 : vector<4x8x1xf32> to vector<4x8x8xf32>
    %149 = arith.subf %145, %148 : vector<4x8x8xf32>
    %150 = math.exp %149 : vector<4x8x8xf32>
    %cst_62 = arith.constant dense<0.000000e+00> : vector<4x8xf32>
    %151 = vector.multi_reduction <add>, %150, %cst_62 [2] : vector<4x8x8xf32> to vector<4x8xf32>
    %152 = vector.shape_cast %151 : vector<4x8xf32> to vector<4x8x1xf32>
    %153 = vector.broadcast %152 : vector<4x8x1xf32> to vector<4x8x8xf32>
    %154 = arith.divf %150, %153 : vector<4x8x8xf32>
    "tpu.trace_start"() <{level = 10 : i32, message = "hqk,hkd->hqd"}> : () -> ()
    %cst_63 = arith.constant dense<0.000000e+00> : vector<4x8x8xf32>
    %155 = tpu.matmul %154, %141, %cst_63 {dimension_numbers = #tpu.dot_dimension_numbers<[2], [1], [1], [2], [0, 0, 0, 1, 1, 2], [0], [0]>} : vector<4x8x8xf32>, vector<4x8x8xf32>, vector<4x8x8xf32> -> vector<4x8x8xf32>
    "tpu.trace_stop"() : () -> ()
    %156 = arith.index_cast %c1_i32 : i32 to index
    %c0_64 = arith.constant 0 : index
    %c0_65 = arith.constant 0 : index
    %c0_66 = arith.constant 0 : index
    %157 = vector.load %arg5[%156, %c0_64, %c0_65, %c0_66] : memref<2x4x8x32xf32, #tpu.memory_space<vmem>>, vector<1x4x8x32xf32>
    %158 = vector.shape_cast %157 : vector<1x4x8x32xf32> to vector<4x8x32xf32>
    "tpu.trace_start"() <{level = 10 : i32, message = "hqd,hdo->hqo"}> : () -> ()
    %cst_67 = arith.constant dense<0.000000e+00> : vector<4x8x32xf32>
    %159 = tpu.matmul %155, %158, %cst_67 {dimension_numbers = #tpu.dot_dimension_numbers<[2], [1], [1], [2], [0, 0, 0, 1, 1, 2], [0], [0]>} : vector<4x8x8xf32>, vector<4x8x32xf32>, vector<4x8x32xf32> -> vector<4x8x32xf32>
    "tpu.trace_stop"() : () -> ()
    %cst_68 = arith.constant dense<0.000000e+00> : vector<8x32xf32>
    %160 = vector.multi_reduction <add>, %159, %cst_68 [0] : vector<4x8x32xf32> to vector<8x32xf32>
    %161 = arith.index_cast %c1_i32 : i32 to index
    %c0_69 = arith.constant 0 : index
    %c0_70 = arith.constant 0 : index
    %162 = vector.load %arg6[%161, %c0_69, %c0_70] : memref<2x1x32xf32, #tpu.memory_space<vmem>>, vector<1x1x32xf32>
    %163 = vector.shape_cast %162 : vector<1x1x32xf32> to vector<1x32xf32>
    %164 = vector.broadcast %163 : vector<1x32xf32> to vector<8x32xf32>
    %165 = arith.addf %160, %164 : vector<8x32xf32>
    %166 = arith.addf %165, %126 : vector<8x32xf32>
    %167 = arith.index_cast %c1_i32 : i32 to index
    %c0_71 = arith.constant 0 : index
    %c0_72 = arith.constant 0 : index
    %168 = vector.load %arg7[%167, %c0_71, %c0_72] : memref<2x1x32xf32, #tpu.memory_space<vmem>>, vector<1x1x32xf32>
    %169 = vector.shape_cast %168 : vector<1x1x32xf32> to vector<1x32xf32>
    %170 = arith.index_cast %c1_i32 : i32 to index
    %c0_73 = arith.constant 0 : index
    %c0_74 = arith.constant 0 : index
    %171 = vector.load %arg8[%170, %c0_73, %c0_74] : memref<2x1x32xf32, #tpu.memory_space<vmem>>, vector<1x1x32xf32>
    %172 = vector.shape_cast %171 : vector<1x1x32xf32> to vector<1x32xf32>
    %cst_75 = arith.constant dense<0.000000e+00> : vector<8xf32>
    %173 = vector.multi_reduction <add>, %166, %cst_75 [1] : vector<8x32xf32> to vector<8xf32>
    %174 = vector.shape_cast %173 : vector<8xf32> to vector<8x1xf32>
    %cst_76 = arith.constant 3.200000e+01 : f32
    %175 = vector.broadcast %cst_76 : f32 to vector<8x1xf32>
    %176 = arith.divf %174, %175 : vector<8x1xf32>
    %177 = vector.broadcast %176 : vector<8x1xf32> to vector<8x32xf32>
    %178 = arith.subf %166, %177 : vector<8x32xf32>
    %179 = arith.mulf %178, %178 : vector<8x32xf32>
    %cst_77 = arith.constant dense<0.000000e+00> : vector<8xf32>
    %180 = vector.multi_reduction <add>, %179, %cst_77 [1] : vector<8x32xf32> to vector<8xf32>
    %181 = vector.shape_cast %180 : vector<8xf32> to vector<8x1xf32>
    %cst_78 = arith.constant 3.200000e+01 : f32
    %182 = vector.broadcast %cst_78 : f32 to vector<8x1xf32>
    %183 = arith.divf %181, %182 : vector<8x1xf32>
    %184 = vector.broadcast %176 : vector<8x1xf32> to vector<8x32xf32>
    %185 = arith.subf %166, %184 : vector<8x32xf32>
    %cst_79 = arith.constant 9.99999996E-13 : f32
    %186 = vector.broadcast %cst_79 : f32 to vector<8x1xf32>
    %187 = arith.addf %183, %186 : vector<8x1xf32>
    %188 = math.rsqrt %187 : vector<8x1xf32>
    %189 = vector.broadcast %188 : vector<8x1xf32> to vector<8x32xf32>
    %190 = arith.mulf %185, %189 : vector<8x32xf32>
    %191 = vector.broadcast %169 : vector<1x32xf32> to vector<8x32xf32>
    %192 = arith.mulf %190, %191 : vector<8x32xf32>
    %193 = vector.broadcast %172 : vector<1x32xf32> to vector<8x32xf32>
    %194 = arith.addf %192, %193 : vector<8x32xf32>
    %195 = arith.index_cast %c1_i32 : i32 to index
    %c0_80 = arith.constant 0 : index
    %c0_81 = arith.constant 0 : index
    %196 = vector.load %arg9[%195, %c0_80, %c0_81] : memref<2x32x64xf32, #tpu.memory_space<vmem>>, vector<1x32x64xf32>
    %197 = vector.shape_cast %196 : vector<1x32x64xf32> to vector<32x64xf32>
    %cst_82 = arith.constant dense<0.000000e+00> : vector<8x64xf32>
    %198 = tpu.matmul %194, %197, %cst_82 {dimension_numbers = #tpu.dot_dimension_numbers<[1], [0], [0], [1], [0, 0, 1, 1], [], []>} : vector<8x32xf32>, vector<32x64xf32>, vector<8x64xf32> -> vector<8x64xf32>
    %199 = arith.index_cast %c1_i32 : i32 to index
    %c0_83 = arith.constant 0 : index
    %c0_84 = arith.constant 0 : index
    %200 = vector.load %arg10[%199, %c0_83, %c0_84] : memref<2x1x64xf32, #tpu.memory_space<vmem>>, vector<1x1x64xf32>
    %201 = vector.shape_cast %200 : vector<1x1x64xf32> to vector<1x64xf32>
    %202 = vector.broadcast %201 : vector<1x64xf32> to vector<8x64xf32>
    %203 = arith.addf %198, %202 : vector<8x64xf32>
    %cst_85 = arith.constant 5.000000e-01 : f32
    %204 = vector.broadcast %cst_85 : f32 to vector<8x64xf32>
    %205 = arith.mulf %204, %203 : vector<8x64xf32>
    %cst_86 = arith.constant 0.707106769 : f32
    %206 = vector.broadcast %cst_86 : f32 to vector<8x64xf32>
    %207 = arith.mulf %203, %206 : vector<8x64xf32>
    %208 = math.erf %207 : vector<8x64xf32>
    %cst_87 = arith.constant 1.000000e+00 : f32
    %209 = vector.broadcast %cst_87 : f32 to vector<8x64xf32>
    %210 = arith.addf %209, %208 : vector<8x64xf32>
    %211 = arith.mulf %205, %210 : vector<8x64xf32>
    %212 = arith.index_cast %c1_i32 : i32 to index
    %c0_88 = arith.constant 0 : index
    %c0_89 = arith.constant 0 : index
    %213 = vector.load %arg11[%212, %c0_88, %c0_89] : memref<2x64x32xf32, #tpu.memory_space<vmem>>, vector<1x64x32xf32>
    %214 = vector.shape_cast %213 : vector<1x64x32xf32> to vector<64x32xf32>
    %cst_90 = arith.constant dense<0.000000e+00> : vector<8x32xf32>
    %215 = tpu.matmul %211, %214, %cst_90 {dimension_numbers = #tpu.dot_dimension_numbers<[1], [0], [0], [1], [0, 0, 1, 1], [], []>} : vector<8x64xf32>, vector<64x32xf32>, vector<8x32xf32> -> vector<8x32xf32>
    %216 = arith.index_cast %c1_i32 : i32 to index
    %c0_91 = arith.constant 0 : index
    %c0_92 = arith.constant 0 : index
    %217 = vector.load %arg12[%216, %c0_91, %c0_92] : memref<2x1x32xf32, #tpu.memory_space<vmem>>, vector<1x1x32xf32>
    %218 = vector.shape_cast %217 : vector<1x1x32xf32> to vector<1x32xf32>
    %219 = vector.broadcast %218 : vector<1x32xf32> to vector<8x32xf32>
    %220 = arith.addf %215, %219 : vector<8x32xf32>
    %221 = arith.addf %220, %194 : vector<8x32xf32>
    %222 = arith.index_cast %c1_i32 : i32 to index
    %c0_93 = arith.constant 0 : index
    %c0_94 = arith.constant 0 : index
    %223 = vector.load %arg13[%222, %c0_93, %c0_94] : memref<2x1x32xf32, #tpu.memory_space<vmem>>, vector<1x1x32xf32>
    %224 = vector.shape_cast %223 : vector<1x1x32xf32> to vector<1x32xf32>
    %225 = arith.index_cast %c1_i32 : i32 to index
    %c0_95 = arith.constant 0 : index
    %c0_96 = arith.constant 0 : index
    %226 = vector.load %arg14[%225, %c0_95, %c0_96] : memref<2x1x32xf32, #tpu.memory_space<vmem>>, vector<1x1x32xf32>
    %227 = vector.shape_cast %226 : vector<1x1x32xf32> to vector<1x32xf32>
    %cst_97 = arith.constant dense<0.000000e+00> : vector<8xf32>
    %228 = vector.multi_reduction <add>, %221, %cst_97 [1] : vector<8x32xf32> to vector<8xf32>
    %229 = vector.shape_cast %228 : vector<8xf32> to vector<8x1xf32>
    %cst_98 = arith.constant 3.200000e+01 : f32
    %230 = vector.broadcast %cst_98 : f32 to vector<8x1xf32>
    %231 = arith.divf %229, %230 : vector<8x1xf32>
    %232 = vector.broadcast %231 : vector<8x1xf32> to vector<8x32xf32>
    %233 = arith.subf %221, %232 : vector<8x32xf32>
    %234 = arith.mulf %233, %233 : vector<8x32xf32>
    %cst_99 = arith.constant dense<0.000000e+00> : vector<8xf32>
    %235 = vector.multi_reduction <add>, %234, %cst_99 [1] : vector<8x32xf32> to vector<8xf32>
    %236 = vector.shape_cast %235 : vector<8xf32> to vector<8x1xf32>
    %cst_100 = arith.constant 3.200000e+01 : f32
    %237 = vector.broadcast %cst_100 : f32 to vector<8x1xf32>
    %238 = arith.divf %236, %237 : vector<8x1xf32>
    %239 = vector.broadcast %231 : vector<8x1xf32> to vector<8x32xf32>
    %240 = arith.subf %221, %239 : vector<8x32xf32>
    %cst_101 = arith.constant 9.99999996E-13 : f32
    %241 = vector.broadcast %cst_101 : f32 to vector<8x1xf32>
    %242 = arith.addf %238, %241 : vector<8x1xf32>
    %243 = math.rsqrt %242 : vector<8x1xf32>
    %244 = vector.broadcast %243 : vector<8x1xf32> to vector<8x32xf32>
    %245 = arith.mulf %240, %244 : vector<8x32xf32>
    %246 = vector.broadcast %224 : vector<1x32xf32> to vector<8x32xf32>
    %247 = arith.mulf %245, %246 : vector<8x32xf32>
    %248 = vector.broadcast %227 : vector<1x32xf32> to vector<8x32xf32>
    %249 = arith.addf %247, %248 : vector<8x32xf32>
    %c2_i32 = arith.constant 2 : i32
    %c0_102 = arith.constant 0 : index
    %c0_103 = arith.constant 0 : index
    %c0_104 = arith.constant 0 : index
    %250 = vector.load %arg15[%c0_102, %c0_103, %c0_104] : memref<1x8x32xf32, #tpu.memory_space<vmem>>, vector<1x8x32xf32>
    %251 = vector.shape_cast %250 : vector<1x8x32xf32> to vector<8x32xf32>
    %252 = vector.shape_cast %249 : vector<8x32xf32> to vector<1x8x32xf32>
    tpu.vector_store %arg15[%c0_102, %c0_103, %c0_104], %252 {strides = array<i32>} : memref<1x8x32xf32, #tpu.memory_space<vmem>>, vector<1x8x32xf32>,
    return
  }
  func.func @transform_0(%arg0: i32) -> (i32, i32, i32) {
    %c0_i32 = arith.constant 0 : i32
    %c0_i32_0 = arith.constant 0 : i32
    %c0_i32_1 = arith.constant 0 : i32
    return %arg0, %c0_i32, %c0_i32_0 : i32, i32, i32
  }
  func.func @transform_1(%arg0: i32) -> (i32, i32, i32) {
    %c0_i32 = arith.constant 0 : i32
    %c0_i32_0 = arith.constant 0 : i32
    %c0_i32_1 = arith.constant 0 : i32
    return %arg0, %c0_i32, %c0_i32_0 : i32, i32, i32
  }
  func.func @transform_2(%arg0: i32) -> (i32, i32, i32, i32) {
    %c0_i32 = arith.constant 0 : i32
    %c0_i32_0 = arith.constant 0 : i32
    %c0_i32_1 = arith.constant 0 : i32
    %c0_i32_2 = arith.constant 0 : i32
    %c0_i32_3 = arith.constant 0 : i32
    return %c0_i32, %c0_i32_0, %c0_i32_1, %c0_i32_2 : i32, i32, i32, i32
  }
  func.func @transform_3(%arg0: i32) -> (i32, i32, i32, i32) {
    %c0_i32 = arith.constant 0 : i32
    %c0_i32_0 = arith.constant 0 : i32
    %c0_i32_1 = arith.constant 0 : i32
    %c0_i32_2 = arith.constant 0 : i32
    %c0_i32_3 = arith.constant 0 : i32
    return %c0_i32, %c0_i32_0, %c0_i32_1, %c0_i32_2 : i32, i32, i32, i32
  }
  func.func @transform_4(%arg0: i32) -> (i32, i32, i32, i32) {
    %c0_i32 = arith.constant 0 : i32
    %c0_i32_0 = arith.constant 0 : i32
    %c0_i32_1 = arith.constant 0 : i32
    %c0_i32_2 = arith.constant 0 : i32
    %c0_i32_3 = arith.constant 0 : i32
    return %c0_i32, %c0_i32_0, %c0_i32_1, %c0_i32_2 : i32, i32, i32, i32
  }
  func.func @transform_5(%arg0: i32) -> (i32, i32, i32) {
    %c0_i32 = arith.constant 0 : i32
    %c0_i32_0 = arith.constant 0 : i32
    %c0_i32_1 = arith.constant 0 : i32
    %c0_i32_2 = arith.constant 0 : i32
    return %c0_i32, %c0_i32_0, %c0_i32_1 : i32, i32, i32
  }
  func.func @transform_6(%arg0: i32) -> (i32, i32, i32) {
    %c0_i32 = arith.constant 0 : i32
    %c0_i32_0 = arith.constant 0 : i32
    %c0_i32_1 = arith.constant 0 : i32
    %c0_i32_2 = arith.constant 0 : i32
    return %c0_i32, %c0_i32_0, %c0_i32_1 : i32, i32, i32
  }
  func.func @transform_7(%arg0: i32) -> (i32, i32, i32) {
    %c0_i32 = arith.constant 0 : i32
    %c0_i32_0 = arith.constant 0 : i32
    %c0_i32_1 = arith.constant 0 : i32
    %c0_i32_2 = arith.constant 0 : i32
    return %c0_i32, %c0_i32_0, %c0_i32_1 : i32, i32, i32
  }
  func.func @transform_8(%arg0: i32) -> (i32, i32, i32) {
    %c0_i32 = arith.constant 0 : i32
    %c0_i32_0 = arith.constant 0 : i32
    %c0_i32_1 = arith.constant 0 : i32
    %c0_i32_2 = arith.constant 0 : i32
    return %c0_i32, %c0_i32_0, %c0_i32_1 : i32, i32, i32
  }
  func.func @transform_9(%arg0: i32) -> (i32, i32, i32) {
    %c0_i32 = arith.constant 0 : i32
    %c0_i32_0 = arith.constant 0 : i32
    %c0_i32_1 = arith.constant 0 : i32
    %c0_i32_2 = arith.constant 0 : i32
    return %c0_i32, %c0_i32_0, %c0_i32_1 : i32, i32, i32
  }
  func.func @transform_10(%arg0: i32) -> (i32, i32, i32) {
    %c0_i32 = arith.constant 0 : i32
    %c0_i32_0 = arith.constant 0 : i32
    %c0_i32_1 = arith.constant 0 : i32
    %c0_i32_2 = arith.constant 0 : i32
    return %c0_i32, %c0_i32_0, %c0_i32_1 : i32, i32, i32
  }
  func.func @transform_11(%arg0: i32) -> (i32, i32, i32) {
    %c0_i32 = arith.constant 0 : i32
    %c0_i32_0 = arith.constant 0 : i32
    %c0_i32_1 = arith.constant 0 : i32
    %c0_i32_2 = arith.constant 0 : i32
    return %c0_i32, %c0_i32_0, %c0_i32_1 : i32, i32, i32
  }
  func.func @transform_12(%arg0: i32) -> (i32, i32, i32) {
    %c0_i32 = arith.constant 0 : i32
    %c0_i32_0 = arith.constant 0 : i32
    %c0_i32_1 = arith.constant 0 : i32
    %c0_i32_2 = arith.constant 0 : i32
    return %c0_i32, %c0_i32_0, %c0_i32_1 : i32, i32, i32
  }
  func.func @transform_13(%arg0: i32) -> (i32, i32, i32) {
    %c0_i32 = arith.constant 0 : i32
    %c0_i32_0 = arith.constant 0 : i32
    %c0_i32_1 = arith.constant 0 : i32
    %c0_i32_2 = arith.constant 0 : i32
    return %c0_i32, %c0_i32_0, %c0_i32_1 : i32, i32, i32
  }
  func.func @transform_14(%arg0: i32) -> (i32, i32, i32) {
    %c0_i32 = arith.constant 0 : i32
    %c0_i32_0 = arith.constant 0 : i32
    %c0_i32_1 = arith.constant 0 : i32
    return %arg0, %c0_i32, %c0_i32_0 : i32, i32, i32
  }
}

</mosaic_0001>

<llo_original>
// kernel: tpu_custom_call.1
$region0: #{tpu_custom_call.1}
  #allocation0 [shape = 'u32[]', space=smem, size = 0x4, offset = 0x4, fixed_abs, tag = 'smem constant byte address 0x4 - core index']
  #allocation1 [shape = 'u32[144,128]{1,0:T(1,128)}', space=vmem, size = 0x12000, scoped, tag = 'internal scratch']
  %s0 = inlined_call_operand.vmem [shape: f32[2,8,32], index: 0, kind: input, shape index: {}]
  %s1 = inlined_call_operand.vmem [shape: f32[2,1,8], index: 1, kind: input, shape index: {}]
  %s2 = inlined_call_operand.vmem [shape: f32[2,4,32,24], index: 2, kind: input, shape index: {}]
  %s3 = inlined_call_operand.vmem [shape: f32[2,4,1,24], index: 3, kind: input, shape index: {}]
  %s4 = inlined_call_operand.vmem [shape: f32[2,4,8,32], index: 4, kind: input, shape index: {}]
  %s5 = inlined_call_operand.vmem [shape: f32[2,1,32], index: 5, kind: input, shape index: {}]
  %s6 = inlined_call_operand.vmem [shape: f32[2,1,32], index: 6, kind: input, shape index: {}]
  %s7 = inlined_call_operand.vmem [shape: f32[2,1,32], index: 7, kind: input, shape index: {}]
  %s8 = inlined_call_operand.vmem [shape: f32[2,32,64], index: 8, kind: input, shape index: {}]
  %s9 = inlined_call_operand.vmem [shape: f32[2,1,64], index: 9, kind: input, shape index: {}]
  %s10 = inlined_call_operand.vmem [shape: f32[2,64,32], index: 10, kind: input, shape index: {}]
  %s11 = inlined_call_operand.vmem [shape: f32[2,1,32], index: 11, kind: input, shape index: {}]
  %s12 = inlined_call_operand.vmem [shape: f32[2,1,32], index: 12, kind: input, shape index: {}]
  %s13 = inlined_call_operand.vmem [shape: f32[2,1,32], index: 13, kind: input, shape index: {}]
  %s14 = inlined_call_operand.hbm [shape: f32[2,8,32], index: 14, kind: output, shape index: {}]
  %s15 = sld [smem:[#allocation0]]
  $region89: #{tpu_custom_call.1} parent=0
    _
  %s17 = ssub.s32 1, %s15
  %s18 = scalar_select 0, %s17, %s15
  $region1: #{tpu_custom_call.1} parent=0
    #allocation2 [shape = 'u8[8192]{0}', space=vmem, size = 0x2000, scoped, tag = 'output window, operand 0']
    #allocation3 [shape = 's32[2]{0}', space=sflag, size = 0x8, scoped, tag = 'scoped memory for tpu_custom_call.1']
    %19 = vsyncpa [#allocation3], 0
    %s20 = scalar_lea.sflag [#allocation3], 1
    %21 = vsyncpa %s20, 0
    loop: start=0, step=1, limit=4
    $region2: #{tpu_custom_call.1} parent=1 // loop_pre_header
      _
    $region3: #{tpu_custom_call.1} parent=1 // loop_header
      %s23 = sphi 0, %s27
      %p24 = scmp.ge.s32.totalorder %s23, 4
      %s33 = sphi 0, %s35
      %s36 = sphi 0, %s33
      %s37 = sphi 0, %s36
      %s53 = sphi 0, %s37
      %s59 = sphi 0, %s61
      %s62 = sphi 0, %s59
      %s63 = sphi 0, %s62
      %s79 = sphi 0, %s63
      %s83 = sphi 0, %s83
      %s85 = sphi 0, %s83
      %s86 = sphi 0, %s85
      %s100 = sphi 0, %s86
      %s104 = sphi 0, %s104
      %s106 = sphi 0, %s104
      %s107 = sphi 0, %s106
      %s121 = sphi 0, %s107
      %s125 = sphi 0, %s125
      %s127 = sphi 0, %s125
      %s128 = sphi 0, %s127
      %s142 = sphi 0, %s128
      %s146 = sphi 0, %s146
      %s148 = sphi 0, %s146
      %s149 = sphi 0, %s148
      %s163 = sphi 0, %s149
      %s167 = sphi 0, %s167
      %s169 = sphi 0, %s167
      %s170 = sphi 0, %s169
      %s184 = sphi 0, %s170
      %s188 = sphi 0, %s188
      %s190 = sphi 0, %s188
      %s191 = sphi 0, %s190
      %s205 = sphi 0, %s191
      %s209 = sphi 0, %s209
      %s211 = sphi 0, %s209
      %s212 = sphi 0, %s211
      %s226 = sphi 0, %s212
      %s230 = sphi 0, %s230
      %s232 = sphi 0, %s230
      %s233 = sphi 0, %s232
      %s247 = sphi 0, %s233
      %s251 = sphi 0, %s251
      %s253 = sphi 0, %s251
      %s254 = sphi 0, %s253
      %s268 = sphi 0, %s254
      %s272 = sphi 0, %s272
      %s274 = sphi 0, %s272
      %s275 = sphi 0, %s274
      %s289 = sphi 0, %s275
      %s293 = sphi 0, %s293
      %s295 = sphi 0, %s293
      %s296 = sphi 0, %s295
      %s310 = sphi 0, %s296
      %s314 = sphi 0, %s314
      %s316 = sphi 0, %s314
      %s317 = sphi 0, %s316
      %s331 = sphi 0, %s317
      %s337 = sphi 0, %s339
      %s340 = sphi 0, %s337
      %s341 = sphi 0, %s340
      %s357 = sphi 0, %s341
    $region4: #{tpu_custom_call.1} parent=1 // loop_header_branch
      %26 = sbr.rel (%p24) target = $region8
    $region5: #{tpu_custom_call.1} parent=1 // loop_body
      %s28 = ssub.s32 %s23, 1
      %s29 = ssub.s32 %s23, 2
      %s30 = sadd.s32 %s23, 1
      %s31 = ssub.s32 %s23, %s30
      %p32 = scmp.eq.s32.totalorder %s31, 0
      %s34 = sadd.s32 %s33, 1
      %s35 = scalar_select %p32, %s33, %s34
      %p38 = pneg %p32
      %p39 = scmp.eq.s32.totalorder %s23, 1
      %p40 = por %p38, %p39
      %p41 = scmp.ne.s32.totalorder %s33, %s36
      %p42 = scmp.eq.s32.totalorder %s23, 0
      %p43 = por %p41, %p42
      %p44 = scmp.ne.s32.totalorder %s33, %s36
      %p45 = scmp.eq.s32.totalorder %s28, 1
      %p46 = por %p44, %p45
      %p47 = scmp.ne.s32.totalorder %s36, %s37
      %p48 = scmp.eq.s32.totalorder %s28, 0
      %p49 = por %p47, %p48
      %p50 = scmp.ne.s32.totalorder %s36, %s37
      %p51 = scmp.eq.s32.totalorder %s29, 1
      %p52 = por %p50, %p51
      %p54 = scmp.ne.s32.totalorder %s37, %s53
      %p55 = scmp.eq.s32.totalorder %s29, 0
      %p56 = por %p54, %p55
      %s57 = ssub.s32 %s23, %s30
      %p58 = scmp.eq.s32.totalorder %s57, 0
      %s60 = sadd.s32 %s59, 1
      %s61 = scalar_select %p58, %s59, %s60
      %p64 = pneg %p58
      %p65 = scmp.eq.s32.totalorder %s23, 1
      %p66 = por %p64, %p65
      %p67 = scmp.ne.s32.totalorder %s59, %s62
      %p68 = scmp.eq.s32.totalorder %s23, 0
      %p69 = por %p67, %p68
      %p70 = scmp.ne.s32.totalorder %s59, %s62
      %p71 = scmp.eq.s32.totalorder %s28, 1
      %p72 = por %p70, %p71
      %p73 = scmp.ne.s32.totalorder %s62, %s63
      %p74 = scmp.eq.s32.totalorder %s28, 0
      %p75 = por %p73, %p74
      %p76 = scmp.ne.s32.totalorder %s62, %s63
      %p77 = scmp.eq.s32.totalorder %s29, 1
      %p78 = por %p76, %p77
      %p80 = scmp.ne.s32.totalorder %s63, %s79
      %p81 = scmp.eq.s32.totalorder %s29, 0
      %p82 = por %p80, %p81
      %s84 = sadd.s32 %s83, 1
      %p87 = scmp.eq.s32.totalorder %s23, 1
      %p88 = scmp.ne.s32.totalorder %s83, %s85
      %p89 = scmp.eq.s32.totalorder %s23, 0
      %p90 = por %p88, %p89
      %p91 = scmp.ne.s32.totalorder %s83, %s85
      %p92 = scmp.eq.s32.totalorder %s28, 1
      %p93 = por %p91, %p92
      %p94 = scmp.ne.s32.totalorder %s85, %s86
      %p95 = scmp.eq.s32.totalorder %s28, 0
      %p96 = por %p94, %p95
      %p97 = scmp.ne.s32.totalorder %s85, %s86
      %p98 = scmp.eq.s32.totalorder %s29, 1
      %p99 = por %p97, %p98
      %p101 = scmp.ne.s32.totalorder %s86, %s100
      %p102 = scmp.eq.s32.totalorder %s29, 0
      %p103 = por %p101, %p102
      %s105 = sadd.s32 %s104, 1
      %p108 = scmp.eq.s32.totalorder %s23, 1
      %p109 = scmp.ne.s32.totalorder %s104, %s106
      %p110 = scmp.eq.s32.totalorder %s23, 0
      %p111 = por %p109, %p110
      %p112 = scmp.ne.s32.totalorder %s104, %s106
      %p113 = scmp.eq.s32.totalorder %s28, 1
      %p114 = por %p112, %p113
      %p115 = scmp.ne.s32.totalorder %s106, %s107
      %p116 = scmp.eq.s32.totalorder %s28, 0
      %p117 = por %p115, %p116
      %p118 = scmp.ne.s32.totalorder %s106, %s107
      %p119 = scmp.eq.s32.totalorder %s29, 1
      %p120 = por %p118, %p119
      %p122 = scmp.ne.s32.totalorder %s107, %s121
      %p123 = scmp.eq.s32.totalorder %s29, 0
      %p124 = por %p122, %p123
      %s126 = sadd.s32 %s125, 1
      %p129 = scmp.eq.s32.totalorder %s23, 1
      %p130 = scmp.ne.s32.totalorder %s125, %s127
      %p131 = scmp.eq.s32.totalorder %s23, 0
      %p132 = por %p130, %p131
      %p133 = scmp.ne.s32.totalorder %s125, %s127
      %p134 = scmp.eq.s32.totalorder %s28, 1
      %p135 = por %p133, %p134
      %p136 = scmp.ne.s32.totalorder %s127, %s128
      %p137 = scmp.eq.s32.totalorder %s28, 0
      %p138 = por %p136, %p137
      %p139 = scmp.ne.s32.totalorder %s127, %s128
      %p140 = scmp.eq.s32.totalorder %s29, 1
      %p141 = por %p139, %p140
      %p143 = scmp.ne.s32.totalorder %s128, %s142
      %p144 = scmp.eq.s32.totalorder %s29, 0
      %p145 = por %p143, %p144
      %s147 = sadd.s32 %s146, 1
      %p150 = scmp.eq.s32.totalorder %s23, 1
      %p151 = scmp.ne.s32.totalorder %s146, %s148
      %p152 = scmp.eq.s32.totalorder %s23, 0
      %p153 = por %p151, %p152
      %p154 = scmp.ne.s32.totalorder %s146, %s148
      %p155 = scmp.eq.s32.totalorder %s28, 1
      %p156 = por %p154, %p155
      %p157 = scmp.ne.s32.totalorder %s148, %s149
      %p158 = scmp.eq.s32.totalorder %s28, 0
      %p159 = por %p157, %p158
      %p160 = scmp.ne.s32.totalorder %s148, %s149
      %p161 = scmp.eq.s32.totalorder %s29, 1
      %p162 = por %p160, %p161
      %p164 = scmp.ne.s32.totalorder %s149, %s163
      %p165 = scmp.eq.s32.totalorder %s29, 0
      %p166 = por %p164, %p165
      %s168 = sadd.s32 %s167, 1
      %p171 = scmp.eq.s32.totalorder %s23, 1
      %p172 = scmp.ne.s32.totalorder %s167, %s169
      %p173 = scmp.eq.s32.totalorder %s23, 0
      %p174 = por %p172, %p173
      %p175 = scmp.ne.s32.totalorder %s167, %s169
      %p176 = scmp.eq.s32.totalorder %s28, 1
      %p177 = por %p175, %p176
      %p178 = scmp.ne.s32.totalorder %s169, %s170
      %p179 = scmp.eq.s32.totalorder %s28, 0
      %p180 = por %p178, %p179
      %p181 = scmp.ne.s32.totalorder %s169, %s170
      %p182 = scmp.eq.s32.totalorder %s29, 1
      %p183 = por %p181, %p182
      %p185 = scmp.ne.s32.totalorder %s170, %s184
      %p186 = scmp.eq.s32.totalorder %s29, 0
      %p187 = por %p185, %p186
      %s189 = sadd.s32 %s188, 1
      %p192 = scmp.eq.s32.totalorder %s23, 1
      %p193 = scmp.ne.s32.totalorder %s188, %s190
      %p194 = scmp.eq.s32.totalorder %s23, 0
      %p195 = por %p193, %p194
      %p196 = scmp.ne.s32.totalorder %s188, %s190
      %p197 = scmp.eq.s32.totalorder %s28, 1
      %p198 = por %p196, %p197
      %p199 = scmp.ne.s32.totalorder %s190, %s191
      %p200 = scmp.eq.s32.totalorder %s28, 0
      %p201 = por %p199, %p200
      %p202 = scmp.ne.s32.totalorder %s190, %s191
      %p203 = scmp.eq.s32.totalorder %s29, 1
      %p204 = por %p202, %p203
      %p206 = scmp.ne.s32.totalorder %s191, %s205
      %p207 = scmp.eq.s32.totalorder %s29, 0
      %p208 = por %p206, %p207
      %s210 = sadd.s32 %s209, 1
      %p213 = scmp.eq.s32.totalorder %s23, 1
      %p214 = scmp.ne.s32.totalorder %s209, %s211
      %p215 = scmp.eq.s32.totalorder %s23, 0
      %p216 = por %p214, %p215
      %p217 = scmp.ne.s32.totalorder %s209, %s211
      %p218 = scmp.eq.s32.totalorder %s28, 1
      %p219 = por %p217, %p218
      %p220 = scmp.ne.s32.totalorder %s211, %s212
      %p221 = scmp.eq.s32.totalorder %s28, 0
      %p222 = por %p220, %p221
      %p223 = scmp.ne.s32.totalorder %s211, %s212
      %p224 = scmp.eq.s32.totalorder %s29, 1
      %p225 = por %p223, %p224
      %p227 = scmp.ne.s32.totalorder %s212, %s226
      %p228 = scmp.eq.s32.totalorder %s29, 0
      %p229 = por %p227, %p228
      %s231 = sadd.s32 %s230, 1
      %p234 = scmp.eq.s32.totalorder %s23, 1
      %p235 = scmp.ne.s32.totalorder %s230, %s232
      %p236 = scmp.eq.s32.totalorder %s23, 0
      %p237 = por %p235, %p236
      %p238 = scmp.ne.s32.totalorder %s230, %s232
      %p239 = scmp.eq.s32.totalorder %s28, 1
      %p240 = por %p238, %p239
      %p241 = scmp.ne.s32.totalorder %s232, %s233
      %p242 = scmp.eq.s32.totalorder %s28, 0
      %p243 = por %p241, %p242
      %p244 = scmp.ne.s32.totalorder %s232, %s233
      %p245 = scmp.eq.s32.totalorder %s29, 1
      %p246 = por %p244, %p245
      %p248 = scmp.ne.s32.totalorder %s233, %s247
      %p249 = scmp.eq.s32.totalorder %s29, 0
      %p250 = por %p248, %p249
      %s252 = sadd.s32 %s251, 1
      %p255 = scmp.eq.s32.totalorder %s23, 1
      %p256 = scmp.ne.s32.totalorder %s251, %s253
      %p257 = scmp.eq.s32.totalorder %s23, 0
      %p258 = por %p256, %p257
      %p259 = scmp.ne.s32.totalorder %s251, %s253
      %p260 = scmp.eq.s32.totalorder %s28, 1
      %p261 = por %p259, %p260
      %p262 = scmp.ne.s32.totalorder %s253, %s254
      %p263 = scmp.eq.s32.totalorder %s28, 0
      %p264 = por %p262, %p263
      %p265 = scmp.ne.s32.totalorder %s253, %s254
      %p266 = scmp.eq.s32.totalorder %s29, 1
      %p267 = por %p265, %p266
      %p269 = scmp.ne.s32.totalorder %s254, %s268
      %p270 = scmp.eq.s32.totalorder %s29, 0
      %p271 = por %p269, %p270
      %s273 = sadd.s32 %s272, 1
      %p276 = scmp.eq.s32.totalorder %s23, 1
      %p277 = scmp.ne.s32.totalorder %s272, %s274
      %p278 = scmp.eq.s32.totalorder %s23, 0
      %p279 = por %p277, %p278
      %p280 = scmp.ne.s32.totalorder %s272, %s274
      %p281 = scmp.eq.s32.totalorder %s28, 1
      %p282 = por %p280, %p281
      %p283 = scmp.ne.s32.totalorder %s274, %s275
      %p284 = scmp.eq.s32.totalorder %s28, 0
      %p285 = por %p283, %p284
      %p286 = scmp.ne.s32.totalorder %s274, %s275
      %p287 = scmp.eq.s32.totalorder %s29, 1
      %p288 = por %p286, %p287
      %p290 = scmp.ne.s32.totalorder %s275, %s289
      %p291 = scmp.eq.s32.totalorder %s29, 0
      %p292 = por %p290, %p291
      %s294 = sadd.s32 %s293, 1
      %p297 = scmp.eq.s32.totalorder %s23, 1
      %p298 = scmp.ne.s32.totalorder %s293, %s295
      %p299 = scmp.eq.s32.totalorder %s23, 0
      %p300 = por %p298, %p299
      %p301 = scmp.ne.s32.totalorder %s293, %s295
      %p302 = scmp.eq.s32.totalorder %s28, 1
      %p303 = por %p301, %p302
      %p304 = scmp.ne.s32.totalorder %s295, %s296
      %p305 = scmp.eq.s32.totalorder %s28, 0
      %p306 = por %p304, %p305
      %p307 = scmp.ne.s32.totalorder %s295, %s296
      %p308 = scmp.eq.s32.totalorder %s29, 1
      %p309 = por %p307, %p308
      %p311 = scmp.ne.s32.totalorder %s296, %s310
      %p312 = scmp.eq.s32.totalorder %s29, 0
      %p313 = por %p311, %p312
      %s315 = sadd.s32 %s314, 1
      %p318 = scmp.eq.s32.totalorder %s23, 1
      %p319 = scmp.ne.s32.totalorder %s314, %s316
      %p320 = scmp.eq.s32.totalorder %s23, 0
      %p321 = por %p319, %p320
      %p322 = scmp.ne.s32.totalorder %s314, %s316
      %p323 = scmp.eq.s32.totalorder %s28, 1
      %p324 = por %p322, %p323
      %p325 = scmp.ne.s32.totalorder %s316, %s317
      %p326 = scmp.eq.s32.totalorder %s28, 0
      %p327 = por %p325, %p326
      %p328 = scmp.ne.s32.totalorder %s316, %s317
      %p329 = scmp.eq.s32.totalorder %s29, 1
      %p330 = por %p328, %p329
      %p332 = scmp.ne.s32.totalorder %s317, %s331
      %p333 = scmp.eq.s32.totalorder %s29, 0
      %p334 = por %p332, %p333
      %s335 = ssub.s32 %s23, %s30
      %p336 = scmp.eq.s32.totalorder %s335, 0
      %s338 = sadd.s32 %s337, 1
      %s339 = scalar_select %p336, %s337, %s338
      %p342 = pneg %p336
      %p343 = scmp.eq.s32.totalorder %s23, 1
      %p344 = por %p342, %p343
      %p345 = scmp.ne.s32.totalorder %s337, %s340
      %p346 = scmp.eq.s32.totalorder %s23, 0
      %p347 = por %p345, %p346
      %p348 = scmp.ne.s32.totalorder %s337, %s340
      %p349 = scmp.eq.s32.totalorder %s28, 1
      %p350 = por %p348, %p349
      %p351 = scmp.ne.s32.totalorder %s340, %s341
      %p352 = scmp.eq.s32.totalorder %s28, 0
      %p353 = por %p351, %p352
      %p354 = scmp.ne.s32.totalorder %s340, %s341
      %p355 = scmp.eq.s32.totalorder %s29, 1
      %p356 = por %p354, %p355
      %p358 = scmp.ne.s32.totalorder %s341, %s357
      %p359 = scmp.eq.s32.totalorder %s29, 0
      %p360 = por %p358, %p359
      %p361 = scmp.le.s32.totalorder 1, %s23
      %p362 = scmp.lt.s32.totalorder %s23, 3
      %p363 = pnand %p361, %p362
      %p364 = pneg %p363
      // Predicated region
      $region9: #{tpu_custom_call.1} parent=5 // pred_check
        _
      $region10: #{tpu_custom_call.1} parent=5 // pred_check_branch
        %366 = sbr.rel (%p363) target = $region12
      $region11: #{tpu_custom_call.1} parent=5 // pred_region
        %s367 = ssub.s32 %s23, 1
        // Predicated region
        $region13: #{tpu_custom_call.1} parent=11 // pred_check
          %p368 = pneg %p96
        $region14: #{tpu_custom_call.1} parent=11 // pred_check_branch
          %370 = sbr.rel (%p368) target = $region16
        $region15: #{tpu_custom_call.1} parent=11 // pred_region
          _
        $region16: #{tpu_custom_call.1} parent=11 // pred_fallthru
          _
        // Predicated region
        $region17: #{tpu_custom_call.1} parent=11 // pred_check
          %p371 = pneg %p117
        $region18: #{tpu_custom_call.1} parent=11 // pred_check_branch
          %373 = sbr.rel (%p371) target = $region20
        $region19: #{tpu_custom_call.1} parent=11 // pred_region
          _
        $region20: #{tpu_custom_call.1} parent=11 // pred_fallthru
          _
        // Predicated region
        $region21: #{tpu_custom_call.1} parent=11 // pred_check
          %p374 = pneg %p138
        $region22: #{tpu_custom_call.1} parent=11 // pred_check_branch
          %376 = sbr.rel (%p374) target = $region24
        $region23: #{tpu_custom_call.1} parent=11 // pred_region
          _
        $region24: #{tpu_custom_call.1} parent=11 // pred_fallthru
          _
        // Predicated region
        $region25: #{tpu_custom_call.1} parent=11 // pred_check
          %p377 = pneg %p159
        $region26: #{tpu_custom_call.1} parent=11 // pred_check_branch
          %379 = sbr.rel (%p377) target = $region28
        $region27: #{tpu_custom_call.1} parent=11 // pred_region
          _
        $region28: #{tpu_custom_call.1} parent=11 // pred_fallthru
          _
        // Predicated region
        $region29: #{tpu_custom_call.1} parent=11 // pred_check
          %p380 = pneg %p180
        $region30: #{tpu_custom_call.1} parent=11 // pred_check_branch
          %382 = sbr.rel (%p380) target = $region32
        $region31: #{tpu_custom_call.1} parent=11 // pred_region
          _
        $region32: #{tpu_custom_call.1} parent=11 // pred_fallthru
          _
        // Predicated region
        $region33: #{tpu_custom_call.1} parent=11 // pred_check
          %p383 = pneg %p201
        $region34: #{tpu_custom_call.1} parent=11 // pred_check_branch
          %385 = sbr.rel (%p383) target = $region36
        $region35: #{tpu_custom_call.1} parent=11 // pred_region
          _
        $region36: #{tpu_custom_call.1} parent=11 // pred_fallthru
          _
        // Predicated region
        $region37: #{tpu_custom_call.1} parent=11 // pred_check
          %p386 = pneg %p222
        $region38: #{tpu_custom_call.1} parent=11 // pred_check_branch
          %388 = sbr.rel (%p386) target = $region40
        $region39: #{tpu_custom_call.1} parent=11 // pred_region
          _
        $region40: #{tpu_custom_call.1} parent=11 // pred_fallthru
          _
        // Predicated region
        $region41: #{tpu_custom_call.1} parent=11 // pred_check
          %p389 = pneg %p243
        $region42: #{tpu_custom_call.1} parent=11 // pred_check_branch
          %391 = sbr.rel (%p389) target = $region44
        $region43: #{tpu_custom_call.1} parent=11 // pred_region
          _
        $region44: #{tpu_custom_call.1} parent=11 // pred_fallthru
          _
        // Predicated region
        $region45: #{tpu_custom_call.1} parent=11 // pred_check
          %p392 = pneg %p264
        $region46: #{tpu_custom_call.1} parent=11 // pred_check_branch
          %394 = sbr.rel (%p392) target = $region48
        $region47: #{tpu_custom_call.1} parent=11 // pred_region
          _
        $region48: #{tpu_custom_call.1} parent=11 // pred_fallthru
          _
        // Predicated region
        $region49: #{tpu_custom_call.1} parent=11 // pred_check
          %p395 = pneg %p285
        $region50: #{tpu_custom_call.1} parent=11 // pred_check_branch
          %397 = sbr.rel (%p395) target = $region52
        $region51: #{tpu_custom_call.1} parent=11 // pred_region
          _
        $region52: #{tpu_custom_call.1} parent=11 // pred_fallthru
          _
        // Predicated region
        $region53: #{tpu_custom_call.1} parent=11 // pred_check
          %p398 = pneg %p306
        $region54: #{tpu_custom_call.1} parent=11 // pred_check_branch
          %400 = sbr.rel (%p398) target = $region56
        $region55: #{tpu_custom_call.1} parent=11 // pred_region
          _
        $region56: #{tpu_custom_call.1} parent=11 // pred_fallthru
          _
        // Predicated region
        $region57: #{tpu_custom_call.1} parent=11 // pred_check
          %p401 = pneg %p327
        $region58: #{tpu_custom_call.1} parent=11 // pred_check_branch
          %403 = sbr.rel (%p401) target = $region60
        $region59: #{tpu_custom_call.1} parent=11 // pred_region
          _
        $region60: #{tpu_custom_call.1} parent=11 // pred_fallthru
          _
      $region12: #{tpu_custom_call.1} parent=5 // pred_fallthru
        _
      %p404 = scmp.lt.s32.totalorder %s23, 2
      // Predicated region
      $region61: #{tpu_custom_call.1} parent=5 // pred_check
        %p405 = pneg %p404
      $region62: #{tpu_custom_call.1} parent=5 // pred_check_branch
        %407 = sbr.rel (%p405) target = $region64
      $region63: #{tpu_custom_call.1} parent=5 // pred_region
        // Predicated region
        $region65: #{tpu_custom_call.1} parent=63 // pred_check
          %p408 = pneg %p43
        $region66: #{tpu_custom_call.1} parent=63 // pred_check_branch
          %410 = sbr.rel (%p408) target = $region68
        $region67: #{tpu_custom_call.1} parent=63 // pred_region
          %p411 = scmp.lt.s32.totalorder %s23, 1
          %s412 = scalar_select %p411, %s23, 1
          %s413 = smul.addr %s412, 8
          %s414 = scalar_lea.vmem %s0, %s413
        $region68: #{tpu_custom_call.1} parent=63 // pred_fallthru
          _
        // Predicated region
        $region69: #{tpu_custom_call.1} parent=63 // pred_check
          %p415 = pneg %p69
        $region70: #{tpu_custom_call.1} parent=63 // pred_check_branch
          %417 = sbr.rel (%p415) target = $region72
        $region71: #{tpu_custom_call.1} parent=63 // pred_region
          %p418 = scmp.lt.s32.totalorder %s23, 1
          %s419 = scalar_select %p418, %s23, 1
          %s420 = scalar_lea.vmem %s1, %s419
        $region72: #{tpu_custom_call.1} parent=63 // pred_fallthru
          _
      $region64: #{tpu_custom_call.1} parent=5 // pred_fallthru
        _
      %p421 = scmp.le.s32.totalorder 1, %s23
      %p422 = scmp.lt.s32.totalorder %s23, 3
      %p423 = pnand %p421, %p422
      %p424 = pneg %p423
      // Predicated region
      $region73: #{tpu_custom_call.1} parent=5 // pred_check
        _
      $region74: #{tpu_custom_call.1} parent=5 // pred_check_branch
        %426 = sbr.rel (%p423) target = $region76
      $region75: #{tpu_custom_call.1} parent=5 // pred_region
        %s427 = ssub.s32 %s23, 1
        %p428 = scmp.lt.s32.totalorder %s28, 1
        %s429 = scalar_select %p428, %s28, 1
        %s430 = smul.addr %s429, 8
        %s431 = scalar_lea.vmem %s0, %s430
        %p432 = pneg %p49
        %p433 = pneg %p46
        %p434 = scmp.lt.s32.totalorder %s28, 1
        %s435 = scalar_select %p434, %s28, 1
        %s436 = scalar_lea.vmem %s1, %s435
        %p437 = pneg %p75
        %p438 = pneg %p72
        %p439 = pneg %p96
        %p440 = pneg %p93
        %p441 = pneg %p117
        %p442 = pneg %p114
        %p443 = pneg %p138
        %p444 = pneg %p135
        %p445 = pneg %p159
        %p446 = pneg %p156
        %p447 = pneg %p180
        %p448 = pneg %p177
        %p449 = pneg %p201
        %p450 = pneg %p198
        %p451 = pneg %p222
        %p452 = pneg %p219
        %p453 = pneg %p243
        %p454 = pneg %p240
        %p455 = pneg %p264
        %p456 = pneg %p261
        %p457 = pneg %p285
        %p458 = pneg %p282
        %p459 = pneg %p306
        %p460 = pneg %p303
        %p461 = pneg %p327
        %p462 = pneg %p324
        %p463 = pneg %p353
        %p464 = pneg %p350
        %s465 = sand.u32 %s340, 1
        %s466 = scalar_lea.sflag [#allocation3], %s465
        %s467 = sand.u32 %s340, 1
        %s468 = smul.addr %s467, 8
        %s469 = scalar_lea.vmem [#allocation2], %s468
        %p470 = scmp.lt.s32.totalorder %s28, 1
        %s471 = scalar_select %p470, %s28, 1
        %s472 = smul.addr %s471, 8
        %s473 = scalar_lea.vmem %s0, %s472
        %p474 = scmp.lt.s32.totalorder %s28, 1
        %s475 = scalar_select %p474, %s28, 1
        %s476 = scalar_lea.vmem %s1, %s475
        %v477 = vld [vmem:[%s476] sm:$0x1]
        %v478 = vld [vmem:[%s473] sm:$0xff]
        %v479 = vld [vmem:[%s2] sm:$0xff]
        %v480 = vld [vmem:[%s2 + $0x8] sm:$0xff]
        %v481 = vld [vmem:[%s2 + $0x10] sm:$0xff]
        %v482 = vld [vmem:[%s2 + $0x18] sm:$0xff]
        %v483 = vld [vmem:[%s2 + $0x20] sm:$0xff]
        %v484 = vld [vmem:[%s2 + $0x28] sm:$0xff]
        %v485 = vld [vmem:[%s2 + $0x30] sm:$0xff]
        %v486 = vld [vmem:[%s2 + $0x38] sm:$0xff]
        %v487 = vld [vmem:[%s2 + $0x40] sm:$0xff]
        %v488 = vld [vmem:[%s2 + $0x48] sm:$0xff]
        %v489 = vld [vmem:[%s2 + $0x50] sm:$0xff]
        %v490 = vld [vmem:[%s2 + $0x58] sm:$0xff]
        %v491 = vld [vmem:[%s2 + $0x60] sm:$0xff]
        %v492 = vld [vmem:[%s2 + $0x68] sm:$0xff]
        %v493 = vld [vmem:[%s2 + $0x70] sm:$0xff]
        %v494 = vld [vmem:[%s2 + $0x78] sm:$0xff]
        %v495 = vld [vmem:[%s3] sm:$0x1]
        %v496 = vld [vmem:[%s3 + $0x1] sm:$0x1]
        %v497 = vld [vmem:[%s3 + $0x2] sm:$0x1]
        %v498 = vld [vmem:[%s3 + $0x3] sm:$0x1]
        %v503 = vlaneseq
        %v504 = vshrl.u32 %v503, 7
        %v505 = vsub.s32 0, %v504
        %v506 = vrot.slane %v495, %v505
        %v507 = vlaneseq
        %v508 = vshrl.u32 %v507, 7
        %v509 = vsub.s32 0, %v508
        %v510 = vrot.slane %v496, %v509
        %v511 = vlaneseq
        %v512 = vshrl.u32 %v511, 7
        %v513 = vsub.s32 0, %v512
        %v514 = vrot.slane %v497, %v513
        %v515 = vlaneseq
        %v516 = vshrl.u32 %v515, 7
        %v517 = vsub.s32 0, %v516
        %v518 = vrot.slane %v498, %v517
        %vm523 = vcmask 261120
        %v525 = vsel %vm523, %v478, 0
        %527 = vmatprep.subr.mxu0 0.0
        %528 = vmatpush1.msra.mxu0 %v479
        %529 = vmatprep.subr.mxu0 0.0
        %530 = vmatpush1.msra.mxu0 %v480
        %531 = vmatprep.subr.mxu0 0.0
        %532 = vmatpush1.msra.mxu0 %v481
        %533 = vmatprep.subr.mxu0 0.0
        %534 = vmatpush1.msra.mxu0 %v482
        %535 = vmatprep.subr.mxu0 0.0
        %536 = vmatpush1.msra.mxu0 0.0
        %537 = vmatprep.subr.mxu0 0.0
        %538 = vmatpush1.msra.mxu0 0.0
        %539 = vmatprep.subr.mxu0 0.0
        %540 = vmatpush1.msra.mxu0 0.0
        %541 = vmatprep.subr.mxu0 0.0
        %542 = vmatpush1.msra.mxu0 0.0
        %543 = vmatprep.subr.mxu0 0.0
        %544 = vmatpush1.msra.mxu0 0.0
        %545 = vmatprep.subr.mxu0 0.0
        %546 = vmatpush1.msra.mxu0 0.0
        %547 = vmatprep.subr.mxu0 0.0
        %548 = vmatpush1.msra.mxu0 0.0
        %549 = vmatprep.subr.mxu0 0.0
        %550 = vmatpush1.msra.mxu0 0.0
        %551 = vmatprep.subr.mxu0 0.0
        %552 = vmatpush1.msra.mxu0 0.0
        %553 = vmatprep.subr.mxu0 0.0
        %554 = vmatpush1.msra.mxu0 0.0
        %555 = vmatprep.subr.mxu0 0.0
        %556 = vmatpush1.msra.mxu0 0.0
        %557 = vmatprep.subr.mxu0 0.0
        %558 = vmatpush1.msra.mxu0 0.0
        %559 = vmatprep.subr.mxu0 0.0
        %560 = vmatpush1.msra.mxu0 0.0
        %561 = vmatprep.subr.mxu0 0.0
        %562 = vmatpush1.msra.mxu0 0.0
        %563 = vmatprep.subr.mxu0 0.0
        %564 = vmatpush1.msra.mxu0 0.0
        %565 = vmatprep.subr.mxu0 0.0
        %566 = vmatpush1.msra.mxu0 0.0
        %567 = vmatprep.subr.mxu0 0.0
        %568 = vmatpush1.msra.mxu0 0.0
        %569 = vmatprep.subr.mxu0 0.0
        %570 = vmatpush1.msra.mxu0 0.0
        %571 = vmatprep.subr.mxu0 0.0
        %572 = vmatpush1.msra.mxu0 0.0
        %573 = vmatprep.subr.mxu0 0.0
        %574 = vmatpush1.msra.mxu0 0.0
        %575 = vmatprep.subr.mxu0 0.0
        %576 = vmatpush1.msra.mxu0 0.0
        %577 = vmatprep.subr.mxu0 0.0
        %578 = vmatpush1.msra.mxu0 0.0
        %579 = vmatprep.subr.mxu0 0.0
        %580 = vmatpush1.msra.mxu0 0.0
        %581 = vmatprep.subr.mxu0 0.0
        %582 = vmatpush1.msra.mxu0 0.0
        %583 = vmatprep.subr.mxu0 0.0
        %584 = vmatpush1.msra.mxu0 0.0
        %585 = vmatprep.subr.mxu0 0.0
        %586 = vmatpush1.msra.mxu0 0.0
        %587 = vmatprep.subr.mxu0 0.0
        %588 = vmatpush1.msra.mxu0 0.0
        %589 = vmatprep.subr.mxu0 0.0
        %590 = vmatpush1.msra.mxu0 0.0
        %591 = vmatprep.mubr.f32.mxu0 0.0
        %592 = vmatmul.mubr.f32.gmra.mrb[0].mxu0 %v525
        %v593 = vpop.f32.mrb[0].mxu0
        %v594 = vadd.f32 %v506, %v593
        %v595 = vpop.f32.mrb[0].mxu0
        %596 = vdwg.mxu0
        %597 = vmatprep.subr.mxu0 0.0
        %598 = vmatpush1.msra.mxu0 %v483
        %599 = vmatprep.subr.mxu0 0.0
        %600 = vmatpush1.msra.mxu0 %v484
        %601 = vmatprep.subr.mxu0 0.0
        %602 = vmatpush1.msra.mxu0 %v485
        %603 = vmatprep.subr.mxu0 0.0
        %604 = vmatpush1.msra.mxu0 %v486
        %605 = vmatprep.subr.mxu0 0.0
        %606 = vmatpush1.msra.mxu0 0.0
        %607 = vmatprep.subr.mxu0 0.0
        %608 = vmatpush1.msra.mxu0 0.0
        %609 = vmatprep.subr.mxu0 0.0
        %610 = vmatpush1.msra.mxu0 0.0
        %611 = vmatprep.subr.mxu0 0.0
        %612 = vmatpush1.msra.mxu0 0.0
        %613 = vmatprep.subr.mxu0 0.0
        %614 = vmatpush1.msra.mxu0 0.0
        %615 = vmatprep.subr.mxu0 0.0
        %616 = vmatpush1.msra.mxu0 0.0
        %617 = vmatprep.subr.mxu0 0.0
        %618 = vmatpush1.msra.mxu0 0.0
        %619 = vmatprep.subr.mxu0 0.0
        %620 = vmatpush1.msra.mxu0 0.0
        %621 = vmatprep.subr.mxu0 0.0
        %622 = vmatpush1.msra.mxu0 0.0
        %623 = vmatprep.subr.mxu0 0.0
        %624 = vmatpush1.msra.mxu0 0.0
        %625 = vmatprep.subr.mxu0 0.0
        %626 = vmatpush1.msra.mxu0 0.0
        %627 = vmatprep.subr.mxu0 0.0
        %628 = vmatpush1.msra.mxu0 0.0
        %629 = vmatprep.subr.mxu0 0.0
        %630 = vmatpush1.msra.mxu0 0.0
        %631 = vmatprep.subr.mxu0 0.0
        %632 = vmatpush1.msra.mxu0 0.0
        %633 = vmatprep.subr.mxu0 0.0
        %634 = vmatpush1.msra.mxu0 0.0
        %635 = vmatprep.subr.mxu0 0.0
        %636 = vmatpush1.msra.mxu0 0.0
        %637 = vmatprep.subr.mxu0 0.0
        %638 = vmatpush1.msra.mxu0 0.0
        %639 = vmatprep.subr.mxu0 0.0
        %640 = vmatpush1.msra.mxu0 0.0
        %641 = vmatprep.subr.mxu0 0.0
        %642 = vmatpush1.msra.mxu0 0.0
        %643 = vmatprep.subr.mxu0 0.0
        %644 = vmatpush1.msra.mxu0 0.0
        %645 = vmatprep.subr.mxu0 0.0
        %646 = vmatpush1.msra.mxu0 0.0
        %647 = vmatprep.subr.mxu0 0.0
        %648 = vmatpush1.msra.mxu0 0.0
        %649 = vmatprep.subr.mxu0 0.0
        %650 = vmatpush1.msra.mxu0 0.0
        %651 = vmatprep.subr.mxu0 0.0
        %652 = vmatpush1.msra.mxu0 0.0
        %653 = vmatprep.subr.mxu0 0.0
        %654 = vmatpush1.msra.mxu0 0.0
        %655 = vmatprep.subr.mxu0 0.0
        %656 = vmatpush1.msra.mxu0 0.0
        %657 = vmatprep.subr.mxu0 0.0
        %658 = vmatpush1.msra.mxu0 0.0
        %659 = vmatprep.subr.mxu0 0.0
        %660 = vmatpush1.msra.mxu0 0.0
        %661 = vmatprep.mubr.f32.mxu0 0.0
        %662 = vmatmul.mubr.f32.gmra.mrb[0].mxu0 %v525
        %v663 = vpop.f32.mrb[0].mxu0
        %v664 = vadd.f32 %v510, %v663
        %v665 = vpop.f32.mrb[0].mxu0
        %666 = vdwg.mxu0
        %667 = vmatprep.subr.mxu0 0.0
        %668 = vmatpush1.msra.mxu0 %v487
        %669 = vmatprep.subr.mxu0 0.0
        %670 = vmatpush1.msra.mxu0 %v488
        %671 = vmatprep.subr.mxu0 0.0
        %672 = vmatpush1.msra.mxu0 %v489
        %673 = vmatprep.subr.mxu0 0.0
        %674 = vmatpush1.msra.mxu0 %v490
        %675 = vmatprep.subr.mxu0 0.0
        %676 = vmatpush1.msra.mxu0 0.0
        %677 = vmatprep.subr.mxu0 0.0
        %678 = vmatpush1.msra.mxu0 0.0
        %679 = vmatprep.subr.mxu0 0.0
        %680 = vmatpush1.msra.mxu0 0.0
        %681 = vmatprep.subr.mxu0 0.0
        %682 = vmatpush1.msra.mxu0 0.0
        %683 = vmatprep.subr.mxu0 0.0
        %684 = vmatpush1.msra.mxu0 0.0
        %685 = vmatprep.subr.mxu0 0.0
        %686 = vmatpush1.msra.mxu0 0.0
        %687 = vmatprep.subr.mxu0 0.0
        %688 = vmatpush1.msra.mxu0 0.0
        %689 = vmatprep.subr.mxu0 0.0
        %690 = vmatpush1.msra.mxu0 0.0
        %691 = vmatprep.subr.mxu0 0.0
        %692 = vmatpush1.msra.mxu0 0.0
        %693 = vmatprep.subr.mxu0 0.0
        %694 = vmatpush1.msra.mxu0 0.0
        %695 = vmatprep.subr.mxu0 0.0
        %696 = vmatpush1.msra.mxu0 0.0
        %697 = vmatprep.subr.mxu0 0.0
        %698 = vmatpush1.msra.mxu0 0.0
        %699 = vmatprep.subr.mxu0 0.0
        %700 = vmatpush1.msra.mxu0 0.0
        %701 = vmatprep.subr.mxu0 0.0
        %702 = vmatpush1.msra.mxu0 0.0
        %703 = vmatprep.subr.mxu0 0.0
        %704 = vmatpush1.msra.mxu0 0.0
        %705 = vmatprep.subr.mxu0 0.0
        %706 = vmatpush1.msra.mxu0 0.0
        %707 = vmatprep.subr.mxu0 0.0
        %708 = vmatpush1.msra.mxu0 0.0
        %709 = vmatprep.subr.mxu0 0.0
        %710 = vmatpush1.msra.mxu0 0.0
        %711 = vmatprep.subr.mxu0 0.0
        %712 = vmatpush1.msra.mxu0 0.0
        %713 = vmatprep.subr.mxu0 0.0
        %714 = vmatpush1.msra.mxu0 0.0
        %715 = vmatprep.subr.mxu0 0.0
        %716 = vmatpush1.msra.mxu0 0.0
        %717 = vmatprep.subr.mxu0 0.0
        %718 = vmatpush1.msra.mxu0 0.0
        %719 = vmatprep.subr.mxu0 0.0
        %720 = vmatpush1.msra.mxu0 0.0
        %721 = vmatprep.subr.mxu0 0.0
        %722 = vmatpush1.msra.mxu0 0.0
        %723 = vmatprep.subr.mxu0 0.0
        %724 = vmatpush1.msra.mxu0 0.0
        %725 = vmatprep.subr.mxu0 0.0
        %726 = vmatpush1.msra.mxu0 0.0
        %727 = vmatprep.subr.mxu0 0.0
        %728 = vmatpush1.msra.mxu0 0.0
        %729 = vmatprep.subr.mxu0 0.0
        %730 = vmatpush1.msra.mxu0 0.0
        %731 = vmatprep.mubr.f32.mxu0 0.0
        %732 = vmatmul.mubr.f32.gmra.mrb[0].mxu0 %v525
        %v733 = vpop.f32.mrb[0].mxu0
        %v734 = vadd.f32 %v514, %v733
        %v735 = vpop.f32.mrb[0].mxu0
        %736 = vdwg.mxu0
        %737 = vmatprep.subr.mxu0 0.0
        %738 = vmatpush1.msra.mxu0 %v491
        %739 = vmatprep.subr.mxu0 0.0
        %740 = vmatpush1.msra.mxu0 %v492
        %741 = vmatprep.subr.mxu0 0.0
        %742 = vmatpush1.msra.mxu0 %v493
        %743 = vmatprep.subr.mxu0 0.0
        %744 = vmatpush1.msra.mxu0 %v494
        %745 = vmatprep.subr.mxu0 0.0
        %746 = vmatpush1.msra.mxu0 0.0
        %747 = vmatprep.subr.mxu0 0.0
        %748 = vmatpush1.msra.mxu0 0.0
        %749 = vmatprep.subr.mxu0 0.0
        %750 = vmatpush1.msra.mxu0 0.0
        %751 = vmatprep.subr.mxu0 0.0
        %752 = vmatpush1.msra.mxu0 0.0
        %753 = vmatprep.subr.mxu0 0.0
        %754 = vmatpush1.msra.mxu0 0.0
        %755 = vmatprep.subr.mxu0 0.0
        %756 = vmatpush1.msra.mxu0 0.0
        %757 = vmatprep.subr.mxu0 0.0
        %758 = vmatpush1.msra.mxu0 0.0
        %759 = vmatprep.subr.mxu0 0.0
        %760 = vmatpush1.msra.mxu0 0.0
        %761 = vmatprep.subr.mxu0 0.0
        %762 = vmatpush1.msra.mxu0 0.0
        %763 = vmatprep.subr.mxu0 0.0
        %764 = vmatpush1.msra.mxu0 0.0
        %765 = vmatprep.subr.mxu0 0.0
        %766 = vmatpush1.msra.mxu0 0.0
        %767 = vmatprep.subr.mxu0 0.0
        %768 = vmatpush1.msra.mxu0 0.0
        %769 = vmatprep.subr.mxu0 0.0
        %770 = vmatpush1.msra.mxu0 0.0
        %771 = vmatprep.subr.mxu0 0.0
        %772 = vmatpush1.msra.mxu0 0.0
        %773 = vmatprep.subr.mxu0 0.0
        %774 = vmatpush1.msra.mxu0 0.0
        %775 = vmatprep.subr.mxu0 0.0
        %776 = vmatpush1.msra.mxu0 0.0
        %777 = vmatprep.subr.mxu0 0.0
        %778 = vmatpush1.msra.mxu0 0.0
        %779 = vmatprep.subr.mxu0 0.0
        %780 = vmatpush1.msra.mxu0 0.0
        %781 = vmatprep.subr.mxu0 0.0
        %782 = vmatpush1.msra.mxu0 0.0
        %783 = vmatprep.subr.mxu0 0.0
        %784 = vmatpush1.msra.mxu0 0.0
        %785 = vmatprep.subr.mxu0 0.0
        %786 = vmatpush1.msra.mxu0 0.0
        %787 = vmatprep.subr.mxu0 0.0
        %788 = vmatpush1.msra.mxu0 0.0
        %789 = vmatprep.subr.mxu0 0.0
        %790 = vmatpush1.msra.mxu0 0.0
        %791 = vmatprep.subr.mxu0 0.0
        %792 = vmatpush1.msra.mxu0 0.0
        %793 = vmatprep.subr.mxu0 0.0
        %794 = vmatpush1.msra.mxu0 0.0
        %795 = vmatprep.subr.mxu0 0.0
        %796 = vmatpush1.msra.mxu0 0.0
        %797 = vmatprep.subr.mxu0 0.0
        %798 = vmatpush1.msra.mxu0 0.0
        %799 = vmatprep.subr.mxu0 0.0
        %800 = vmatpush1.msra.mxu0 0.0
        %801 = vmatprep.mubr.f32.mxu0 0.0
        %802 = vmatmul.mubr.f32.gmra.mrb[0].mxu0 %v525
        %v803 = vpop.f32.mrb[0].mxu0
        %v804 = vadd.f32 %v518, %v803
        %v805 = vpop.f32.mrb[0].mxu0
        %806 = vdwg.mxu0
        %v808 = vlaneseq
        %v809 = vshrl.u32 %v808, 7
        %v810 = vsub.s32 0, %v809
        %v811 = vrot.slane %v477, %v810
        %814 = vrot.lane.b32.xlu0 %v594, 120
        %v815 = vpop.permute.xlu0 %814
        %vm816 = vcmask 64512
        %v817 = vsel %vm816, %v594, 0
        %v819 = vsel %vm816, %v815, 0
        %821 = vmatprep.subr.mxu0 0.0
        %822 = vmatpush1.xpose.msra.mxu0 %v819
        %823 = vmatprep.subr.mxu0 0.0
        %824 = vmatpush1.xpose.msra.mxu0 0.0
        %825 = vmatprep.subr.mxu0 0.0
        %826 = vmatpush1.xpose.msra.mxu0 0.0
        %827 = vmatprep.subr.mxu0 0.0
        %828 = vmatpush1.xpose.msra.mxu0 0.0
        %829 = vmatprep.subr.mxu0 0.0
        %830 = vmatpush1.xpose.msra.mxu0 0.0
        %831 = vmatprep.subr.mxu0 0.0
        %832 = vmatpush1.xpose.msra.mxu0 0.0
        %833 = vmatprep.subr.mxu0 0.0
        %834 = vmatpush1.xpose.msra.mxu0 0.0
        %835 = vmatprep.subr.mxu0 0.0
        %836 = vmatpush1.xpose.msra.mxu0 0.0
        %837 = vmatprep.subr.mxu0 0.0
        %838 = vmatpush1.xpose.msra.mxu0 0.0
        %839 = vmatprep.subr.mxu0 0.0
        %840 = vmatpush1.xpose.msra.mxu0 0.0
        %841 = vmatprep.subr.mxu0 0.0
        %842 = vmatpush1.xpose.msra.mxu0 0.0
        %843 = vmatprep.subr.mxu0 0.0
        %844 = vmatpush1.xpose.msra.mxu0 0.0
        %845 = vmatprep.subr.mxu0 0.0
        %846 = vmatpush1.xpose.msra.mxu0 0.0
        %847 = vmatprep.subr.mxu0 0.0
        %848 = vmatpush1.xpose.msra.mxu0 0.0
        %849 = vmatprep.subr.mxu0 0.0
        %850 = vmatpush1.xpose.msra.mxu0 0.0
        %851 = vmatprep.subr.mxu0 0.0
        %852 = vmatpush1.xpose.msra.mxu0 0.0
        %853 = vmatprep.subr.mxu0 0.0
        %854 = vmatpush1.xpose.msra.mxu0 0.0
        %855 = vmatprep.subr.mxu0 0.0
        %856 = vmatpush1.xpose.msra.mxu0 0.0
        %857 = vmatprep.subr.mxu0 0.0
        %858 = vmatpush1.xpose.msra.mxu0 0.0
        %859 = vmatprep.subr.mxu0 0.0
        %860 = vmatpush1.xpose.msra.mxu0 0.0
        %861 = vmatprep.subr.mxu0 0.0
        %862 = vmatpush1.xpose.msra.mxu0 0.0
        %863 = vmatprep.subr.mxu0 0.0
        %864 = vmatpush1.xpose.msra.mxu0 0.0
        %865 = vmatprep.subr.mxu0 0.0
        %866 = vmatpush1.xpose.msra.mxu0 0.0
        %867 = vmatprep.subr.mxu0 0.0
        %868 = vmatpush1.xpose.msra.mxu0 0.0
        %869 = vmatprep.subr.mxu0 0.0
        %870 = vmatpush1.xpose.msra.mxu0 0.0
        %871 = vmatprep.subr.mxu0 0.0
        %872 = vmatpush1.xpose.msra.mxu0 0.0
        %873 = vmatprep.subr.mxu0 0.0
        %874 = vmatpush1.xpose.msra.mxu0 0.0
        %875 = vmatprep.subr.mxu0 0.0
        %876 = vmatpush1.xpose.msra.mxu0 0.0
        %877 = vmatprep.subr.mxu0 0.0
        %878 = vmatpush1.xpose.msra.mxu0 0.0
        %879 = vmatprep.subr.mxu0 0.0
        %880 = vmatpush1.xpose.msra.mxu0 0.0
        %881 = vmatprep.subr.mxu0 0.0
        %882 = vmatpush1.xpose.msra.mxu0 0.0
        %883 = vmatprep.subr.mxu0 0.0
        %884 = vmatpush1.xpose.msra.mxu0 0.0
        %885 = vmatprep.mubr.f32.mxu0 0.0
        %886 = vmatmul.mubr.f32.gmra.mrb[0].mxu0 %v817
        %v887 = vpop.f32.mrb[0].mxu0
        %v888 = vadd.f32 %v811, %v887
        %v889 = vpop.f32.mrb[0].mxu0
        %890 = vdwg.mxu0
        %892 = vrot.lane.b32.xlu0 %v664, 120
        %v893 = vpop.permute.xlu0 %892
        %v894 = vsel %vm816, %v664, 0
        %v896 = vsel %vm816, %v893, 0
        %898 = vmatprep.subr.mxu0 0.0
        %899 = vmatpush1.xpose.msra.mxu0 %v896
        %900 = vmatprep.subr.mxu0 0.0
        %901 = vmatpush1.xpose.msra.mxu0 0.0
        %902 = vmatprep.subr.mxu0 0.0
        %903 = vmatpush1.xpose.msra.mxu0 0.0
        %904 = vmatprep.subr.mxu0 0.0
        %905 = vmatpush1.xpose.msra.mxu0 0.0
        %906 = vmatprep.subr.mxu0 0.0
        %907 = vmatpush1.xpose.msra.mxu0 0.0
        %908 = vmatprep.subr.mxu0 0.0
        %909 = vmatpush1.xpose.msra.mxu0 0.0
        %910 = vmatprep.subr.mxu0 0.0
        %911 = vmatpush1.xpose.msra.mxu0 0.0
        %912 = vmatprep.subr.mxu0 0.0
        %913 = vmatpush1.xpose.msra.mxu0 0.0
        %914 = vmatprep.subr.mxu0 0.0
        %915 = vmatpush1.xpose.msra.mxu0 0.0
        %916 = vmatprep.subr.mxu0 0.0
        %917 = vmatpush1.xpose.msra.mxu0 0.0
        %918 = vmatprep.subr.mxu0 0.0
        %919 = vmatpush1.xpose.msra.mxu0 0.0
        %920 = vmatprep.subr.mxu0 0.0
        %921 = vmatpush1.xpose.msra.mxu0 0.0
        %922 = vmatprep.subr.mxu0 0.0
        %923 = vmatpush1.xpose.msra.mxu0 0.0
        %924 = vmatprep.subr.mxu0 0.0
        %925 = vmatpush1.xpose.msra.mxu0 0.0
        %926 = vmatprep.subr.mxu0 0.0
        %927 = vmatpush1.xpose.msra.mxu0 0.0
        %928 = vmatprep.subr.mxu0 0.0
        %929 = vmatpush1.xpose.msra.mxu0 0.0
        %930 = vmatprep.subr.mxu0 0.0
        %931 = vmatpush1.xpose.msra.mxu0 0.0
        %932 = vmatprep.subr.mxu0 0.0
        %933 = vmatpush1.xpose.msra.mxu0 0.0
        %934 = vmatprep.subr.mxu0 0.0
        %935 = vmatpush1.xpose.msra.mxu0 0.0
        %936 = vmatprep.subr.mxu0 0.0
        %937 = vmatpush1.xpose.msra.mxu0 0.0
        %938 = vmatprep.subr.mxu0 0.0
        %939 = vmatpush1.xpose.msra.mxu0 0.0
        %940 = vmatprep.subr.mxu0 0.0
        %941 = vmatpush1.xpose.msra.mxu0 0.0
        %942 = vmatprep.subr.mxu0 0.0
        %943 = vmatpush1.xpose.msra.mxu0 0.0
        %944 = vmatprep.subr.mxu0 0.0
        %945 = vmatpush1.xpose.msra.mxu0 0.0
        %946 = vmatprep.subr.mxu0 0.0
        %947 = vmatpush1.xpose.msra.mxu0 0.0
        %948 = vmatprep.subr.mxu0 0.0
        %949 = vmatpush1.xpose.msra.mxu0 0.0
        %950 = vmatprep.subr.mxu0 0.0
        %951 = vmatpush1.xpose.msra.mxu0 0.0
        %952 = vmatprep.subr.mxu0 0.0
        %953 = vmatpush1.xpose.msra.mxu0 0.0
        %954 = vmatprep.subr.mxu0 0.0
        %955 = vmatpush1.xpose.msra.mxu0 0.0
        %956 = vmatprep.subr.mxu0 0.0
        %957 = vmatpush1.xpose.msra.mxu0 0.0
        %958 = vmatprep.subr.mxu0 0.0
        %959 = vmatpush1.xpose.msra.mxu0 0.0
        %960 = vmatprep.subr.mxu0 0.0
        %961 = vmatpush1.xpose.msra.mxu0 0.0
        %962 = vmatprep.mubr.f32.mxu0 0.0
        %963 = vmatmul.mubr.f32.gmra.mrb[0].mxu0 %v894
        %v964 = vpop.f32.mrb[0].mxu0
        %v965 = vadd.f32 %v811, %v964
        %v966 = vpop.f32.mrb[0].mxu0
        %967 = vdwg.mxu0
        %969 = vrot.lane.b32.xlu0 %v734, 120
        %v970 = vpop.permute.xlu0 %969
        %v971 = vsel %vm816, %v734, 0
        %v973 = vsel %vm816, %v970, 0
        %975 = vmatprep.subr.mxu0 0.0
        %976 = vmatpush1.xpose.msra.mxu0 %v973
        %977 = vmatprep.subr.mxu0 0.0
        %978 = vmatpush1.xpose.msra.mxu0 0.0
        %979 = vmatprep.subr.mxu0 0.0
        %980 = vmatpush1.xpose.msra.mxu0 0.0
        %981 = vmatprep.subr.mxu0 0.0
        %982 = vmatpush1.xpose.msra.mxu0 0.0
        %983 = vmatprep.subr.mxu0 0.0
        %984 = vmatpush1.xpose.msra.mxu0 0.0
        %985 = vmatprep.subr.mxu0 0.0
        %986 = vmatpush1.xpose.msra.mxu0 0.0
        %987 = vmatprep.subr.mxu0 0.0
        %988 = vmatpush1.xpose.msra.mxu0 0.0
        %989 = vmatprep.subr.mxu0 0.0
        %990 = vmatpush1.xpose.msra.mxu0 0.0
        %991 = vmatprep.subr.mxu0 0.0
        %992 = vmatpush1.xpose.msra.mxu0 0.0
        %993 = vmatprep.subr.mxu0 0.0
        %994 = vmatpush1.xpose.msra.mxu0 0.0
        %995 = vmatprep.subr.mxu0 0.0
        %996 = vmatpush1.xpose.msra.mxu0 0.0
        %997 = vmatprep.subr.mxu0 0.0
        %998 = vmatpush1.xpose.msra.mxu0 0.0
        %999 = vmatprep.subr.mxu0 0.0
        %1000 = vmatpush1.xpose.msra.mxu0 0.0
        %1001 = vmatprep.subr.mxu0 0.0
        %1002 = vmatpush1.xpose.msra.mxu0 0.0
        %1003 = vmatprep.subr.mxu0 0.0
        %1004 = vmatpush1.xpose.msra.mxu0 0.0
        %1005 = vmatprep.subr.mxu0 0.0
        %1006 = vmatpush1.xpose.msra.mxu0 0.0
        %1007 = vmatprep.subr.mxu0 0.0
        %1008 = vmatpush1.xpose.msra.mxu0 0.0
        %1009 = vmatprep.subr.mxu0 0.0
        %1010 = vmatpush1.xpose.msra.mxu0 0.0
        %1011 = vmatprep.subr.mxu0 0.0
        %1012 = vmatpush1.xpose.msra.mxu0 0.0
        %1013 = vmatprep.subr.mxu0 0.0
        %1014 = vmatpush1.xpose.msra.mxu0 0.0
        %1015 = vmatprep.subr.mxu0 0.0
        %1016 = vmatpush1.xpose.msra.mxu0 0.0
        %1017 = vmatprep.subr.mxu0 0.0
        %1018 = vmatpush1.xpose.msra.mxu0 0.0
        %1019 = vmatprep.subr.mxu0 0.0
        %1020 = vmatpush1.xpose.msra.mxu0 0.0
        %1021 = vmatprep.subr.mxu0 0.0
        %1022 = vmatpush1.xpose.msra.mxu0 0.0
        %1023 = vmatprep.subr.mxu0 0.0
        %1024 = vmatpush1.xpose.msra.mxu0 0.0
        %1025 = vmatprep.subr.mxu0 0.0
        %1026 = vmatpush1.xpose.msra.mxu0 0.0
        %1027 = vmatprep.subr.mxu0 0.0
        %1028 = vmatpush1.xpose.msra.mxu0 0.0
        %1029 = vmatprep.subr.mxu0 0.0
        %1030 = vmatpush1.xpose.msra.mxu0 0.0
        %1031 = vmatprep.subr.mxu0 0.0
        %1032 = vmatpush1.xpose.msra.mxu0 0.0
        %1033 = vmatprep.subr.mxu0 0.0
        %1034 = vmatpush1.xpose.msra.mxu0 0.0
        %1035 = vmatprep.subr.mxu0 0.0
        %1036 = vmatpush1.xpose.msra.mxu0 0.0
        %1037 = vmatprep.subr.mxu0 0.0
        %1038 = vmatpush1.xpose.msra.mxu0 0.0
        %1039 = vmatprep.mubr.f32.mxu0 0.0
        %1040 = vmatmul.mubr.f32.gmra.mrb[0].mxu0 %v971
        %v1041 = vpop.f32.mrb[0].mxu0
        %v1042 = vadd.f32 %v811, %v1041
        %v1043 = vpop.f32.mrb[0].mxu0
        %1044 = vdwg.mxu0
        %1046 = vrot.lane.b32.xlu0 %v804, 120
        %v1047 = vpop.permute.xlu0 %1046
        %v1048 = vsel %vm816, %v804, 0
        %v1050 = vsel %vm816, %v1047, 0
        %1052 = vmatprep.subr.mxu0 0.0
        %1053 = vmatpush1.xpose.msra.mxu0 %v1050
        %1054 = vmatprep.subr.mxu0 0.0
        %1055 = vmatpush1.xpose.msra.mxu0 0.0
        %1056 = vmatprep.subr.mxu0 0.0
        %1057 = vmatpush1.xpose.msra.mxu0 0.0
        %1058 = vmatprep.subr.mxu0 0.0
        %1059 = vmatpush1.xpose.msra.mxu0 0.0
        %1060 = vmatprep.subr.mxu0 0.0
        %1061 = vmatpush1.xpose.msra.mxu0 0.0
        %1062 = vmatprep.subr.mxu0 0.0
        %1063 = vmatpush1.xpose.msra.mxu0 0.0
        %1064 = vmatprep.subr.mxu0 0.0
        %1065 = vmatpush1.xpose.msra.mxu0 0.0
        %1066 = vmatprep.subr.mxu0 0.0
        %1067 = vmatpush1.xpose.msra.mxu0 0.0
        %1068 = vmatprep.subr.mxu0 0.0
        %1069 = vmatpush1.xpose.msra.mxu0 0.0
        %1070 = vmatprep.subr.mxu0 0.0
        %1071 = vmatpush1.xpose.msra.mxu0 0.0
        %1072 = vmatprep.subr.mxu0 0.0
        %1073 = vmatpush1.xpose.msra.mxu0 0.0
        %1074 = vmatprep.subr.mxu0 0.0
        %1075 = vmatpush1.xpose.msra.mxu0 0.0
        %1076 = vmatprep.subr.mxu0 0.0
        %1077 = vmatpush1.xpose.msra.mxu0 0.0
        %1078 = vmatprep.subr.mxu0 0.0
        %1079 = vmatpush1.xpose.msra.mxu0 0.0
        %1080 = vmatprep.subr.mxu0 0.0
        %1081 = vmatpush1.xpose.msra.mxu0 0.0
        %1082 = vmatprep.subr.mxu0 0.0
        %1083 = vmatpush1.xpose.msra.mxu0 0.0
        %1084 = vmatprep.subr.mxu0 0.0
        %1085 = vmatpush1.xpose.msra.mxu0 0.0
        %1086 = vmatprep.subr.mxu0 0.0
        %1087 = vmatpush1.xpose.msra.mxu0 0.0
        %1088 = vmatprep.subr.mxu0 0.0
        %1089 = vmatpush1.xpose.msra.mxu0 0.0
        %1090 = vmatprep.subr.mxu0 0.0
        %1091 = vmatpush1.xpose.msra.mxu0 0.0
        %1092 = vmatprep.subr.mxu0 0.0
        %1093 = vmatpush1.xpose.msra.mxu0 0.0
        %1094 = vmatprep.subr.mxu0 0.0
        %1095 = vmatpush1.xpose.msra.mxu0 0.0
        %1096 = vmatprep.subr.mxu0 0.0
        %1097 = vmatpush1.xpose.msra.mxu0 0.0
        %1098 = vmatprep.subr.mxu0 0.0
        %1099 = vmatpush1.xpose.msra.mxu0 0.0
        %1100 = vmatprep.subr.mxu0 0.0
        %1101 = vmatpush1.xpose.msra.mxu0 0.0
        %1102 = vmatprep.subr.mxu0 0.0
        %1103 = vmatpush1.xpose.msra.mxu0 0.0
        %1104 = vmatprep.subr.mxu0 0.0
        %1105 = vmatpush1.xpose.msra.mxu0 0.0
        %1106 = vmatprep.subr.mxu0 0.0
        %1107 = vmatpush1.xpose.msra.mxu0 0.0
        %1108 = vmatprep.subr.mxu0 0.0
        %1109 = vmatpush1.xpose.msra.mxu0 0.0
        %1110 = vmatprep.subr.mxu0 0.0
        %1111 = vmatpush1.xpose.msra.mxu0 0.0
        %1112 = vmatprep.subr.mxu0 0.0
        %1113 = vmatpush1.xpose.msra.mxu0 0.0
        %1114 = vmatprep.subr.mxu0 0.0
        %1115 = vmatpush1.xpose.msra.mxu0 0.0
        %1116 = vmatprep.mubr.f32.mxu0 0.0
        %1117 = vmatmul.mubr.f32.gmra.mrb[0].mxu0 %v1048
        %v1118 = vpop.f32.mrb[0].mxu0
        %v1119 = vadd.f32 %v811, %v1118
        %v1120 = vpop.f32.mrb[0].mxu0
        %1121 = vdwg.mxu0
        %v1122 = vsel %vm816, %v888, -inf
        %1123 = vmax.xlane.f32.xlu0 %v1122
        %v1124 = vpop.xlane.xlu0 %1123
        %v1125 = vsel %vm816, %v965, -inf
        %1126 = vmax.xlane.f32.xlu0 %v1125
        %v1127 = vpop.xlane.xlu0 %1126
        %v1128 = vsel %vm816, %v1042, -inf
        %1129 = vmax.xlane.f32.xlu0 %v1128
        %v1130 = vpop.xlane.xlu0 %1129
        %v1131 = vsel %vm816, %v1119, -inf
        %1132 = vmax.xlane.f32.xlu0 %v1131
        %v1133 = vpop.xlane.xlu0 %1132
        %v1134 = vsub.f32 %v888, %v1124
        %v1135 = vsub.f32 %v965, %v1127
        %v1136 = vsub.f32 %v1042, %v1130
        %v1137 = vsub.f32 %v1119, %v1133
        %v1138 = vmul.f32 %v1134, 1.442695
        %v1139 = vpow.pop %v1138
        %v1140 = vmul.f32 %v1135, 1.442695
        %v1141 = vpow.pop %v1140
        %v1142 = vmul.f32 %v1136, 1.442695
        %v1143 = vpow.pop %v1142
        %v1144 = vmul.f32 %v1137, 1.442695
        %v1145 = vpow.pop %v1144
        %v1146 = vsel %vm816, %v1139, 0.0
        %1147 = vadd.xlane.f32.xlu0 %v1146
        %v1148 = vpop.xlane.xlu0 %1147
        %v1149 = vsel %vm816, %v1141, 0.0
        %1150 = vadd.xlane.f32.xlu0 %v1149
        %v1151 = vpop.xlane.xlu0 %1150
        %v1152 = vsel %vm816, %v1143, 0.0
        %1153 = vadd.xlane.f32.xlu0 %v1152
        %v1154 = vpop.xlane.xlu0 %1153
        %v1155 = vsel %vm816, %v1145, 0.0
        %1156 = vadd.xlane.f32.xlu0 %v1155
        %v1157 = vpop.xlane.xlu0 %1156
        %v1158 = vrcp.pop %v1148
        %v1159 = vmul.f32 %v1139, %v1158
        %v1160 = vrcp.pop %v1151
        %v1161 = vmul.f32 %v1141, %v1160
        %v1162 = vrcp.pop %v1154
        %v1163 = vmul.f32 %v1143, %v1162
        %v1164 = vrcp.pop %v1157
        %v1165 = vmul.f32 %v1145, %v1164
        %1166 = vrot.lane.b32.xlu0 %v594, 112
        %v1167 = vpop.permute.xlu0 %1166
        %v1170 = vsel %vm816, %v1159, 0
        %1172 = vmatprep.subr.mxu0 0.0
        %1173 = vmatpush1.msra.mxu0 %v1167
        %1174 = vmatprep.subr.mxu0 0.0
        %1175 = vmatpush1.msra.mxu0 0.0
        %1176 = vmatprep.subr.mxu0 0.0
        %1177 = vmatpush1.msra.mxu0 0.0
        %1178 = vmatprep.subr.mxu0 0.0
        %1179 = vmatpush1.msra.mxu0 0.0
        %1180 = vmatprep.subr.mxu0 0.0
        %1181 = vmatpush1.msra.mxu0 0.0
        %1182 = vmatprep.subr.mxu0 0.0
        %1183 = vmatpush1.msra.mxu0 0.0
        %1184 = vmatprep.subr.mxu0 0.0
        %1185 = vmatpush1.msra.mxu0 0.0
        %1186 = vmatprep.subr.mxu0 0.0
        %1187 = vmatpush1.msra.mxu0 0.0
        %1188 = vmatprep.subr.mxu0 0.0
        %1189 = vmatpush1.msra.mxu0 0.0
        %1190 = vmatprep.subr.mxu0 0.0
        %1191 = vmatpush1.msra.mxu0 0.0
        %1192 = vmatprep.subr.mxu0 0.0
        %1193 = vmatpush1.msra.mxu0 0.0
        %1194 = vmatprep.subr.mxu0 0.0
        %1195 = vmatpush1.msra.mxu0 0.0
        %1196 = vmatprep.subr.mxu0 0.0
        %1197 = vmatpush1.msra.mxu0 0.0
        %1198 = vmatprep.subr.mxu0 0.0
        %1199 = vmatpush1.msra.mxu0 0.0
        %1200 = vmatprep.subr.mxu0 0.0
        %1201 = vmatpush1.msra.mxu0 0.0
        %1202 = vmatprep.subr.mxu0 0.0
        %1203 = vmatpush1.msra.mxu0 0.0
        %1204 = vmatprep.subr.mxu0 0.0
        %1205 = vmatpush1.msra.mxu0 0.0
        %1206 = vmatprep.subr.mxu0 0.0
        %1207 = vmatpush1.msra.mxu0 0.0
        %1208 = vmatprep.subr.mxu0 0.0
        %1209 = vmatpush1.msra.mxu0 0.0
        %1210 = vmatprep.subr.mxu0 0.0
        %1211 = vmatpush1.msra.mxu0 0.0
        %1212 = vmatprep.subr.mxu0 0.0
        %1213 = vmatpush1.msra.mxu0 0.0
        %1214 = vmatprep.subr.mxu0 0.0
        %1215 = vmatpush1.msra.mxu0 0.0
        %1216 = vmatprep.subr.mxu0 0.0
        %1217 = vmatpush1.msra.mxu0 0.0
        %1218 = vmatprep.subr.mxu0 0.0
        %1219 = vmatpush1.msra.mxu0 0.0
        %1220 = vmatprep.subr.mxu0 0.0
        %1221 = vmatpush1.msra.mxu0 0.0
        %1222 = vmatprep.subr.mxu0 0.0
        %1223 = vmatpush1.msra.mxu0 0.0
        %1224 = vmatprep.subr.mxu0 0.0
        %1225 = vmatpush1.msra.mxu0 0.0
        %1226 = vmatprep.subr.mxu0 0.0
        %1227 = vmatpush1.msra.mxu0 0.0
        %1228 = vmatprep.subr.mxu0 0.0
        %1229 = vmatpush1.msra.mxu0 0.0
        %1230 = vmatprep.subr.mxu0 0.0
        %1231 = vmatpush1.msra.mxu0 0.0
        %1232 = vmatprep.subr.mxu0 0.0
        %1233 = vmatpush1.msra.mxu0 0.0
        %1234 = vmatprep.subr.mxu0 0.0
        %1235 = vmatpush1.msra.mxu0 0.0
        %1236 = vmatprep.mubr.f32.mxu0 0.0
        %1237 = vmatmul.mubr.f32.gmra.mrb[0].mxu0 %v1170
        %v1238 = vpop.f32.mrb[0].mxu0
        %v1239 = vadd.f32 0.0, %v1238
        %v1240 = vpop.f32.mrb[0].mxu0
        %1241 = vdwg.mxu0
        %1242 = vrot.lane.b32.xlu0 %v664, 112
        %v1243 = vpop.permute.xlu0 %1242
        %v1246 = vsel %vm816, %v1161, 0
        %1248 = vmatprep.subr.mxu0 0.0
        %1249 = vmatpush1.msra.mxu0 %v1243
        %1250 = vmatprep.subr.mxu0 0.0
        %1251 = vmatpush1.msra.mxu0 0.0
        %1252 = vmatprep.subr.mxu0 0.0
        %1253 = vmatpush1.msra.mxu0 0.0
        %1254 = vmatprep.subr.mxu0 0.0
        %1255 = vmatpush1.msra.mxu0 0.0
        %1256 = vmatprep.subr.mxu0 0.0
        %1257 = vmatpush1.msra.mxu0 0.0
        %1258 = vmatprep.subr.mxu0 0.0
        %1259 = vmatpush1.msra.mxu0 0.0
        %1260 = vmatprep.subr.mxu0 0.0
        %1261 = vmatpush1.msra.mxu0 0.0
        %1262 = vmatprep.subr.mxu0 0.0
        %1263 = vmatpush1.msra.mxu0 0.0
        %1264 = vmatprep.subr.mxu0 0.0
        %1265 = vmatpush1.msra.mxu0 0.0
        %1266 = vmatprep.subr.mxu0 0.0
        %1267 = vmatpush1.msra.mxu0 0.0
        %1268 = vmatprep.subr.mxu0 0.0
        %1269 = vmatpush1.msra.mxu0 0.0
        %1270 = vmatprep.subr.mxu0 0.0
        %1271 = vmatpush1.msra.mxu0 0.0
        %1272 = vmatprep.subr.mxu0 0.0
        %1273 = vmatpush1.msra.mxu0 0.0
        %1274 = vmatprep.subr.mxu0 0.0
        %1275 = vmatpush1.msra.mxu0 0.0
        %1276 = vmatprep.subr.mxu0 0.0
        %1277 = vmatpush1.msra.mxu0 0.0
        %1278 = vmatprep.subr.mxu0 0.0
        %1279 = vmatpush1.msra.mxu0 0.0
        %1280 = vmatprep.subr.mxu0 0.0
        %1281 = vmatpush1.msra.mxu0 0.0
        %1282 = vmatprep.subr.mxu0 0.0
        %1283 = vmatpush1.msra.mxu0 0.0
        %1284 = vmatprep.subr.mxu0 0.0
        %1285 = vmatpush1.msra.mxu0 0.0
        %1286 = vmatprep.subr.mxu0 0.0
        %1287 = vmatpush1.msra.mxu0 0.0
        %1288 = vmatprep.subr.mxu0 0.0
        %1289 = vmatpush1.msra.mxu0 0.0
        %1290 = vmatprep.subr.mxu0 0.0
        %1291 = vmatpush1.msra.mxu0 0.0
        %1292 = vmatprep.subr.mxu0 0.0
        %1293 = vmatpush1.msra.mxu0 0.0
        %1294 = vmatprep.subr.mxu0 0.0
        %1295 = vmatpush1.msra.mxu0 0.0
        %1296 = vmatprep.subr.mxu0 0.0
        %1297 = vmatpush1.msra.mxu0 0.0
        %1298 = vmatprep.subr.mxu0 0.0
        %1299 = vmatpush1.msra.mxu0 0.0
        %1300 = vmatprep.subr.mxu0 0.0
        %1301 = vmatpush1.msra.mxu0 0.0
        %1302 = vmatprep.subr.mxu0 0.0
        %1303 = vmatpush1.msra.mxu0 0.0
        %1304 = vmatprep.subr.mxu0 0.0
        %1305 = vmatpush1.msra.mxu0 0.0
        %1306 = vmatprep.subr.mxu0 0.0
        %1307 = vmatpush1.msra.mxu0 0.0
        %1308 = vmatprep.subr.mxu0 0.0
        %1309 = vmatpush1.msra.mxu0 0.0
        %1310 = vmatprep.subr.mxu0 0.0
        %1311 = vmatpush1.msra.mxu0 0.0
        %1312 = vmatprep.mubr.f32.mxu0 0.0
        %1313 = vmatmul.mubr.f32.gmra.mrb[0].mxu0 %v1246
        %v1314 = vpop.f32.mrb[0].mxu0
        %v1315 = vadd.f32 0.0, %v1314
        %v1316 = vpop.f32.mrb[0].mxu0
        %1317 = vdwg.mxu0
        %1318 = vrot.lane.b32.xlu0 %v734, 112
        %v1319 = vpop.permute.xlu0 %1318
        %v1322 = vsel %vm816, %v1163, 0
        %1324 = vmatprep.subr.mxu0 0.0
        %1325 = vmatpush1.msra.mxu0 %v1319
        %1326 = vmatprep.subr.mxu0 0.0
        %1327 = vmatpush1.msra.mxu0 0.0
        %1328 = vmatprep.subr.mxu0 0.0
        %1329 = vmatpush1.msra.mxu0 0.0
        %1330 = vmatprep.subr.mxu0 0.0
        %1331 = vmatpush1.msra.mxu0 0.0
        %1332 = vmatprep.subr.mxu0 0.0
        %1333 = vmatpush1.msra.mxu0 0.0
        %1334 = vmatprep.subr.mxu0 0.0
        %1335 = vmatpush1.msra.mxu0 0.0
        %1336 = vmatprep.subr.mxu0 0.0
        %1337 = vmatpush1.msra.mxu0 0.0
        %1338 = vmatprep.subr.mxu0 0.0
        %1339 = vmatpush1.msra.mxu0 0.0
        %1340 = vmatprep.subr.mxu0 0.0
        %1341 = vmatpush1.msra.mxu0 0.0
        %1342 = vmatprep.subr.mxu0 0.0
        %1343 = vmatpush1.msra.mxu0 0.0
        %1344 = vmatprep.subr.mxu0 0.0
        %1345 = vmatpush1.msra.mxu0 0.0
        %1346 = vmatprep.subr.mxu0 0.0
        %1347 = vmatpush1.msra.mxu0 0.0
        %1348 = vmatprep.subr.mxu0 0.0
        %1349 = vmatpush1.msra.mxu0 0.0
        %1350 = vmatprep.subr.mxu0 0.0
        %1351 = vmatpush1.msra.mxu0 0.0
        %1352 = vmatprep.subr.mxu0 0.0
        %1353 = vmatpush1.msra.mxu0 0.0
        %1354 = vmatprep.subr.mxu0 0.0
        %1355 = vmatpush1.msra.mxu0 0.0
        %1356 = vmatprep.subr.mxu0 0.0
        %1357 = vmatpush1.msra.mxu0 0.0
        %1358 = vmatprep.subr.mxu0 0.0
        %1359 = vmatpush1.msra.mxu0 0.0
        %1360 = vmatprep.subr.mxu0 0.0
        %1361 = vmatpush1.msra.mxu0 0.0
        %1362 = vmatprep.subr.mxu0 0.0
        %1363 = vmatpush1.msra.mxu0 0.0
        %1364 = vmatprep.subr.mxu0 0.0
        %1365 = vmatpush1.msra.mxu0 0.0
        %1366 = vmatprep.subr.mxu0 0.0
        %1367 = vmatpush1.msra.mxu0 0.0
        %1368 = vmatprep.subr.mxu0 0.0
        %1369 = vmatpush1.msra.mxu0 0.0
        %1370 = vmatprep.subr.mxu0 0.0
        %1371 = vmatpush1.msra.mxu0 0.0
        %1372 = vmatprep.subr.mxu0 0.0
        %1373 = vmatpush1.msra.mxu0 0.0
        %1374 = vmatprep.subr.mxu0 0.0
        %1375 = vmatpush1.msra.mxu0 0.0
        %1376 = vmatprep.subr.mxu0 0.0
        %1377 = vmatpush1.msra.mxu0 0.0
        %1378 = vmatprep.subr.mxu0 0.0
        %1379 = vmatpush1.msra.mxu0 0.0
        %1380 = vmatprep.subr.mxu0 0.0
        %1381 = vmatpush1.msra.mxu0 0.0
        %1382 = vmatprep.subr.mxu0 0.0
        %1383 = vmatpush1.msra.mxu0 0.0
        %1384 = vmatprep.subr.mxu0 0.0
        %1385 = vmatpush1.msra.mxu0 0.0
        %1386 = vmatprep.subr.mxu0 0.0
        %1387 = vmatpush1.msra.mxu0 0.0
        %1388 = vmatprep.mubr.f32.mxu0 0.0
        %1389 = vmatmul.mubr.f32.gmra.mrb[0].mxu0 %v1322
        %v1390 = vpop.f32.mrb[0].mxu0
        %v1391 = vadd.f32 0.0, %v1390
        %v1392 = vpop.f32.mrb[0].mxu0
        %1393 = vdwg.mxu0
        %1394 = vrot.lane.b32.xlu0 %v804, 112
        %v1395 = vpop.permute.xlu0 %1394
        %v1398 = vsel %vm816, %v1165, 0
        %1400 = vmatprep.subr.mxu0 0.0
        %1401 = vmatpush1.msra.mxu0 %v1395
        %1402 = vmatprep.subr.mxu0 0.0
        %1403 = vmatpush1.msra.mxu0 0.0
        %1404 = vmatprep.subr.mxu0 0.0
        %1405 = vmatpush1.msra.mxu0 0.0
        %1406 = vmatprep.subr.mxu0 0.0
        %1407 = vmatpush1.msra.mxu0 0.0
        %1408 = vmatprep.subr.mxu0 0.0
        %1409 = vmatpush1.msra.mxu0 0.0
        %1410 = vmatprep.subr.mxu0 0.0
        %1411 = vmatpush1.msra.mxu0 0.0
        %1412 = vmatprep.subr.mxu0 0.0
        %1413 = vmatpush1.msra.mxu0 0.0
        %1414 = vmatprep.subr.mxu0 0.0
        %1415 = vmatpush1.msra.mxu0 0.0
        %1416 = vmatprep.subr.mxu0 0.0
        %1417 = vmatpush1.msra.mxu0 0.0
        %1418 = vmatprep.subr.mxu0 0.0
        %1419 = vmatpush1.msra.mxu0 0.0
        %1420 = vmatprep.subr.mxu0 0.0
        %1421 = vmatpush1.msra.mxu0 0.0
        %1422 = vmatprep.subr.mxu0 0.0
        %1423 = vmatpush1.msra.mxu0 0.0
        %1424 = vmatprep.subr.mxu0 0.0
        %1425 = vmatpush1.msra.mxu0 0.0
        %1426 = vmatprep.subr.mxu0 0.0
        %1427 = vmatpush1.msra.mxu0 0.0
        %1428 = vmatprep.subr.mxu0 0.0
        %1429 = vmatpush1.msra.mxu0 0.0
        %1430 = vmatprep.subr.mxu0 0.0
        %1431 = vmatpush1.msra.mxu0 0.0
        %1432 = vmatprep.subr.mxu0 0.0
        %1433 = vmatpush1.msra.mxu0 0.0
        %1434 = vmatprep.subr.mxu0 0.0
        %1435 = vmatpush1.msra.mxu0 0.0
        %1436 = vmatprep.subr.mxu0 0.0
        %1437 = vmatpush1.msra.mxu0 0.0
        %1438 = vmatprep.subr.mxu0 0.0
        %1439 = vmatpush1.msra.mxu0 0.0
        %1440 = vmatprep.subr.mxu0 0.0
        %1441 = vmatpush1.msra.mxu0 0.0
        %1442 = vmatprep.subr.mxu0 0.0
        %1443 = vmatpush1.msra.mxu0 0.0
        %1444 = vmatprep.subr.mxu0 0.0
        %1445 = vmatpush1.msra.mxu0 0.0
        %1446 = vmatprep.subr.mxu0 0.0
        %1447 = vmatpush1.msra.mxu0 0.0
        %1448 = vmatprep.subr.mxu0 0.0
        %1449 = vmatpush1.msra.mxu0 0.0
        %1450 = vmatprep.subr.mxu0 0.0
        %1451 = vmatpush1.msra.mxu0 0.0
        %1452 = vmatprep.subr.mxu0 0.0
        %1453 = vmatpush1.msra.mxu0 0.0
        %1454 = vmatprep.subr.mxu0 0.0
        %1455 = vmatpush1.msra.mxu0 0.0
        %1456 = vmatprep.subr.mxu0 0.0
        %1457 = vmatpush1.msra.mxu0 0.0
        %1458 = vmatprep.subr.mxu0 0.0
        %1459 = vmatpush1.msra.mxu0 0.0
        %1460 = vmatprep.subr.mxu0 0.0
        %1461 = vmatpush1.msra.mxu0 0.0
        %1462 = vmatprep.subr.mxu0 0.0
        %1463 = vmatpush1.msra.mxu0 0.0
        %1464 = vmatprep.mubr.f32.mxu0 0.0
        %1465 = vmatmul.mubr.f32.gmra.mrb[0].mxu0 %v1398
        %v1466 = vpop.f32.mrb[0].mxu0
        %v1467 = vadd.f32 0.0, %v1466
        %v1468 = vpop.f32.mrb[0].mxu0
        %1469 = vdwg.mxu0
        %v1470 = vld [vmem:[%s4] sm:$0xff]
        %v1471 = vld [vmem:[%s4 + $0x8] sm:$0xff]
        %v1472 = vld [vmem:[%s4 + $0x10] sm:$0xff]
        %v1473 = vld [vmem:[%s4 + $0x18] sm:$0xff]
        %v1475 = vsel %vm816, %v1239, 0
        %1477 = vmatprep.subr.mxu0 0.0
        %1478 = vmatpush1.msra.mxu0 %v1470
        %1479 = vmatprep.subr.mxu0 0.0
        %1480 = vmatpush1.msra.mxu0 0.0
        %1481 = vmatprep.subr.mxu0 0.0
        %1482 = vmatpush1.msra.mxu0 0.0
        %1483 = vmatprep.subr.mxu0 0.0
        %1484 = vmatpush1.msra.mxu0 0.0
        %1485 = vmatprep.subr.mxu0 0.0
        %1486 = vmatpush1.msra.mxu0 0.0
        %1487 = vmatprep.subr.mxu0 0.0
        %1488 = vmatpush1.msra.mxu0 0.0
        %1489 = vmatprep.subr.mxu0 0.0
        %1490 = vmatpush1.msra.mxu0 0.0
        %1491 = vmatprep.subr.mxu0 0.0
        %1492 = vmatpush1.msra.mxu0 0.0
        %1493 = vmatprep.subr.mxu0 0.0
        %1494 = vmatpush1.msra.mxu0 0.0
        %1495 = vmatprep.subr.mxu0 0.0
        %1496 = vmatpush1.msra.mxu0 0.0
        %1497 = vmatprep.subr.mxu0 0.0
        %1498 = vmatpush1.msra.mxu0 0.0
        %1499 = vmatprep.subr.mxu0 0.0
        %1500 = vmatpush1.msra.mxu0 0.0
        %1501 = vmatprep.subr.mxu0 0.0
        %1502 = vmatpush1.msra.mxu0 0.0
        %1503 = vmatprep.subr.mxu0 0.0
        %1504 = vmatpush1.msra.mxu0 0.0
        %1505 = vmatprep.subr.mxu0 0.0
        %1506 = vmatpush1.msra.mxu0 0.0
        %1507 = vmatprep.subr.mxu0 0.0
        %1508 = vmatpush1.msra.mxu0 0.0
        %1509 = vmatprep.subr.mxu0 0.0
        %1510 = vmatpush1.msra.mxu0 0.0
        %1511 = vmatprep.subr.mxu0 0.0
        %1512 = vmatpush1.msra.mxu0 0.0
        %1513 = vmatprep.subr.mxu0 0.0
        %1514 = vmatpush1.msra.mxu0 0.0
        %1515 = vmatprep.subr.mxu0 0.0
        %1516 = vmatpush1.msra.mxu0 0.0
        %1517 = vmatprep.subr.mxu0 0.0
        %1518 = vmatpush1.msra.mxu0 0.0
        %1519 = vmatprep.subr.mxu0 0.0
        %1520 = vmatpush1.msra.mxu0 0.0
        %1521 = vmatprep.subr.mxu0 0.0
        %1522 = vmatpush1.msra.mxu0 0.0
        %1523 = vmatprep.subr.mxu0 0.0
        %1524 = vmatpush1.msra.mxu0 0.0
        %1525 = vmatprep.subr.mxu0 0.0
        %1526 = vmatpush1.msra.mxu0 0.0
        %1527 = vmatprep.subr.mxu0 0.0
        %1528 = vmatpush1.msra.mxu0 0.0
        %1529 = vmatprep.subr.mxu0 0.0
        %1530 = vmatpush1.msra.mxu0 0.0
        %1531 = vmatprep.subr.mxu0 0.0
        %1532 = vmatpush1.msra.mxu0 0.0
        %1533 = vmatprep.subr.mxu0 0.0
        %1534 = vmatpush1.msra.mxu0 0.0
        %1535 = vmatprep.subr.mxu0 0.0
        %1536 = vmatpush1.msra.mxu0 0.0
        %1537 = vmatprep.subr.mxu0 0.0
        %1538 = vmatpush1.msra.mxu0 0.0
        %1539 = vmatprep.subr.mxu0 0.0
        %1540 = vmatpush1.msra.mxu0 0.0
        %1541 = vmatprep.mubr.f32.mxu0 0.0
        %1542 = vmatmul.mubr.f32.gmra.mrb[0].mxu0 %v1475
        %v1543 = vpop.f32.mrb[0].mxu0
        %v1544 = vadd.f32 0.0, %v1543
        %v1545 = vpop.f32.mrb[0].mxu0
        %1546 = vdwg.mxu0
        %v1548 = vsel %vm816, %v1315, 0
        %1550 = vmatprep.subr.mxu0 0.0
        %1551 = vmatpush1.msra.mxu0 %v1471
        %1552 = vmatprep.subr.mxu0 0.0
        %1553 = vmatpush1.msra.mxu0 0.0
        %1554 = vmatprep.subr.mxu0 0.0
        %1555 = vmatpush1.msra.mxu0 0.0
        %1556 = vmatprep.subr.mxu0 0.0
        %1557 = vmatpush1.msra.mxu0 0.0
        %1558 = vmatprep.subr.mxu0 0.0
        %1559 = vmatpush1.msra.mxu0 0.0
        %1560 = vmatprep.subr.mxu0 0.0
        %1561 = vmatpush1.msra.mxu0 0.0
        %1562 = vmatprep.subr.mxu0 0.0
        %1563 = vmatpush1.msra.mxu0 0.0
        %1564 = vmatprep.subr.mxu0 0.0
        %1565 = vmatpush1.msra.mxu0 0.0
        %1566 = vmatprep.subr.mxu0 0.0
        %1567 = vmatpush1.msra.mxu0 0.0
        %1568 = vmatprep.subr.mxu0 0.0
        %1569 = vmatpush1.msra.mxu0 0.0
        %1570 = vmatprep.subr.mxu0 0.0
        %1571 = vmatpush1.msra.mxu0 0.0
        %1572 = vmatprep.subr.mxu0 0.0
        %1573 = vmatpush1.msra.mxu0 0.0
        %1574 = vmatprep.subr.mxu0 0.0
        %1575 = vmatpush1.msra.mxu0 0.0
        %1576 = vmatprep.subr.mxu0 0.0
        %1577 = vmatpush1.msra.mxu0 0.0
        %1578 = vmatprep.subr.mxu0 0.0
        %1579 = vmatpush1.msra.mxu0 0.0
        %1580 = vmatprep.subr.mxu0 0.0
        %1581 = vmatpush1.msra.mxu0 0.0
        %1582 = vmatprep.subr.mxu0 0.0
        %1583 = vmatpush1.msra.mxu0 0.0
        %1584 = vmatprep.subr.mxu0 0.0
        %1585 = vmatpush1.msra.mxu0 0.0
        %1586 = vmatprep.subr.mxu0 0.0
        %1587 = vmatpush1.msra.mxu0 0.0
        %1588 = vmatprep.subr.mxu0 0.0
        %1589 = vmatpush1.msra.mxu0 0.0
        %1590 = vmatprep.subr.mxu0 0.0
        %1591 = vmatpush1.msra.mxu0 0.0
        %1592 = vmatprep.subr.mxu0 0.0
        %1593 = vmatpush1.msra.mxu0 0.0
        %1594 = vmatprep.subr.mxu0 0.0
        %1595 = vmatpush1.msra.mxu0 0.0
        %1596 = vmatprep.subr.mxu0 0.0
        %1597 = vmatpush1.msra.mxu0 0.0
        %1598 = vmatprep.subr.mxu0 0.0
        %1599 = vmatpush1.msra.mxu0 0.0
        %1600 = vmatprep.subr.mxu0 0.0
        %1601 = vmatpush1.msra.mxu0 0.0
        %1602 = vmatprep.subr.mxu0 0.0
        %1603 = vmatpush1.msra.mxu0 0.0
        %1604 = vmatprep.subr.mxu0 0.0
        %1605 = vmatpush1.msra.mxu0 0.0
        %1606 = vmatprep.subr.mxu0 0.0
        %1607 = vmatpush1.msra.mxu0 0.0
        %1608 = vmatprep.subr.mxu0 0.0
        %1609 = vmatpush1.msra.mxu0 0.0
        %1610 = vmatprep.subr.mxu0 0.0
        %1611 = vmatpush1.msra.mxu0 0.0
        %1612 = vmatprep.subr.mxu0 0.0
        %1613 = vmatpush1.msra.mxu0 0.0
        %1614 = vmatprep.mubr.f32.mxu0 0.0
        %1615 = vmatmul.mubr.f32.gmra.mrb[0].mxu0 %v1548
        %v1616 = vpop.f32.mrb[0].mxu0
        %v1617 = vadd.f32 0.0, %v1616
        %v1618 = vpop.f32.mrb[0].mxu0
        %1619 = vdwg.mxu0
        %v1621 = vsel %vm816, %v1391, 0
        %1623 = vmatprep.subr.mxu0 0.0
        %1624 = vmatpush1.msra.mxu0 %v1472
        %1625 = vmatprep.subr.mxu0 0.0
        %1626 = vmatpush1.msra.mxu0 0.0
        %1627 = vmatprep.subr.mxu0 0.0
        %1628 = vmatpush1.msra.mxu0 0.0
        %1629 = vmatprep.subr.mxu0 0.0
        %1630 = vmatpush1.msra.mxu0 0.0
        %1631 = vmatprep.subr.mxu0 0.0
        %1632 = vmatpush1.msra.mxu0 0.0
        %1633 = vmatprep.subr.mxu0 0.0
        %1634 = vmatpush1.msra.mxu0 0.0
        %1635 = vmatprep.subr.mxu0 0.0
        %1636 = vmatpush1.msra.mxu0 0.0
        %1637 = vmatprep.subr.mxu0 0.0
        %1638 = vmatpush1.msra.mxu0 0.0
        %1639 = vmatprep.subr.mxu0 0.0
        %1640 = vmatpush1.msra.mxu0 0.0
        %1641 = vmatprep.subr.mxu0 0.0
        %1642 = vmatpush1.msra.mxu0 0.0
        %1643 = vmatprep.subr.mxu0 0.0
        %1644 = vmatpush1.msra.mxu0 0.0
        %1645 = vmatprep.subr.mxu0 0.0
        %1646 = vmatpush1.msra.mxu0 0.0
        %1647 = vmatprep.subr.mxu0 0.0
        %1648 = vmatpush1.msra.mxu0 0.0
        %1649 = vmatprep.subr.mxu0 0.0
        %1650 = vmatpush1.msra.mxu0 0.0
        %1651 = vmatprep.subr.mxu0 0.0
        %1652 = vmatpush1.msra.mxu0 0.0
        %1653 = vmatprep.subr.mxu0 0.0
        %1654 = vmatpush1.msra.mxu0 0.0
        %1655 = vmatprep.subr.mxu0 0.0
        %1656 = vmatpush1.msra.mxu0 0.0
        %1657 = vmatprep.subr.mxu0 0.0
        %1658 = vmatpush1.msra.mxu0 0.0
        %1659 = vmatprep.subr.mxu0 0.0
        %1660 = vmatpush1.msra.mxu0 0.0
        %1661 = vmatprep.subr.mxu0 0.0
        %1662 = vmatpush1.msra.mxu0 0.0
        %1663 = vmatprep.subr.mxu0 0.0
        %1664 = vmatpush1.msra.mxu0 0.0
        %1665 = vmatprep.subr.mxu0 0.0
        %1666 = vmatpush1.msra.mxu0 0.0
        %1667 = vmatprep.subr.mxu0 0.0
        %1668 = vmatpush1.msra.mxu0 0.0
        %1669 = vmatprep.subr.mxu0 0.0
        %1670 = vmatpush1.msra.mxu0 0.0
        %1671 = vmatprep.subr.mxu0 0.0
        %1672 = vmatpush1.msra.mxu0 0.0
        %1673 = vmatprep.subr.mxu0 0.0
        %1674 = vmatpush1.msra.mxu0 0.0
        %1675 = vmatprep.subr.mxu0 0.0
        %1676 = vmatpush1.msra.mxu0 0.0
        %1677 = vmatprep.subr.mxu0 0.0
        %1678 = vmatpush1.msra.mxu0 0.0
        %1679 = vmatprep.subr.mxu0 0.0
        %1680 = vmatpush1.msra.mxu0 0.0
        %1681 = vmatprep.subr.mxu0 0.0
        %1682 = vmatpush1.msra.mxu0 0.0
        %1683 = vmatprep.subr.mxu0 0.0
        %1684 = vmatpush1.msra.mxu0 0.0
        %1685 = vmatprep.subr.mxu0 0.0
        %1686 = vmatpush1.msra.mxu0 0.0
        %1687 = vmatprep.mubr.f32.mxu0 0.0
        %1688 = vmatmul.mubr.f32.gmra.mrb[0].mxu0 %v1621
        %v1689 = vpop.f32.mrb[0].mxu0
        %v1690 = vadd.f32 0.0, %v1689
        %v1691 = vpop.f32.mrb[0].mxu0
        %1692 = vdwg.mxu0
        %v1694 = vsel %vm816, %v1467, 0
        %1696 = vmatprep.subr.mxu0 0.0
        %1697 = vmatpush1.msra.mxu0 %v1473
        %1698 = vmatprep.subr.mxu0 0.0
        %1699 = vmatpush1.msra.mxu0 0.0
        %1700 = vmatprep.subr.mxu0 0.0
        %1701 = vmatpush1.msra.mxu0 0.0
        %1702 = vmatprep.subr.mxu0 0.0
        %1703 = vmatpush1.msra.mxu0 0.0
        %1704 = vmatprep.subr.mxu0 0.0
        %1705 = vmatpush1.msra.mxu0 0.0
        %1706 = vmatprep.subr.mxu0 0.0
        %1707 = vmatpush1.msra.mxu0 0.0
        %1708 = vmatprep.subr.mxu0 0.0
        %1709 = vmatpush1.msra.mxu0 0.0
        %1710 = vmatprep.subr.mxu0 0.0
        %1711 = vmatpush1.msra.mxu0 0.0
        %1712 = vmatprep.subr.mxu0 0.0
        %1713 = vmatpush1.msra.mxu0 0.0
        %1714 = vmatprep.subr.mxu0 0.0
        %1715 = vmatpush1.msra.mxu0 0.0
        %1716 = vmatprep.subr.mxu0 0.0
        %1717 = vmatpush1.msra.mxu0 0.0
        %1718 = vmatprep.subr.mxu0 0.0
        %1719 = vmatpush1.msra.mxu0 0.0
        %1720 = vmatprep.subr.mxu0 0.0
        %1721 = vmatpush1.msra.mxu0 0.0
        %1722 = vmatprep.subr.mxu0 0.0
        %1723 = vmatpush1.msra.mxu0 0.0
        %1724 = vmatprep.subr.mxu0 0.0
        %1725 = vmatpush1.msra.mxu0 0.0
        %1726 = vmatprep.subr.mxu0 0.0
        %1727 = vmatpush1.msra.mxu0 0.0
        %1728 = vmatprep.subr.mxu0 0.0
        %1729 = vmatpush1.msra.mxu0 0.0
        %1730 = vmatprep.subr.mxu0 0.0
        %1731 = vmatpush1.msra.mxu0 0.0
        %1732 = vmatprep.subr.mxu0 0.0
        %1733 = vmatpush1.msra.mxu0 0.0
        %1734 = vmatprep.subr.mxu0 0.0
        %1735 = vmatpush1.msra.mxu0 0.0
        %1736 = vmatprep.subr.mxu0 0.0
        %1737 = vmatpush1.msra.mxu0 0.0
        %1738 = vmatprep.subr.mxu0 0.0
        %1739 = vmatpush1.msra.mxu0 0.0
        %1740 = vmatprep.subr.mxu0 0.0
        %1741 = vmatpush1.msra.mxu0 0.0
        %1742 = vmatprep.subr.mxu0 0.0
        %1743 = vmatpush1.msra.mxu0 0.0
        %1744 = vmatprep.subr.mxu0 0.0
        %1745 = vmatpush1.msra.mxu0 0.0
        %1746 = vmatprep.subr.mxu0 0.0
        %1747 = vmatpush1.msra.mxu0 0.0
        %1748 = vmatprep.subr.mxu0 0.0
        %1749 = vmatpush1.msra.mxu0 0.0
        %1750 = vmatprep.subr.mxu0 0.0
        %1751 = vmatpush1.msra.mxu0 0.0
        %1752 = vmatprep.subr.mxu0 0.0
        %1753 = vmatpush1.msra.mxu0 0.0
        %1754 = vmatprep.subr.mxu0 0.0
        %1755 = vmatpush1.msra.mxu0 0.0
        %1756 = vmatprep.subr.mxu0 0.0
        %1757 = vmatpush1.msra.mxu0 0.0
        %1758 = vmatprep.subr.mxu0 0.0
        %1759 = vmatpush1.msra.mxu0 0.0
        %1760 = vmatprep.mubr.f32.mxu0 0.0
        %1761 = vmatmul.mubr.f32.gmra.mrb[0].mxu0 %v1694
        %v1762 = vpop.f32.mrb[0].mxu0
        %v1763 = vadd.f32 0.0, %v1762
        %v1764 = vpop.f32.mrb[0].mxu0
        %1765 = vdwg.mxu0
        %v1766 = vsel %vm523, %v1544, 0.0
        %v1767 = vsel %vm523, %v1617, 0.0
        %v1768 = vadd.f32 %v1766, %v1767
        %v1769 = vsel %vm523, %v1690, 0.0
        %v1770 = vadd.f32 %v1768, %v1769
        %v1771 = vsel %vm523, %v1763, 0.0
        %v1772 = vadd.f32 %v1770, %v1771
        %v1773 = vld [vmem:[%s5] sm:$0x1]
        %v1775 = vlaneseq
        %v1776 = vshrl.u32 %v1775, 7
        %v1777 = vsub.s32 0, %v1776
        %v1778 = vrot.slane %v1773, %v1777
        %v1780 = vadd.f32 %v1772, %v1778
        %v1781 = vadd.f32 %v1780, %v478
        %v1782 = vld [vmem:[%s6] sm:$0x1]
        %v1783 = vld [vmem:[%s7] sm:$0x1]
        %v1784 = vsel %vm523, %v1781, 0.0
        %1785 = vadd.xlane.f32.xlu0 %v1784
        %v1786 = vpop.xlane.xlu0 %1785
        %v1787 = vrcp.pop 32.0
        %v1788 = vmul.f32 %v1786, %v1787
        %v1789 = vsub.f32 %v1781, %v1788
        %v1790 = vmul.f32 %v1789, %v1789
        %v1791 = vsel %vm523, %v1790, 0.0
        %1792 = vadd.xlane.f32.xlu0 %v1791
        %v1793 = vpop.xlane.xlu0 %1792
        %v1794 = vmul.f32 %v1793, %v1787
        %v1795 = vadd.f32 %v1794, 1e-12
        %v1796 = vrsqrt.pop %v1795
        %v1797 = vmul.f32 %v1789, %v1796
        %v1799 = vlaneseq
        %v1800 = vshrl.u32 %v1799, 7
        %v1801 = vsub.s32 0, %v1800
        %v1802 = vrot.slane %v1782, %v1801
        %v1804 = vmul.f32 %v1797, %v1802
        %v1806 = vlaneseq
        %v1807 = vshrl.u32 %v1806, 7
        %v1808 = vsub.s32 0, %v1807
        %v1809 = vrot.slane %v1783, %v1808
        %v1811 = vadd.f32 %v1804, %v1809
        %v1812 = vld [vmem:[%s8] sm:$0xff]
        %v1813 = vld [vmem:[%s8 + $0x8] sm:$0xff]
        %v1814 = vld [vmem:[%s8 + $0x10] sm:$0xff]
        %v1815 = vld [vmem:[%s8 + $0x18] sm:$0xff]
        %v1816 = vld [vmem:[%s9] sm:$0x1]
        %v1818 = vlaneseq
        %v1819 = vshrl.u32 %v1818, 7
        %v1820 = vsub.s32 0, %v1819
        %v1821 = vrot.slane %v1816, %v1820
        %v1824 = vsel %vm523, %v1811, 0
        %1826 = vmatprep.subr.mxu0 0.0
        %1827 = vmatpush1.msra.mxu0 %v1812
        %1828 = vmatprep.subr.mxu0 0.0
        %1829 = vmatpush1.msra.mxu0 %v1813
        %1830 = vmatprep.subr.mxu0 0.0
        %1831 = vmatpush1.msra.mxu0 %v1814
        %1832 = vmatprep.subr.mxu0 0.0
        %1833 = vmatpush1.msra.mxu0 %v1815
        %1834 = vmatprep.subr.mxu0 0.0
        %1835 = vmatpush1.msra.mxu0 0.0
        %1836 = vmatprep.subr.mxu0 0.0
        %1837 = vmatpush1.msra.mxu0 0.0
        %1838 = vmatprep.subr.mxu0 0.0
        %1839 = vmatpush1.msra.mxu0 0.0
        %1840 = vmatprep.subr.mxu0 0.0
        %1841 = vmatpush1.msra.mxu0 0.0
        %1842 = vmatprep.subr.mxu0 0.0
        %1843 = vmatpush1.msra.mxu0 0.0
        %1844 = vmatprep.subr.mxu0 0.0
        %1845 = vmatpush1.msra.mxu0 0.0
        %1846 = vmatprep.subr.mxu0 0.0
        %1847 = vmatpush1.msra.mxu0 0.0
        %1848 = vmatprep.subr.mxu0 0.0
        %1849 = vmatpush1.msra.mxu0 0.0
        %1850 = vmatprep.subr.mxu0 0.0
        %1851 = vmatpush1.msra.mxu0 0.0
        %1852 = vmatprep.subr.mxu0 0.0
        %1853 = vmatpush1.msra.mxu0 0.0
        %1854 = vmatprep.subr.mxu0 0.0
        %1855 = vmatpush1.msra.mxu0 0.0
        %1856 = vmatprep.subr.mxu0 0.0
        %1857 = vmatpush1.msra.mxu0 0.0
        %1858 = vmatprep.subr.mxu0 0.0
        %1859 = vmatpush1.msra.mxu0 0.0
        %1860 = vmatprep.subr.mxu0 0.0
        %1861 = vmatpush1.msra.mxu0 0.0
        %1862 = vmatprep.subr.mxu0 0.0
        %1863 = vmatpush1.msra.mxu0 0.0
        %1864 = vmatprep.subr.mxu0 0.0
        %1865 = vmatpush1.msra.mxu0 0.0
        %1866 = vmatprep.subr.mxu0 0.0
        %1867 = vmatpush1.msra.mxu0 0.0
        %1868 = vmatprep.subr.mxu0 0.0
        %1869 = vmatpush1.msra.mxu0 0.0
        %1870 = vmatprep.subr.mxu0 0.0
        %1871 = vmatpush1.msra.mxu0 0.0
        %1872 = vmatprep.subr.mxu0 0.0
        %1873 = vmatpush1.msra.mxu0 0.0
        %1874 = vmatprep.subr.mxu0 0.0
        %1875 = vmatpush1.msra.mxu0 0.0
        %1876 = vmatprep.subr.mxu0 0.0
        %1877 = vmatpush1.msra.mxu0 0.0
        %1878 = vmatprep.subr.mxu0 0.0
        %1879 = vmatpush1.msra.mxu0 0.0
        %1880 = vmatprep.subr.mxu0 0.0
        %1881 = vmatpush1.msra.mxu0 0.0
        %1882 = vmatprep.subr.mxu0 0.0
        %1883 = vmatpush1.msra.mxu0 0.0
        %1884 = vmatprep.subr.mxu0 0.0
        %1885 = vmatpush1.msra.mxu0 0.0
        %1886 = vmatprep.subr.mxu0 0.0
        %1887 = vmatpush1.msra.mxu0 0.0
        %1888 = vmatprep.subr.mxu0 0.0
        %1889 = vmatpush1.msra.mxu0 0.0
        %1890 = vmatprep.mubr.f32.mxu0 0.0
        %1891 = vmatmul.mubr.f32.gmra.mrb[0].mxu0 %v1824
        %v1892 = vpop.f32.mrb[0].mxu0
        %v1893 = vadd.f32 %v1821, %v1892
        %v1894 = vpop.f32.mrb[0].mxu0
        %1895 = vdwg.mxu0
        %v1896 = vmul.f32 %v1893, 0.5
        %v1897 = vmul.f32 %v1893, 0.70710677
        %v1898 = verf.f32.pop %v1897
        %v1899 = vadd.f32 %v1898, 1.0
        %v1900 = vmul.f32 %v1896, %v1899
        %v1901 = vld [vmem:[%s10] sm:$0xff]
        %v1902 = vld [vmem:[%s10 + $0x8] sm:$0xff]
        %v1903 = vld [vmem:[%s10 + $0x10] sm:$0xff]
        %v1904 = vld [vmem:[%s10 + $0x18] sm:$0xff]
        %v1905 = vld [vmem:[%s10 + $0x20] sm:$0xff]
        %v1906 = vld [vmem:[%s10 + $0x28] sm:$0xff]
        %v1907 = vld [vmem:[%s10 + $0x30] sm:$0xff]
        %v1908 = vld [vmem:[%s10 + $0x38] sm:$0xff]
        %v1909 = vld [vmem:[%s11] sm:$0x1]
        %v1911 = vlaneseq
        %v1912 = vshrl.u32 %v1911, 7
        %v1913 = vsub.s32 0, %v1912
        %v1914 = vrot.slane %v1909, %v1913
        %vm1916 = vcmask 523264
        %v1918 = vsel %vm1916, %v1900, 0
        %1920 = vmatprep.subr.mxu0 0.0
        %1921 = vmatpush1.msra.mxu0 %v1901
        %1922 = vmatprep.subr.mxu0 0.0
        %1923 = vmatpush1.msra.mxu0 %v1902
        %1924 = vmatprep.subr.mxu0 0.0
        %1925 = vmatpush1.msra.mxu0 %v1903
        %1926 = vmatprep.subr.mxu0 0.0
        %1927 = vmatpush1.msra.mxu0 %v1904
        %1928 = vmatprep.subr.mxu0 0.0
        %1929 = vmatpush1.msra.mxu0 %v1905
        %1930 = vmatprep.subr.mxu0 0.0
        %1931 = vmatpush1.msra.mxu0 %v1906
        %1932 = vmatprep.subr.mxu0 0.0
        %1933 = vmatpush1.msra.mxu0 %v1907
        %1934 = vmatprep.subr.mxu0 0.0
        %1935 = vmatpush1.msra.mxu0 %v1908
        %1936 = vmatprep.subr.mxu0 0.0
        %1937 = vmatpush1.msra.mxu0 0.0
        %1938 = vmatprep.subr.mxu0 0.0
        %1939 = vmatpush1.msra.mxu0 0.0
        %1940 = vmatprep.subr.mxu0 0.0
        %1941 = vmatpush1.msra.mxu0 0.0
        %1942 = vmatprep.subr.mxu0 0.0
        %1943 = vmatpush1.msra.mxu0 0.0
        %1944 = vmatprep.subr.mxu0 0.0
        %1945 = vmatpush1.msra.mxu0 0.0
        %1946 = vmatprep.subr.mxu0 0.0
        %1947 = vmatpush1.msra.mxu0 0.0
        %1948 = vmatprep.subr.mxu0 0.0
        %1949 = vmatpush1.msra.mxu0 0.0
        %1950 = vmatprep.subr.mxu0 0.0
        %1951 = vmatpush1.msra.mxu0 0.0
        %1952 = vmatprep.subr.mxu0 0.0
        %1953 = vmatpush1.msra.mxu0 0.0
        %1954 = vmatprep.subr.mxu0 0.0
        %1955 = vmatpush1.msra.mxu0 0.0
        %1956 = vmatprep.subr.mxu0 0.0
        %1957 = vmatpush1.msra.mxu0 0.0
        %1958 = vmatprep.subr.mxu0 0.0
        %1959 = vmatpush1.msra.mxu0 0.0
        %1960 = vmatprep.subr.mxu0 0.0
        %1961 = vmatpush1.msra.mxu0 0.0
        %1962 = vmatprep.subr.mxu0 0.0
        %1963 = vmatpush1.msra.mxu0 0.0
        %1964 = vmatprep.subr.mxu0 0.0
        %1965 = vmatpush1.msra.mxu0 0.0
        %1966 = vmatprep.subr.mxu0 0.0
        %1967 = vmatpush1.msra.mxu0 0.0
        %1968 = vmatprep.subr.mxu0 0.0
        %1969 = vmatpush1.msra.mxu0 0.0
        %1970 = vmatprep.subr.mxu0 0.0
        %1971 = vmatpush1.msra.mxu0 0.0
        %1972 = vmatprep.subr.mxu0 0.0
        %1973 = vmatpush1.msra.mxu0 0.0
        %1974 = vmatprep.subr.mxu0 0.0
        %1975 = vmatpush1.msra.mxu0 0.0
        %1976 = vmatprep.subr.mxu0 0.0
        %1977 = vmatpush1.msra.mxu0 0.0
        %1978 = vmatprep.subr.mxu0 0.0
        %1979 = vmatpush1.msra.mxu0 0.0
        %1980 = vmatprep.subr.mxu0 0.0
        %1981 = vmatpush1.msra.mxu0 0.0
        %1982 = vmatprep.subr.mxu0 0.0
        %1983 = vmatpush1.msra.mxu0 0.0
        %1984 = vmatprep.mubr.f32.mxu0 0.0
        %1985 = vmatmul.mubr.f32.gmra.mrb[0].mxu0 %v1918
        %v1986 = vpop.f32.mrb[0].mxu0
        %v1987 = vadd.f32 %v1914, %v1986
        %v1988 = vpop.f32.mrb[0].mxu0
        %1989 = vdwg.mxu0
        %v1990 = vadd.f32 %v1987, %v1811
        %v1991 = vld [vmem:[%s12] sm:$0x1]
        %v1992 = vld [vmem:[%s13] sm:$0x1]
        %v1993 = vsel %vm523, %v1990, 0.0
        %1994 = vadd.xlane.f32.xlu0 %v1993
        %v1995 = vpop.xlane.xlu0 %1994
        %v1996 = vmul.f32 %v1995, %v1787
        %v1997 = vsub.f32 %v1990, %v1996
        %v1998 = vmul.f32 %v1997, %v1997
        %v1999 = vsel %vm523, %v1998, 0.0
        %2000 = vadd.xlane.f32.xlu0 %v1999
        %v2001 = vpop.xlane.xlu0 %2000
        %v2002 = vmul.f32 %v2001, %v1787
        %v2003 = vadd.f32 %v2002, 1e-12
        %v2004 = vrsqrt.pop %v2003
        %v2005 = vmul.f32 %v1997, %v2004
        %v2007 = vlaneseq
        %v2008 = vshrl.u32 %v2007, 7
        %v2009 = vsub.s32 0, %v2008
        %v2010 = vrot.slane %v1991, %v2009
        %v2012 = vmul.f32 %v2005, %v2010
        %v2014 = vlaneseq
        %v2015 = vshrl.u32 %v2014, 7
        %v2016 = vsub.s32 0, %v2015
        %v2017 = vrot.slane %v1992, %v2016
        %v2019 = vadd.f32 %v2012, %v2017
        %s2020 = scalar_lea.vmem %s2, 128
        %v2021 = vld [vmem:[%s2020] sm:$0xff]
        %v2022 = vld [vmem:[%s2020 + $0x8] sm:$0xff]
        %v2023 = vld [vmem:[%s2020 + $0x10] sm:$0xff]
        %v2024 = vld [vmem:[%s2020 + $0x18] sm:$0xff]
        %v2025 = vld [vmem:[%s2020 + $0x20] sm:$0xff]
        %v2026 = vld [vmem:[%s2020 + $0x28] sm:$0xff]
        %v2027 = vld [vmem:[%s2020 + $0x30] sm:$0xff]
        %v2028 = vld [vmem:[%s2020 + $0x38] sm:$0xff]
        %v2029 = vld [vmem:[%s2020 + $0x40] sm:$0xff]
        %v2030 = vld [vmem:[%s2020 + $0x48] sm:$0xff]
        %v2031 = vld [vmem:[%s2020 + $0x50] sm:$0xff]
        %v2032 = vld [vmem:[%s2020 + $0x58] sm:$0xff]
        %v2033 = vld [vmem:[%s2020 + $0x60] sm:$0xff]
        %v2034 = vld [vmem:[%s2020 + $0x68] sm:$0xff]
        %v2035 = vld [vmem:[%s2020 + $0x70] sm:$0xff]
        %v2036 = vld [vmem:[%s2020 + $0x78] sm:$0xff]
        %s2037 = scalar_lea.vmem %s3, 4
        %v2038 = vld [vmem:[%s2037] sm:$0x1]
        %v2039 = vld [vmem:[%s2037 + $0x1] sm:$0x1]
        %v2040 = vld [vmem:[%s2037 + $0x2] sm:$0x1]
        %v2041 = vld [vmem:[%s2037 + $0x3] sm:$0x1]
        %v2046 = vlaneseq
        %v2047 = vshrl.u32 %v2046, 7
        %v2048 = vsub.s32 0, %v2047
        %v2049 = vrot.slane %v2038, %v2048
        %v2050 = vlaneseq
        %v2051 = vshrl.u32 %v2050, 7
        %v2052 = vsub.s32 0, %v2051
        %v2053 = vrot.slane %v2039, %v2052
        %v2054 = vlaneseq
        %v2055 = vshrl.u32 %v2054, 7
        %v2056 = vsub.s32 0, %v2055
        %v2057 = vrot.slane %v2040, %v2056
        %v2058 = vlaneseq
        %v2059 = vshrl.u32 %v2058, 7
        %v2060 = vsub.s32 0, %v2059
        %v2061 = vrot.slane %v2041, %v2060
        %v2067 = vsel %vm523, %v2019, 0
        %2069 = vmatprep.subr.mxu0 0.0
        %2070 = vmatpush1.msra.mxu0 %v2021
        %2071 = vmatprep.subr.mxu0 0.0
        %2072 = vmatpush1.msra.mxu0 %v2022
        %2073 = vmatprep.subr.mxu0 0.0
        %2074 = vmatpush1.msra.mxu0 %v2023
        %2075 = vmatprep.subr.mxu0 0.0
        %2076 = vmatpush1.msra.mxu0 %v2024
        %2077 = vmatprep.subr.mxu0 0.0
        %2078 = vmatpush1.msra.mxu0 0.0
        %2079 = vmatprep.subr.mxu0 0.0
        %2080 = vmatpush1.msra.mxu0 0.0
        %2081 = vmatprep.subr.mxu0 0.0
        %2082 = vmatpush1.msra.mxu0 0.0
        %2083 = vmatprep.subr.mxu0 0.0
        %2084 = vmatpush1.msra.mxu0 0.0
        %2085 = vmatprep.subr.mxu0 0.0
        %2086 = vmatpush1.msra.mxu0 0.0
        %2087 = vmatprep.subr.mxu0 0.0
        %2088 = vmatpush1.msra.mxu0 0.0
        %2089 = vmatprep.subr.mxu0 0.0
        %2090 = vmatpush1.msra.mxu0 0.0
        %2091 = vmatprep.subr.mxu0 0.0
        %2092 = vmatpush1.msra.mxu0 0.0
        %2093 = vmatprep.subr.mxu0 0.0
        %2094 = vmatpush1.msra.mxu0 0.0
        %2095 = vmatprep.subr.mxu0 0.0
        %2096 = vmatpush1.msra.mxu0 0.0
        %2097 = vmatprep.subr.mxu0 0.0
        %2098 = vmatpush1.msra.mxu0 0.0
        %2099 = vmatprep.subr.mxu0 0.0
        %2100 = vmatpush1.msra.mxu0 0.0
        %2101 = vmatprep.subr.mxu0 0.0
        %2102 = vmatpush1.msra.mxu0 0.0
        %2103 = vmatprep.subr.mxu0 0.0
        %2104 = vmatpush1.msra.mxu0 0.0
        %2105 = vmatprep.subr.mxu0 0.0
        %2106 = vmatpush1.msra.mxu0 0.0
        %2107 = vmatprep.subr.mxu0 0.0
        %2108 = vmatpush1.msra.mxu0 0.0
        %2109 = vmatprep.subr.mxu0 0.0
        %2110 = vmatpush1.msra.mxu0 0.0
        %2111 = vmatprep.subr.mxu0 0.0
        %2112 = vmatpush1.msra.mxu0 0.0
        %2113 = vmatprep.subr.mxu0 0.0
        %2114 = vmatpush1.msra.mxu0 0.0
        %2115 = vmatprep.subr.mxu0 0.0
        %2116 = vmatpush1.msra.mxu0 0.0
        %2117 = vmatprep.subr.mxu0 0.0
        %2118 = vmatpush1.msra.mxu0 0.0
        %2119 = vmatprep.subr.mxu0 0.0
        %2120 = vmatpush1.msra.mxu0 0.0
        %2121 = vmatprep.subr.mxu0 0.0
        %2122 = vmatpush1.msra.mxu0 0.0
        %2123 = vmatprep.subr.mxu0 0.0
        %2124 = vmatpush1.msra.mxu0 0.0
        %2125 = vmatprep.subr.mxu0 0.0
        %2126 = vmatpush1.msra.mxu0 0.0
        %2127 = vmatprep.subr.mxu0 0.0
        %2128 = vmatpush1.msra.mxu0 0.0
        %2129 = vmatprep.subr.mxu0 0.0
        %2130 = vmatpush1.msra.mxu0 0.0
        %2131 = vmatprep.subr.mxu0 0.0
        %2132 = vmatpush1.msra.mxu0 0.0
        %2133 = vmatprep.mubr.f32.mxu0 0.0
        %2134 = vmatmul.mubr.f32.gmra.mrb[0].mxu0 %v2067
        %v2135 = vpop.f32.mrb[0].mxu0
        %v2136 = vadd.f32 %v2049, %v2135
        %v2137 = vpop.f32.mrb[0].mxu0
        %2138 = vdwg.mxu0
        %2139 = vmatprep.subr.mxu0 0.0
        %2140 = vmatpush1.msra.mxu0 %v2025
        %2141 = vmatprep.subr.mxu0 0.0
        %2142 = vmatpush1.msra.mxu0 %v2026
        %2143 = vmatprep.subr.mxu0 0.0
        %2144 = vmatpush1.msra.mxu0 %v2027
        %2145 = vmatprep.subr.mxu0 0.0
        %2146 = vmatpush1.msra.mxu0 %v2028
        %2147 = vmatprep.subr.mxu0 0.0
        %2148 = vmatpush1.msra.mxu0 0.0
        %2149 = vmatprep.subr.mxu0 0.0
        %2150 = vmatpush1.msra.mxu0 0.0
        %2151 = vmatprep.subr.mxu0 0.0
        %2152 = vmatpush1.msra.mxu0 0.0
        %2153 = vmatprep.subr.mxu0 0.0
        %2154 = vmatpush1.msra.mxu0 0.0
        %2155 = vmatprep.subr.mxu0 0.0
        %2156 = vmatpush1.msra.mxu0 0.0
        %2157 = vmatprep.subr.mxu0 0.0
        %2158 = vmatpush1.msra.mxu0 0.0
        %2159 = vmatprep.subr.mxu0 0.0
        %2160 = vmatpush1.msra.mxu0 0.0
        %2161 = vmatprep.subr.mxu0 0.0
        %2162 = vmatpush1.msra.mxu0 0.0
        %2163 = vmatprep.subr.mxu0 0.0
        %2164 = vmatpush1.msra.mxu0 0.0
        %2165 = vmatprep.subr.mxu0 0.0
        %2166 = vmatpush1.msra.mxu0 0.0
        %2167 = vmatprep.subr.mxu0 0.0
        %2168 = vmatpush1.msra.mxu0 0.0
        %2169 = vmatprep.subr.mxu0 0.0
        %2170 = vmatpush1.msra.mxu0 0.0
        %2171 = vmatprep.subr.mxu0 0.0
        %2172 = vmatpush1.msra.mxu0 0.0
        %2173 = vmatprep.subr.mxu0 0.0
        %2174 = vmatpush1.msra.mxu0 0.0
        %2175 = vmatprep.subr.mxu0 0.0
        %2176 = vmatpush1.msra.mxu0 0.0
        %2177 = vmatprep.subr.mxu0 0.0
        %2178 = vmatpush1.msra.mxu0 0.0
        %2179 = vmatprep.subr.mxu0 0.0
        %2180 = vmatpush1.msra.mxu0 0.0
        %2181 = vmatprep.subr.mxu0 0.0
        %2182 = vmatpush1.msra.mxu0 0.0
        %2183 = vmatprep.subr.mxu0 0.0
        %2184 = vmatpush1.msra.mxu0 0.0
        %2185 = vmatprep.subr.mxu0 0.0
        %2186 = vmatpush1.msra.mxu0 0.0
        %2187 = vmatprep.subr.mxu0 0.0
        %2188 = vmatpush1.msra.mxu0 0.0
        %2189 = vmatprep.subr.mxu0 0.0
        %2190 = vmatpush1.msra.mxu0 0.0
        %2191 = vmatprep.subr.mxu0 0.0
        %2192 = vmatpush1.msra.mxu0 0.0
        %2193 = vmatprep.subr.mxu0 0.0
        %2194 = vmatpush1.msra.mxu0 0.0
        %2195 = vmatprep.subr.mxu0 0.0
        %2196 = vmatpush1.msra.mxu0 0.0
        %2197 = vmatprep.subr.mxu0 0.0
        %2198 = vmatpush1.msra.mxu0 0.0
        %2199 = vmatprep.subr.mxu0 0.0
        %2200 = vmatpush1.msra.mxu0 0.0
        %2201 = vmatprep.subr.mxu0 0.0
        %2202 = vmatpush1.msra.mxu0 0.0
        %2203 = vmatprep.mubr.f32.mxu0 0.0
        %2204 = vmatmul.mubr.f32.gmra.mrb[0].mxu0 %v2067
        %v2205 = vpop.f32.mrb[0].mxu0
        %v2206 = vadd.f32 %v2053, %v2205
        %v2207 = vpop.f32.mrb[0].mxu0
        %2208 = vdwg.mxu0
        %2209 = vmatprep.subr.mxu0 0.0
        %2210 = vmatpush1.msra.mxu0 %v2029
        %2211 = vmatprep.subr.mxu0 0.0
        %2212 = vmatpush1.msra.mxu0 %v2030
        %2213 = vmatprep.subr.mxu0 0.0
        %2214 = vmatpush1.msra.mxu0 %v2031
        %2215 = vmatprep.subr.mxu0 0.0
        %2216 = vmatpush1.msra.mxu0 %v2032
        %2217 = vmatprep.subr.mxu0 0.0
        %2218 = vmatpush1.msra.mxu0 0.0
        %2219 = vmatprep.subr.mxu0 0.0
        %2220 = vmatpush1.msra.mxu0 0.0
        %2221 = vmatprep.subr.mxu0 0.0
        %2222 = vmatpush1.msra.mxu0 0.0
        %2223 = vmatprep.subr.mxu0 0.0
        %2224 = vmatpush1.msra.mxu0 0.0
        %2225 = vmatprep.subr.mxu0 0.0
        %2226 = vmatpush1.msra.mxu0 0.0
        %2227 = vmatprep.subr.mxu0 0.0
        %2228 = vmatpush1.msra.mxu0 0.0
        %2229 = vmatprep.subr.mxu0 0.0
        %2230 = vmatpush1.msra.mxu0 0.0
        %2231 = vmatprep.subr.mxu0 0.0
        %2232 = vmatpush1.msra.mxu0 0.0
        %2233 = vmatprep.subr.mxu0 0.0
        %2234 = vmatpush1.msra.mxu0 0.0
        %2235 = vmatprep.subr.mxu0 0.0
        %2236 = vmatpush1.msra.mxu0 0.0
        %2237 = vmatprep.subr.mxu0 0.0
        %2238 = vmatpush1.msra.mxu0 0.0
        %2239 = vmatprep.subr.mxu0 0.0
        %2240 = vmatpush1.msra.mxu0 0.0
        %2241 = vmatprep.subr.mxu0 0.0
        %2242 = vmatpush1.msra.mxu0 0.0
        %2243 = vmatprep.subr.mxu0 0.0
        %2244 = vmatpush1.msra.mxu0 0.0
        %2245 = vmatprep.subr.mxu0 0.0
        %2246 = vmatpush1.msra.mxu0 0.0
        %2247 = vmatprep.subr.mxu0 0.0
        %2248 = vmatpush1.msra.mxu0 0.0
        %2249 = vmatprep.subr.mxu0 0.0
        %2250 = vmatpush1.msra.mxu0 0.0
        %2251 = vmatprep.subr.mxu0 0.0
        %2252 = vmatpush1.msra.mxu0 0.0
        %2253 = vmatprep.subr.mxu0 0.0
        %2254 = vmatpush1.msra.mxu0 0.0
        %2255 = vmatprep.subr.mxu0 0.0
        %2256 = vmatpush1.msra.mxu0 0.0
        %2257 = vmatprep.subr.mxu0 0.0
        %2258 = vmatpush1.msra.mxu0 0.0
        %2259 = vmatprep.subr.mxu0 0.0
        %2260 = vmatpush1.msra.mxu0 0.0
        %2261 = vmatprep.subr.mxu0 0.0
        %2262 = vmatpush1.msra.mxu0 0.0
        %2263 = vmatprep.subr.mxu0 0.0
        %2264 = vmatpush1.msra.mxu0 0.0
        %2265 = vmatprep.subr.mxu0 0.0
        %2266 = vmatpush1.msra.mxu0 0.0
        %2267 = vmatprep.subr.mxu0 0.0
        %2268 = vmatpush1.msra.mxu0 0.0
        %2269 = vmatprep.subr.mxu0 0.0
        %2270 = vmatpush1.msra.mxu0 0.0
        %2271 = vmatprep.subr.mxu0 0.0
        %2272 = vmatpush1.msra.mxu0 0.0
        %2273 = vmatprep.mubr.f32.mxu0 0.0
        %2274 = vmatmul.mubr.f32.gmra.mrb[0].mxu0 %v2067
        %v2275 = vpop.f32.mrb[0].mxu0
        %v2276 = vadd.f32 %v2057, %v2275
        %v2277 = vpop.f32.mrb[0].mxu0
        %2278 = vdwg.mxu0
        %2279 = vmatprep.subr.mxu0 0.0
        %2280 = vmatpush1.msra.mxu0 %v2033
        %2281 = vmatprep.subr.mxu0 0.0
        %2282 = vmatpush1.msra.mxu0 %v2034
        %2283 = vmatprep.subr.mxu0 0.0
        %2284 = vmatpush1.msra.mxu0 %v2035
        %2285 = vmatprep.subr.mxu0 0.0
        %2286 = vmatpush1.msra.mxu0 %v2036
        %2287 = vmatprep.subr.mxu0 0.0
        %2288 = vmatpush1.msra.mxu0 0.0
        %2289 = vmatprep.subr.mxu0 0.0
        %2290 = vmatpush1.msra.mxu0 0.0
        %2291 = vmatprep.subr.mxu0 0.0
        %2292 = vmatpush1.msra.mxu0 0.0
        %2293 = vmatprep.subr.mxu0 0.0
        %2294 = vmatpush1.msra.mxu0 0.0
        %2295 = vmatprep.subr.mxu0 0.0
        %2296 = vmatpush1.msra.mxu0 0.0
        %2297 = vmatprep.subr.mxu0 0.0
        %2298 = vmatpush1.msra.mxu0 0.0
        %2299 = vmatprep.subr.mxu0 0.0
        %2300 = vmatpush1.msra.mxu0 0.0
        %2301 = vmatprep.subr.mxu0 0.0
        %2302 = vmatpush1.msra.mxu0 0.0
        %2303 = vmatprep.subr.mxu0 0.0
        %2304 = vmatpush1.msra.mxu0 0.0
        %2305 = vmatprep.subr.mxu0 0.0
        %2306 = vmatpush1.msra.mxu0 0.0
        %2307 = vmatprep.subr.mxu0 0.0
        %2308 = vmatpush1.msra.mxu0 0.0
        %2309 = vmatprep.subr.mxu0 0.0
        %2310 = vmatpush1.msra.mxu0 0.0
        %2311 = vmatprep.subr.mxu0 0.0
        %2312 = vmatpush1.msra.mxu0 0.0
        %2313 = vmatprep.subr.mxu0 0.0
        %2314 = vmatpush1.msra.mxu0 0.0
        %2315 = vmatprep.subr.mxu0 0.0
        %2316 = vmatpush1.msra.mxu0 0.0
        %2317 = vmatprep.subr.mxu0 0.0
        %2318 = vmatpush1.msra.mxu0 0.0
        %2319 = vmatprep.subr.mxu0 0.0
        %2320 = vmatpush1.msra.mxu0 0.0
        %2321 = vmatprep.subr.mxu0 0.0
        %2322 = vmatpush1.msra.mxu0 0.0
        %2323 = vmatprep.subr.mxu0 0.0
        %2324 = vmatpush1.msra.mxu0 0.0
        %2325 = vmatprep.subr.mxu0 0.0
        %2326 = vmatpush1.msra.mxu0 0.0
        %2327 = vmatprep.subr.mxu0 0.0
        %2328 = vmatpush1.msra.mxu0 0.0
        %2329 = vmatprep.subr.mxu0 0.0
        %2330 = vmatpush1.msra.mxu0 0.0
        %2331 = vmatprep.subr.mxu0 0.0
        %2332 = vmatpush1.msra.mxu0 0.0
        %2333 = vmatprep.subr.mxu0 0.0
        %2334 = vmatpush1.msra.mxu0 0.0
        %2335 = vmatprep.subr.mxu0 0.0
        %2336 = vmatpush1.msra.mxu0 0.0
        %2337 = vmatprep.subr.mxu0 0.0
        %2338 = vmatpush1.msra.mxu0 0.0
        %2339 = vmatprep.subr.mxu0 0.0
        %2340 = vmatpush1.msra.mxu0 0.0
        %2341 = vmatprep.subr.mxu0 0.0
        %2342 = vmatpush1.msra.mxu0 0.0
        %2343 = vmatprep.mubr.f32.mxu0 0.0
        %2344 = vmatmul.mubr.f32.gmra.mrb[0].mxu0 %v2067
        %v2345 = vpop.f32.mrb[0].mxu0
        %v2346 = vadd.f32 %v2061, %v2345
        %v2347 = vpop.f32.mrb[0].mxu0
        %2348 = vdwg.mxu0
        %2350 = vrot.lane.b32.xlu0 %v2136, 120
        %v2351 = vpop.permute.xlu0 %2350
        %v2352 = vsel %vm816, %v2136, 0
        %v2354 = vsel %vm816, %v2351, 0
        %2356 = vmatprep.subr.mxu0 0.0
        %2357 = vmatpush1.xpose.msra.mxu0 %v2354
        %2358 = vmatprep.subr.mxu0 0.0
        %2359 = vmatpush1.xpose.msra.mxu0 0.0
        %2360 = vmatprep.subr.mxu0 0.0
        %2361 = vmatpush1.xpose.msra.mxu0 0.0
        %2362 = vmatprep.subr.mxu0 0.0
        %2363 = vmatpush1.xpose.msra.mxu0 0.0
        %2364 = vmatprep.subr.mxu0 0.0
        %2365 = vmatpush1.xpose.msra.mxu0 0.0
        %2366 = vmatprep.subr.mxu0 0.0
        %2367 = vmatpush1.xpose.msra.mxu0 0.0
        %2368 = vmatprep.subr.mxu0 0.0
        %2369 = vmatpush1.xpose.msra.mxu0 0.0
        %2370 = vmatprep.subr.mxu0 0.0
        %2371 = vmatpush1.xpose.msra.mxu0 0.0
        %2372 = vmatprep.subr.mxu0 0.0
        %2373 = vmatpush1.xpose.msra.mxu0 0.0
        %2374 = vmatprep.subr.mxu0 0.0
        %2375 = vmatpush1.xpose.msra.mxu0 0.0
        %2376 = vmatprep.subr.mxu0 0.0
        %2377 = vmatpush1.xpose.msra.mxu0 0.0
        %2378 = vmatprep.subr.mxu0 0.0
        %2379 = vmatpush1.xpose.msra.mxu0 0.0
        %2380 = vmatprep.subr.mxu0 0.0
        %2381 = vmatpush1.xpose.msra.mxu0 0.0
        %2382 = vmatprep.subr.mxu0 0.0
        %2383 = vmatpush1.xpose.msra.mxu0 0.0
        %2384 = vmatprep.subr.mxu0 0.0
        %2385 = vmatpush1.xpose.msra.mxu0 0.0
        %2386 = vmatprep.subr.mxu0 0.0
        %2387 = vmatpush1.xpose.msra.mxu0 0.0
        %2388 = vmatprep.subr.mxu0 0.0
        %2389 = vmatpush1.xpose.msra.mxu0 0.0
        %2390 = vmatprep.subr.mxu0 0.0
        %2391 = vmatpush1.xpose.msra.mxu0 0.0
        %2392 = vmatprep.subr.mxu0 0.0
        %2393 = vmatpush1.xpose.msra.mxu0 0.0
        %2394 = vmatprep.subr.mxu0 0.0
        %2395 = vmatpush1.xpose.msra.mxu0 0.0
        %2396 = vmatprep.subr.mxu0 0.0
        %2397 = vmatpush1.xpose.msra.mxu0 0.0
        %2398 = vmatprep.subr.mxu0 0.0
        %2399 = vmatpush1.xpose.msra.mxu0 0.0
        %2400 = vmatprep.subr.mxu0 0.0
        %2401 = vmatpush1.xpose.msra.mxu0 0.0
        %2402 = vmatprep.subr.mxu0 0.0
        %2403 = vmatpush1.xpose.msra.mxu0 0.0
        %2404 = vmatprep.subr.mxu0 0.0
        %2405 = vmatpush1.xpose.msra.mxu0 0.0
        %2406 = vmatprep.subr.mxu0 0.0
        %2407 = vmatpush1.xpose.msra.mxu0 0.0
        %2408 = vmatprep.subr.mxu0 0.0
        %2409 = vmatpush1.xpose.msra.mxu0 0.0
        %2410 = vmatprep.subr.mxu0 0.0
        %2411 = vmatpush1.xpose.msra.mxu0 0.0
        %2412 = vmatprep.subr.mxu0 0.0
        %2413 = vmatpush1.xpose.msra.mxu0 0.0
        %2414 = vmatprep.subr.mxu0 0.0
        %2415 = vmatpush1.xpose.msra.mxu0 0.0
        %2416 = vmatprep.subr.mxu0 0.0
        %2417 = vmatpush1.xpose.msra.mxu0 0.0
        %2418 = vmatprep.subr.mxu0 0.0
        %2419 = vmatpush1.xpose.msra.mxu0 0.0
        %2420 = vmatprep.mubr.f32.mxu0 0.0
        %2421 = vmatmul.mubr.f32.gmra.mrb[0].mxu0 %v2352
        %v2422 = vpop.f32.mrb[0].mxu0
        %v2423 = vadd.f32 %v811, %v2422
        %v2424 = vpop.f32.mrb[0].mxu0
        %2425 = vdwg.mxu0
        %2427 = vrot.lane.b32.xlu0 %v2206, 120
        %v2428 = vpop.permute.xlu0 %2427
        %v2429 = vsel %vm816, %v2206, 0
        %v2431 = vsel %vm816, %v2428, 0
        %2433 = vmatprep.subr.mxu0 0.0
        %2434 = vmatpush1.xpose.msra.mxu0 %v2431
        %2435 = vmatprep.subr.mxu0 0.0
        %2436 = vmatpush1.xpose.msra.mxu0 0.0
        %2437 = vmatprep.subr.mxu0 0.0
        %2438 = vmatpush1.xpose.msra.mxu0 0.0
        %2439 = vmatprep.subr.mxu0 0.0
        %2440 = vmatpush1.xpose.msra.mxu0 0.0
        %2441 = vmatprep.subr.mxu0 0.0
        %2442 = vmatpush1.xpose.msra.mxu0 0.0
        %2443 = vmatprep.subr.mxu0 0.0
        %2444 = vmatpush1.xpose.msra.mxu0 0.0
        %2445 = vmatprep.subr.mxu0 0.0
        %2446 = vmatpush1.xpose.msra.mxu0 0.0
        %2447 = vmatprep.subr.mxu0 0.0
        %2448 = vmatpush1.xpose.msra.mxu0 0.0
        %2449 = vmatprep.subr.mxu0 0.0
        %2450 = vmatpush1.xpose.msra.mxu0 0.0
        %2451 = vmatprep.subr.mxu0 0.0
        %2452 = vmatpush1.xpose.msra.mxu0 0.0
        %2453 = vmatprep.subr.mxu0 0.0
        %2454 = vmatpush1.xpose.msra.mxu0 0.0
        %2455 = vmatprep.subr.mxu0 0.0
        %2456 = vmatpush1.xpose.msra.mxu0 0.0
        %2457 = vmatprep.subr.mxu0 0.0
        %2458 = vmatpush1.xpose.msra.mxu0 0.0
        %2459 = vmatprep.subr.mxu0 0.0
        %2460 = vmatpush1.xpose.msra.mxu0 0.0
        %2461 = vmatprep.subr.mxu0 0.0
        %2462 = vmatpush1.xpose.msra.mxu0 0.0
        %2463 = vmatprep.subr.mxu0 0.0
        %2464 = vmatpush1.xpose.msra.mxu0 0.0
        %2465 = vmatprep.subr.mxu0 0.0
        %2466 = vmatpush1.xpose.msra.mxu0 0.0
        %2467 = vmatprep.subr.mxu0 0.0
        %2468 = vmatpush1.xpose.msra.mxu0 0.0
        %2469 = vmatprep.subr.mxu0 0.0
        %2470 = vmatpush1.xpose.msra.mxu0 0.0
        %2471 = vmatprep.subr.mxu0 0.0
        %2472 = vmatpush1.xpose.msra.mxu0 0.0
        %2473 = vmatprep.subr.mxu0 0.0
        %2474 = vmatpush1.xpose.msra.mxu0 0.0
        %2475 = vmatprep.subr.mxu0 0.0
        %2476 = vmatpush1.xpose.msra.mxu0 0.0
        %2477 = vmatprep.subr.mxu0 0.0
        %2478 = vmatpush1.xpose.msra.mxu0 0.0
        %2479 = vmatprep.subr.mxu0 0.0
        %2480 = vmatpush1.xpose.msra.mxu0 0.0
        %2481 = vmatprep.subr.mxu0 0.0
        %2482 = vmatpush1.xpose.msra.mxu0 0.0
        %2483 = vmatprep.subr.mxu0 0.0
        %2484 = vmatpush1.xpose.msra.mxu0 0.0
        %2485 = vmatprep.subr.mxu0 0.0
        %2486 = vmatpush1.xpose.msra.mxu0 0.0
        %2487 = vmatprep.subr.mxu0 0.0
        %2488 = vmatpush1.xpose.msra.mxu0 0.0
        %2489 = vmatprep.subr.mxu0 0.0
        %2490 = vmatpush1.xpose.msra.mxu0 0.0
        %2491 = vmatprep.subr.mxu0 0.0
        %2492 = vmatpush1.xpose.msra.mxu0 0.0
        %2493 = vmatprep.subr.mxu0 0.0
        %2494 = vmatpush1.xpose.msra.mxu0 0.0
        %2495 = vmatprep.subr.mxu0 0.0
        %2496 = vmatpush1.xpose.msra.mxu0 0.0
        %2497 = vmatprep.mubr.f32.mxu0 0.0
        %2498 = vmatmul.mubr.f32.gmra.mrb[0].mxu0 %v2429
        %v2499 = vpop.f32.mrb[0].mxu0
        %v2500 = vadd.f32 %v811, %v2499
        %v2501 = vpop.f32.mrb[0].mxu0
        %2502 = vdwg.mxu0
        %2504 = vrot.lane.b32.xlu0 %v2276, 120
        %v2505 = vpop.permute.xlu0 %2504
        %v2506 = vsel %vm816, %v2276, 0
        %v2508 = vsel %vm816, %v2505, 0
        %2510 = vmatprep.subr.mxu0 0.0
        %2511 = vmatpush1.xpose.msra.mxu0 %v2508
        %2512 = vmatprep.subr.mxu0 0.0
        %2513 = vmatpush1.xpose.msra.mxu0 0.0
        %2514 = vmatprep.subr.mxu0 0.0
        %2515 = vmatpush1.xpose.msra.mxu0 0.0
        %2516 = vmatprep.subr.mxu0 0.0
        %2517 = vmatpush1.xpose.msra.mxu0 0.0
        %2518 = vmatprep.subr.mxu0 0.0
        %2519 = vmatpush1.xpose.msra.mxu0 0.0
        %2520 = vmatprep.subr.mxu0 0.0
        %2521 = vmatpush1.xpose.msra.mxu0 0.0
        %2522 = vmatprep.subr.mxu0 0.0
        %2523 = vmatpush1.xpose.msra.mxu0 0.0
        %2524 = vmatprep.subr.mxu0 0.0
        %2525 = vmatpush1.xpose.msra.mxu0 0.0
        %2526 = vmatprep.subr.mxu0 0.0
        %2527 = vmatpush1.xpose.msra.mxu0 0.0
        %2528 = vmatprep.subr.mxu0 0.0
        %2529 = vmatpush1.xpose.msra.mxu0 0.0
        %2530 = vmatprep.subr.mxu0 0.0
        %2531 = vmatpush1.xpose.msra.mxu0 0.0
        %2532 = vmatprep.subr.mxu0 0.0
        %2533 = vmatpush1.xpose.msra.mxu0 0.0
        %2534 = vmatprep.subr.mxu0 0.0
        %2535 = vmatpush1.xpose.msra.mxu0 0.0
        %2536 = vmatprep.subr.mxu0 0.0
        %2537 = vmatpush1.xpose.msra.mxu0 0.0
        %2538 = vmatprep.subr.mxu0 0.0
        %2539 = vmatpush1.xpose.msra.mxu0 0.0
        %2540 = vmatprep.subr.mxu0 0.0
        %2541 = vmatpush1.xpose.msra.mxu0 0.0
        %2542 = vmatprep.subr.mxu0 0.0
        %2543 = vmatpush1.xpose.msra.mxu0 0.0
        %2544 = vmatprep.subr.mxu0 0.0
        %2545 = vmatpush1.xpose.msra.mxu0 0.0
        %2546 = vmatprep.subr.mxu0 0.0
        %2547 = vmatpush1.xpose.msra.mxu0 0.0
        %2548 = vmatprep.subr.mxu0 0.0
        %2549 = vmatpush1.xpose.msra.mxu0 0.0
        %2550 = vmatprep.subr.mxu0 0.0
        %2551 = vmatpush1.xpose.msra.mxu0 0.0
        %2552 = vmatprep.subr.mxu0 0.0
        %2553 = vmatpush1.xpose.msra.mxu0 0.0
        %2554 = vmatprep.subr.mxu0 0.0
        %2555 = vmatpush1.xpose.msra.mxu0 0.0
        %2556 = vmatprep.subr.mxu0 0.0
        %2557 = vmatpush1.xpose.msra.mxu0 0.0
        %2558 = vmatprep.subr.mxu0 0.0
        %2559 = vmatpush1.xpose.msra.mxu0 0.0
        %2560 = vmatprep.subr.mxu0 0.0
        %2561 = vmatpush1.xpose.msra.mxu0 0.0
        %2562 = vmatprep.subr.mxu0 0.0
        %2563 = vmatpush1.xpose.msra.mxu0 0.0
        %2564 = vmatprep.subr.mxu0 0.0
        %2565 = vmatpush1.xpose.msra.mxu0 0.0
        %2566 = vmatprep.subr.mxu0 0.0
        %2567 = vmatpush1.xpose.msra.mxu0 0.0
        %2568 = vmatprep.subr.mxu0 0.0
        %2569 = vmatpush1.xpose.msra.mxu0 0.0
        %2570 = vmatprep.subr.mxu0 0.0
        %2571 = vmatpush1.xpose.msra.mxu0 0.0
        %2572 = vmatprep.subr.mxu0 0.0
        %2573 = vmatpush1.xpose.msra.mxu0 0.0
        %2574 = vmatprep.mubr.f32.mxu0 0.0
        %2575 = vmatmul.mubr.f32.gmra.mrb[0].mxu0 %v2506
        %v2576 = vpop.f32.mrb[0].mxu0
        %v2577 = vadd.f32 %v811, %v2576
        %v2578 = vpop.f32.mrb[0].mxu0
        %2579 = vdwg.mxu0
        %2581 = vrot.lane.b32.xlu0 %v2346, 120
        %v2582 = vpop.permute.xlu0 %2581
        %v2583 = vsel %vm816, %v2346, 0
        %v2585 = vsel %vm816, %v2582, 0
        %2587 = vmatprep.subr.mxu0 0.0
        %2588 = vmatpush1.xpose.msra.mxu0 %v2585
        %2589 = vmatprep.subr.mxu0 0.0
        %2590 = vmatpush1.xpose.msra.mxu0 0.0
        %2591 = vmatprep.subr.mxu0 0.0
        %2592 = vmatpush1.xpose.msra.mxu0 0.0
        %2593 = vmatprep.subr.mxu0 0.0
        %2594 = vmatpush1.xpose.msra.mxu0 0.0
        %2595 = vmatprep.subr.mxu0 0.0
        %2596 = vmatpush1.xpose.msra.mxu0 0.0
        %2597 = vmatprep.subr.mxu0 0.0
        %2598 = vmatpush1.xpose.msra.mxu0 0.0
        %2599 = vmatprep.subr.mxu0 0.0
        %2600 = vmatpush1.xpose.msra.mxu0 0.0
        %2601 = vmatprep.subr.mxu0 0.0
        %2602 = vmatpush1.xpose.msra.mxu0 0.0
        %2603 = vmatprep.subr.mxu0 0.0
        %2604 = vmatpush1.xpose.msra.mxu0 0.0
        %2605 = vmatprep.subr.mxu0 0.0
        %2606 = vmatpush1.xpose.msra.mxu0 0.0
        %2607 = vmatprep.subr.mxu0 0.0
        %2608 = vmatpush1.xpose.msra.mxu0 0.0
        %2609 = vmatprep.subr.mxu0 0.0
        %2610 = vmatpush1.xpose.msra.mxu0 0.0
        %2611 = vmatprep.subr.mxu0 0.0
        %2612 = vmatpush1.xpose.msra.mxu0 0.0
        %2613 = vmatprep.subr.mxu0 0.0
        %2614 = vmatpush1.xpose.msra.mxu0 0.0
        %2615 = vmatprep.subr.mxu0 0.0
        %2616 = vmatpush1.xpose.msra.mxu0 0.0
        %2617 = vmatprep.subr.mxu0 0.0
        %2618 = vmatpush1.xpose.msra.mxu0 0.0
        %2619 = vmatprep.subr.mxu0 0.0
        %2620 = vmatpush1.xpose.msra.mxu0 0.0
        %2621 = vmatprep.subr.mxu0 0.0
        %2622 = vmatpush1.xpose.msra.mxu0 0.0
        %2623 = vmatprep.subr.mxu0 0.0
        %2624 = vmatpush1.xpose.msra.mxu0 0.0
        %2625 = vmatprep.subr.mxu0 0.0
        %2626 = vmatpush1.xpose.msra.mxu0 0.0
        %2627 = vmatprep.subr.mxu0 0.0
        %2628 = vmatpush1.xpose.msra.mxu0 0.0
        %2629 = vmatprep.subr.mxu0 0.0
        %2630 = vmatpush1.xpose.msra.mxu0 0.0
        %2631 = vmatprep.subr.mxu0 0.0
        %2632 = vmatpush1.xpose.msra.mxu0 0.0
        %2633 = vmatprep.subr.mxu0 0.0
        %2634 = vmatpush1.xpose.msra.mxu0 0.0
        %2635 = vmatprep.subr.mxu0 0.0
        %2636 = vmatpush1.xpose.msra.mxu0 0.0
        %2637 = vmatprep.subr.mxu0 0.0
        %2638 = vmatpush1.xpose.msra.mxu0 0.0
        %2639 = vmatprep.subr.mxu0 0.0
        %2640 = vmatpush1.xpose.msra.mxu0 0.0
        %2641 = vmatprep.subr.mxu0 0.0
        %2642 = vmatpush1.xpose.msra.mxu0 0.0
        %2643 = vmatprep.subr.mxu0 0.0
        %2644 = vmatpush1.xpose.msra.mxu0 0.0
        %2645 = vmatprep.subr.mxu0 0.0
        %2646 = vmatpush1.xpose.msra.mxu0 0.0
        %2647 = vmatprep.subr.mxu0 0.0
        %2648 = vmatpush1.xpose.msra.mxu0 0.0
        %2649 = vmatprep.subr.mxu0 0.0
        %2650 = vmatpush1.xpose.msra.mxu0 0.0
        %2651 = vmatprep.mubr.f32.mxu0 0.0
        %2652 = vmatmul.mubr.f32.gmra.mrb[0].mxu0 %v2583
        %v2653 = vpop.f32.mrb[0].mxu0
        %v2654 = vadd.f32 %v811, %v2653
        %v2655 = vpop.f32.mrb[0].mxu0
        %2656 = vdwg.mxu0
        %v2657 = vsel %vm816, %v2423, -inf
        %2658 = vmax.xlane.f32.xlu0 %v2657
        %v2659 = vpop.xlane.xlu0 %2658
        %v2660 = vsel %vm816, %v2500, -inf
        %2661 = vmax.xlane.f32.xlu0 %v2660
        %v2662 = vpop.xlane.xlu0 %2661
        %v2663 = vsel %vm816, %v2577, -inf
        %2664 = vmax.xlane.f32.xlu0 %v2663
        %v2665 = vpop.xlane.xlu0 %2664
        %v2666 = vsel %vm816, %v2654, -inf
        %2667 = vmax.xlane.f32.xlu0 %v2666
        %v2668 = vpop.xlane.xlu0 %2667
        %v2669 = vsub.f32 %v2423, %v2659
        %v2670 = vsub.f32 %v2500, %v2662
        %v2671 = vsub.f32 %v2577, %v2665
        %v2672 = vsub.f32 %v2654, %v2668
        %v2673 = vmul.f32 %v2669, 1.442695
        %v2674 = vpow.pop %v2673
        %v2675 = vmul.f32 %v2670, 1.442695
        %v2676 = vpow.pop %v2675
        %v2677 = vmul.f32 %v2671, 1.442695
        %v2678 = vpow.pop %v2677
        %v2679 = vmul.f32 %v2672, 1.442695
        %v2680 = vpow.pop %v2679
        %v2681 = vsel %vm816, %v2674, 0.0
        %2682 = vadd.xlane.f32.xlu0 %v2681
        %v2683 = vpop.xlane.xlu0 %2682
        %v2684 = vsel %vm816, %v2676, 0.0
        %2685 = vadd.xlane.f32.xlu0 %v2684
        %v2686 = vpop.xlane.xlu0 %2685
        %v2687 = vsel %vm816, %v2678, 0.0
        %2688 = vadd.xlane.f32.xlu0 %v2687
        %v2689 = vpop.xlane.xlu0 %2688
        %v2690 = vsel %vm816, %v2680, 0.0
        %2691 = vadd.xlane.f32.xlu0 %v2690
        %v2692 = vpop.xlane.xlu0 %2691
        %v2693 = vrcp.pop %v2683
        %v2694 = vmul.f32 %v2674, %v2693
        %v2695 = vrcp.pop %v2686
        %v2696 = vmul.f32 %v2676, %v2695
        %v2697 = vrcp.pop %v2689
        %v2698 = vmul.f32 %v2678, %v2697
        %v2699 = vrcp.pop %v2692
        %v2700 = vmul.f32 %v2680, %v2699
        %2701 = vrot.lane.b32.xlu0 %v2136, 112
        %v2702 = vpop.permute.xlu0 %2701
        %v2705 = vsel %vm816, %v2694, 0
        %2707 = vmatprep.subr.mxu0 0.0
        %2708 = vmatpush1.msra.mxu0 %v2702
        %2709 = vmatprep.subr.mxu0 0.0
        %2710 = vmatpush1.msra.mxu0 0.0
        %2711 = vmatprep.subr.mxu0 0.0
        %2712 = vmatpush1.msra.mxu0 0.0
        %2713 = vmatprep.subr.mxu0 0.0
        %2714 = vmatpush1.msra.mxu0 0.0
        %2715 = vmatprep.subr.mxu0 0.0
        %2716 = vmatpush1.msra.mxu0 0.0
        %2717 = vmatprep.subr.mxu0 0.0
        %2718 = vmatpush1.msra.mxu0 0.0
        %2719 = vmatprep.subr.mxu0 0.0
        %2720 = vmatpush1.msra.mxu0 0.0
        %2721 = vmatprep.subr.mxu0 0.0
        %2722 = vmatpush1.msra.mxu0 0.0
        %2723 = vmatprep.subr.mxu0 0.0
        %2724 = vmatpush1.msra.mxu0 0.0
        %2725 = vmatprep.subr.mxu0 0.0
        %2726 = vmatpush1.msra.mxu0 0.0
        %2727 = vmatprep.subr.mxu0 0.0
        %2728 = vmatpush1.msra.mxu0 0.0
        %2729 = vmatprep.subr.mxu0 0.0
        %2730 = vmatpush1.msra.mxu0 0.0
        %2731 = vmatprep.subr.mxu0 0.0
        %2732 = vmatpush1.msra.mxu0 0.0
        %2733 = vmatprep.subr.mxu0 0.0
        %2734 = vmatpush1.msra.mxu0 0.0
        %2735 = vmatprep.subr.mxu0 0.0
        %2736 = vmatpush1.msra.mxu0 0.0
        %2737 = vmatprep.subr.mxu0 0.0
        %2738 = vmatpush1.msra.mxu0 0.0
        %2739 = vmatprep.subr.mxu0 0.0
        %2740 = vmatpush1.msra.mxu0 0.0
        %2741 = vmatprep.subr.mxu0 0.0
        %2742 = vmatpush1.msra.mxu0 0.0
        %2743 = vmatprep.subr.mxu0 0.0
        %2744 = vmatpush1.msra.mxu0 0.0
        %2745 = vmatprep.subr.mxu0 0.0
        %2746 = vmatpush1.msra.mxu0 0.0
        %2747 = vmatprep.subr.mxu0 0.0
        %2748 = vmatpush1.msra.mxu0 0.0
        %2749 = vmatprep.subr.mxu0 0.0
        %2750 = vmatpush1.msra.mxu0 0.0
        %2751 = vmatprep.subr.mxu0 0.0
        %2752 = vmatpush1.msra.mxu0 0.0
        %2753 = vmatprep.subr.mxu0 0.0
        %2754 = vmatpush1.msra.mxu0 0.0
        %2755 = vmatprep.subr.mxu0 0.0
        %2756 = vmatpush1.msra.mxu0 0.0
        %2757 = vmatprep.subr.mxu0 0.0
        %2758 = vmatpush1.msra.mxu0 0.0
        %2759 = vmatprep.subr.mxu0 0.0
        %2760 = vmatpush1.msra.mxu0 0.0
        %2761 = vmatprep.subr.mxu0 0.0
        %2762 = vmatpush1.msra.mxu0 0.0
        %2763 = vmatprep.subr.mxu0 0.0
        %2764 = vmatpush1.msra.mxu0 0.0
        %2765 = vmatprep.subr.mxu0 0.0
        %2766 = vmatpush1.msra.mxu0 0.0
        %2767 = vmatprep.subr.mxu0 0.0
        %2768 = vmatpush1.msra.mxu0 0.0
        %2769 = vmatprep.subr.mxu0 0.0
        %2770 = vmatpush1.msra.mxu0 0.0
        %2771 = vmatprep.mubr.f32.mxu0 0.0
        %2772 = vmatmul.mubr.f32.gmra.mrb[0].mxu0 %v2705
        %v2773 = vpop.f32.mrb[0].mxu0
        %v2774 = vadd.f32 0.0, %v2773
        %v2775 = vpop.f32.mrb[0].mxu0
        %2776 = vdwg.mxu0
        %2777 = vrot.lane.b32.xlu0 %v2206, 112
        %v2778 = vpop.permute.xlu0 %2777
        %v2781 = vsel %vm816, %v2696, 0
        %2783 = vmatprep.subr.mxu0 0.0
        %2784 = vmatpush1.msra.mxu0 %v2778
        %2785 = vmatprep.subr.mxu0 0.0
        %2786 = vmatpush1.msra.mxu0 0.0
        %2787 = vmatprep.subr.mxu0 0.0
        %2788 = vmatpush1.msra.mxu0 0.0
        %2789 = vmatprep.subr.mxu0 0.0
        %2790 = vmatpush1.msra.mxu0 0.0
        %2791 = vmatprep.subr.mxu0 0.0
        %2792 = vmatpush1.msra.mxu0 0.0
        %2793 = vmatprep.subr.mxu0 0.0
        %2794 = vmatpush1.msra.mxu0 0.0
        %2795 = vmatprep.subr.mxu0 0.0
        %2796 = vmatpush1.msra.mxu0 0.0
        %2797 = vmatprep.subr.mxu0 0.0
        %2798 = vmatpush1.msra.mxu0 0.0
        %2799 = vmatprep.subr.mxu0 0.0
        %2800 = vmatpush1.msra.mxu0 0.0
        %2801 = vmatprep.subr.mxu0 0.0
        %2802 = vmatpush1.msra.mxu0 0.0
        %2803 = vmatprep.subr.mxu0 0.0
        %2804 = vmatpush1.msra.mxu0 0.0
        %2805 = vmatprep.subr.mxu0 0.0
        %2806 = vmatpush1.msra.mxu0 0.0
        %2807 = vmatprep.subr.mxu0 0.0
        %2808 = vmatpush1.msra.mxu0 0.0
        %2809 = vmatprep.subr.mxu0 0.0
        %2810 = vmatpush1.msra.mxu0 0.0
        %2811 = vmatprep.subr.mxu0 0.0
        %2812 = vmatpush1.msra.mxu0 0.0
        %2813 = vmatprep.subr.mxu0 0.0
        %2814 = vmatpush1.msra.mxu0 0.0
        %2815 = vmatprep.subr.mxu0 0.0
        %2816 = vmatpush1.msra.mxu0 0.0
        %2817 = vmatprep.subr.mxu0 0.0
        %2818 = vmatpush1.msra.mxu0 0.0
        %2819 = vmatprep.subr.mxu0 0.0
        %2820 = vmatpush1.msra.mxu0 0.0
        %2821 = vmatprep.subr.mxu0 0.0
        %2822 = vmatpush1.msra.mxu0 0.0
        %2823 = vmatprep.subr.mxu0 0.0
        %2824 = vmatpush1.msra.mxu0 0.0
        %2825 = vmatprep.subr.mxu0 0.0
        %2826 = vmatpush1.msra.mxu0 0.0
        %2827 = vmatprep.subr.mxu0 0.0
        %2828 = vmatpush1.msra.mxu0 0.0
        %2829 = vmatprep.subr.mxu0 0.0
        %2830 = vmatpush1.msra.mxu0 0.0
        %2831 = vmatprep.subr.mxu0 0.0
        %2832 = vmatpush1.msra.mxu0 0.0
        %2833 = vmatprep.subr.mxu0 0.0
        %2834 = vmatpush1.msra.mxu0 0.0
        %2835 = vmatprep.subr.mxu0 0.0
        %2836 = vmatpush1.msra.mxu0 0.0
        %2837 = vmatprep.subr.mxu0 0.0
        %2838 = vmatpush1.msra.mxu0 0.0
        %2839 = vmatprep.subr.mxu0 0.0
        %2840 = vmatpush1.msra.mxu0 0.0
        %2841 = vmatprep.subr.mxu0 0.0
        %2842 = vmatpush1.msra.mxu0 0.0
        %2843 = vmatprep.subr.mxu0 0.0
        %2844 = vmatpush1.msra.mxu0 0.0
        %2845 = vmatprep.subr.mxu0 0.0
        %2846 = vmatpush1.msra.mxu0 0.0
        %2847 = vmatprep.mubr.f32.mxu0 0.0
        %2848 = vmatmul.mubr.f32.gmra.mrb[0].mxu0 %v2781
        %v2849 = vpop.f32.mrb[0].mxu0
        %v2850 = vadd.f32 0.0, %v2849
        %v2851 = vpop.f32.mrb[0].mxu0
        %2852 = vdwg.mxu0
        %2853 = vrot.lane.b32.xlu0 %v2276, 112
        %v2854 = vpop.permute.xlu0 %2853
        %v2857 = vsel %vm816, %v2698, 0
        %2859 = vmatprep.subr.mxu0 0.0
        %2860 = vmatpush1.msra.mxu0 %v2854
        %2861 = vmatprep.subr.mxu0 0.0
        %2862 = vmatpush1.msra.mxu0 0.0
        %2863 = vmatprep.subr.mxu0 0.0
        %2864 = vmatpush1.msra.mxu0 0.0
        %2865 = vmatprep.subr.mxu0 0.0
        %2866 = vmatpush1.msra.mxu0 0.0
        %2867 = vmatprep.subr.mxu0 0.0
        %2868 = vmatpush1.msra.mxu0 0.0
        %2869 = vmatprep.subr.mxu0 0.0
        %2870 = vmatpush1.msra.mxu0 0.0
        %2871 = vmatprep.subr.mxu0 0.0
        %2872 = vmatpush1.msra.mxu0 0.0
        %2873 = vmatprep.subr.mxu0 0.0
        %2874 = vmatpush1.msra.mxu0 0.0
        %2875 = vmatprep.subr.mxu0 0.0
        %2876 = vmatpush1.msra.mxu0 0.0
        %2877 = vmatprep.subr.mxu0 0.0
        %2878 = vmatpush1.msra.mxu0 0.0
        %2879 = vmatprep.subr.mxu0 0.0
        %2880 = vmatpush1.msra.mxu0 0.0
        %2881 = vmatprep.subr.mxu0 0.0
        %2882 = vmatpush1.msra.mxu0 0.0
        %2883 = vmatprep.subr.mxu0 0.0
        %2884 = vmatpush1.msra.mxu0 0.0
        %2885 = vmatprep.subr.mxu0 0.0
        %2886 = vmatpush1.msra.mxu0 0.0
        %2887 = vmatprep.subr.mxu0 0.0
        %2888 = vmatpush1.msra.mxu0 0.0
        %2889 = vmatprep.subr.mxu0 0.0
        %2890 = vmatpush1.msra.mxu0 0.0
        %2891 = vmatprep.subr.mxu0 0.0
        %2892 = vmatpush1.msra.mxu0 0.0
        %2893 = vmatprep.subr.mxu0 0.0
        %2894 = vmatpush1.msra.mxu0 0.0
        %2895 = vmatprep.subr.mxu0 0.0
        %2896 = vmatpush1.msra.mxu0 0.0
        %2897 = vmatprep.subr.mxu0 0.0
        %2898 = vmatpush1.msra.mxu0 0.0
        %2899 = vmatprep.subr.mxu0 0.0
        %2900 = vmatpush1.msra.mxu0 0.0
        %2901 = vmatprep.subr.mxu0 0.0
        %2902 = vmatpush1.msra.mxu0 0.0
        %2903 = vmatprep.subr.mxu0 0.0
        %2904 = vmatpush1.msra.mxu0 0.0
        %2905 = vmatprep.subr.mxu0 0.0
        %2906 = vmatpush1.msra.mxu0 0.0
        %2907 = vmatprep.subr.mxu0 0.0
        %2908 = vmatpush1.msra.mxu0 0.0
        %2909 = vmatprep.subr.mxu0 0.0
        %2910 = vmatpush1.msra.mxu0 0.0
        %2911 = vmatprep.subr.mxu0 0.0
        %2912 = vmatpush1.msra.mxu0 0.0
        %2913 = vmatprep.subr.mxu0 0.0
        %2914 = vmatpush1.msra.mxu0 0.0
        %2915 = vmatprep.subr.mxu0 0.0
        %2916 = vmatpush1.msra.mxu0 0.0
        %2917 = vmatprep.subr.mxu0 0.0
        %2918 = vmatpush1.msra.mxu0 0.0
        %2919 = vmatprep.subr.mxu0 0.0
        %2920 = vmatpush1.msra.mxu0 0.0
        %2921 = vmatprep.subr.mxu0 0.0
        %2922 = vmatpush1.msra.mxu0 0.0
        %2923 = vmatprep.mubr.f32.mxu0 0.0
        %2924 = vmatmul.mubr.f32.gmra.mrb[0].mxu0 %v2857
        %v2925 = vpop.f32.mrb[0].mxu0
        %v2926 = vadd.f32 0.0, %v2925
        %v2927 = vpop.f32.mrb[0].mxu0
        %2928 = vdwg.mxu0
        %2929 = vrot.lane.b32.xlu0 %v2346, 112
        %v2930 = vpop.permute.xlu0 %2929
        %v2933 = vsel %vm816, %v2700, 0
        %2935 = vmatprep.subr.mxu0 0.0
        %2936 = vmatpush1.msra.mxu0 %v2930
        %2937 = vmatprep.subr.mxu0 0.0
        %2938 = vmatpush1.msra.mxu0 0.0
        %2939 = vmatprep.subr.mxu0 0.0
        %2940 = vmatpush1.msra.mxu0 0.0
        %2941 = vmatprep.subr.mxu0 0.0
        %2942 = vmatpush1.msra.mxu0 0.0
        %2943 = vmatprep.subr.mxu0 0.0
        %2944 = vmatpush1.msra.mxu0 0.0
        %2945 = vmatprep.subr.mxu0 0.0
        %2946 = vmatpush1.msra.mxu0 0.0
        %2947 = vmatprep.subr.mxu0 0.0
        %2948 = vmatpush1.msra.mxu0 0.0
        %2949 = vmatprep.subr.mxu0 0.0
        %2950 = vmatpush1.msra.mxu0 0.0
        %2951 = vmatprep.subr.mxu0 0.0
        %2952 = vmatpush1.msra.mxu0 0.0
        %2953 = vmatprep.subr.mxu0 0.0
        %2954 = vmatpush1.msra.mxu0 0.0
        %2955 = vmatprep.subr.mxu0 0.0
        %2956 = vmatpush1.msra.mxu0 0.0
        %2957 = vmatprep.subr.mxu0 0.0
        %2958 = vmatpush1.msra.mxu0 0.0
        %2959 = vmatprep.subr.mxu0 0.0
        %2960 = vmatpush1.msra.mxu0 0.0
        %2961 = vmatprep.subr.mxu0 0.0
        %2962 = vmatpush1.msra.mxu0 0.0
        %2963 = vmatprep.subr.mxu0 0.0
        %2964 = vmatpush1.msra.mxu0 0.0
        %2965 = vmatprep.subr.mxu0 0.0
        %2966 = vmatpush1.msra.mxu0 0.0
        %2967 = vmatprep.subr.mxu0 0.0
        %2968 = vmatpush1.msra.mxu0 0.0
        %2969 = vmatprep.subr.mxu0 0.0
        %2970 = vmatpush1.msra.mxu0 0.0
        %2971 = vmatprep.subr.mxu0 0.0
        %2972 = vmatpush1.msra.mxu0 0.0
        %2973 = vmatprep.subr.mxu0 0.0
        %2974 = vmatpush1.msra.mxu0 0.0
        %2975 = vmatprep.subr.mxu0 0.0
        %2976 = vmatpush1.msra.mxu0 0.0
        %2977 = vmatprep.subr.mxu0 0.0
        %2978 = vmatpush1.msra.mxu0 0.0
        %2979 = vmatprep.subr.mxu0 0.0
        %2980 = vmatpush1.msra.mxu0 0.0
        %2981 = vmatprep.subr.mxu0 0.0
        %2982 = vmatpush1.msra.mxu0 0.0
        %2983 = vmatprep.subr.mxu0 0.0
        %2984 = vmatpush1.msra.mxu0 0.0
        %2985 = vmatprep.subr.mxu0 0.0
        %2986 = vmatpush1.msra.mxu0 0.0
        %2987 = vmatprep.subr.mxu0 0.0
        %2988 = vmatpush1.msra.mxu0 0.0
        %2989 = vmatprep.subr.mxu0 0.0
        %2990 = vmatpush1.msra.mxu0 0.0
        %2991 = vmatprep.subr.mxu0 0.0
        %2992 = vmatpush1.msra.mxu0 0.0
        %2993 = vmatprep.subr.mxu0 0.0
        %2994 = vmatpush1.msra.mxu0 0.0
        %2995 = vmatprep.subr.mxu0 0.0
        %2996 = vmatpush1.msra.mxu0 0.0
        %2997 = vmatprep.subr.mxu0 0.0
        %2998 = vmatpush1.msra.mxu0 0.0
        %2999 = vmatprep.mubr.f32.mxu0 0.0
        %3000 = vmatmul.mubr.f32.gmra.mrb[0].mxu0 %v2933
        %v3001 = vpop.f32.mrb[0].mxu0
        %v3002 = vadd.f32 0.0, %v3001
        %v3003 = vpop.f32.mrb[0].mxu0
        %3004 = vdwg.mxu0
        %s3005 = scalar_lea.vmem %s4, 32
        %v3006 = vld [vmem:[%s3005] sm:$0xff]
        %v3007 = vld [vmem:[%s3005 + $0x8] sm:$0xff]
        %v3008 = vld [vmem:[%s3005 + $0x10] sm:$0xff]
        %v3009 = vld [vmem:[%s3005 + $0x18] sm:$0xff]
        %v3011 = vsel %vm816, %v2774, 0
        %3013 = vmatprep.subr.mxu0 0.0
        %3014 = vmatpush1.msra.mxu0 %v3006
        %3015 = vmatprep.subr.mxu0 0.0
        %3016 = vmatpush1.msra.mxu0 0.0
        %3017 = vmatprep.subr.mxu0 0.0
        %3018 = vmatpush1.msra.mxu0 0.0
        %3019 = vmatprep.subr.mxu0 0.0
        %3020 = vmatpush1.msra.mxu0 0.0
        %3021 = vmatprep.subr.mxu0 0.0
        %3022 = vmatpush1.msra.mxu0 0.0
        %3023 = vmatprep.subr.mxu0 0.0
        %3024 = vmatpush1.msra.mxu0 0.0
        %3025 = vmatprep.subr.mxu0 0.0
        %3026 = vmatpush1.msra.mxu0 0.0
        %3027 = vmatprep.subr.mxu0 0.0
        %3028 = vmatpush1.msra.mxu0 0.0
        %3029 = vmatprep.subr.mxu0 0.0
        %3030 = vmatpush1.msra.mxu0 0.0
        %3031 = vmatprep.subr.mxu0 0.0
        %3032 = vmatpush1.msra.mxu0 0.0
        %3033 = vmatprep.subr.mxu0 0.0
        %3034 = vmatpush1.msra.mxu0 0.0
        %3035 = vmatprep.subr.mxu0 0.0
        %3036 = vmatpush1.msra.mxu0 0.0
        %3037 = vmatprep.subr.mxu0 0.0
        %3038 = vmatpush1.msra.mxu0 0.0
        %3039 = vmatprep.subr.mxu0 0.0
        %3040 = vmatpush1.msra.mxu0 0.0
        %3041 = vmatprep.subr.mxu0 0.0
        %3042 = vmatpush1.msra.mxu0 0.0
        %3043 = vmatprep.subr.mxu0 0.0
        %3044 = vmatpush1.msra.mxu0 0.0
        %3045 = vmatprep.subr.mxu0 0.0
        %3046 = vmatpush1.msra.mxu0 0.0
        %3047 = vmatprep.subr.mxu0 0.0
        %3048 = vmatpush1.msra.mxu0 0.0
        %3049 = vmatprep.subr.mxu0 0.0
        %3050 = vmatpush1.msra.mxu0 0.0
        %3051 = vmatprep.subr.mxu0 0.0
        %3052 = vmatpush1.msra.mxu0 0.0
        %3053 = vmatprep.subr.mxu0 0.0
        %3054 = vmatpush1.msra.mxu0 0.0
        %3055 = vmatprep.subr.mxu0 0.0
        %3056 = vmatpush1.msra.mxu0 0.0
        %3057 = vmatprep.subr.mxu0 0.0
        %3058 = vmatpush1.msra.mxu0 0.0
        %3059 = vmatprep.subr.mxu0 0.0
        %3060 = vmatpush1.msra.mxu0 0.0
        %3061 = vmatprep.subr.mxu0 0.0
        %3062 = vmatpush1.msra.mxu0 0.0
        %3063 = vmatprep.subr.mxu0 0.0
        %3064 = vmatpush1.msra.mxu0 0.0
        %3065 = vmatprep.subr.mxu0 0.0
        %3066 = vmatpush1.msra.mxu0 0.0
        %3067 = vmatprep.subr.mxu0 0.0
        %3068 = vmatpush1.msra.mxu0 0.0
        %3069 = vmatprep.subr.mxu0 0.0
        %3070 = vmatpush1.msra.mxu0 0.0
        %3071 = vmatprep.subr.mxu0 0.0
        %3072 = vmatpush1.msra.mxu0 0.0
        %3073 = vmatprep.subr.mxu0 0.0
        %3074 = vmatpush1.msra.mxu0 0.0
        %3075 = vmatprep.subr.mxu0 0.0
        %3076 = vmatpush1.msra.mxu0 0.0
        %3077 = vmatprep.mubr.f32.mxu0 0.0
        %3078 = vmatmul.mubr.f32.gmra.mrb[0].mxu0 %v3011
        %v3079 = vpop.f32.mrb[0].mxu0
        %v3080 = vadd.f32 0.0, %v3079
        %v3081 = vpop.f32.mrb[0].mxu0
        %3082 = vdwg.mxu0
        %v3084 = vsel %vm816, %v2850, 0
        %3086 = vmatprep.subr.mxu0 0.0
        %3087 = vmatpush1.msra.mxu0 %v3007
        %3088 = vmatprep.subr.mxu0 0.0
        %3089 = vmatpush1.msra.mxu0 0.0
        %3090 = vmatprep.subr.mxu0 0.0
        %3091 = vmatpush1.msra.mxu0 0.0
        %3092 = vmatprep.subr.mxu0 0.0
        %3093 = vmatpush1.msra.mxu0 0.0
        %3094 = vmatprep.subr.mxu0 0.0
        %3095 = vmatpush1.msra.mxu0 0.0
        %3096 = vmatprep.subr.mxu0 0.0
        %3097 = vmatpush1.msra.mxu0 0.0
        %3098 = vmatprep.subr.mxu0 0.0
        %3099 = vmatpush1.msra.mxu0 0.0
        %3100 = vmatprep.subr.mxu0 0.0
        %3101 = vmatpush1.msra.mxu0 0.0
        %3102 = vmatprep.subr.mxu0 0.0
        %3103 = vmatpush1.msra.mxu0 0.0
        %3104 = vmatprep.subr.mxu0 0.0
        %3105 = vmatpush1.msra.mxu0 0.0
        %3106 = vmatprep.subr.mxu0 0.0
        %3107 = vmatpush1.msra.mxu0 0.0
        %3108 = vmatprep.subr.mxu0 0.0
        %3109 = vmatpush1.msra.mxu0 0.0
        %3110 = vmatprep.subr.mxu0 0.0
        %3111 = vmatpush1.msra.mxu0 0.0
        %3112 = vmatprep.subr.mxu0 0.0
        %3113 = vmatpush1.msra.mxu0 0.0
        %3114 = vmatprep.subr.mxu0 0.0
        %3115 = vmatpush1.msra.mxu0 0.0
        %3116 = vmatprep.subr.mxu0 0.0
        %3117 = vmatpush1.msra.mxu0 0.0
        %3118 = vmatprep.subr.mxu0 0.0
        %3119 = vmatpush1.msra.mxu0 0.0
        %3120 = vmatprep.subr.mxu0 0.0
        %3121 = vmatpush1.msra.mxu0 0.0
        %3122 = vmatprep.subr.mxu0 0.0
        %3123 = vmatpush1.msra.mxu0 0.0
        %3124 = vmatprep.subr.mxu0 0.0
        %3125 = vmatpush1.msra.mxu0 0.0
        %3126 = vmatprep.subr.mxu0 0.0
        %3127 = vmatpush1.msra.mxu0 0.0
        %3128 = vmatprep.subr.mxu0 0.0
        %3129 = vmatpush1.msra.mxu0 0.0
        %3130 = vmatprep.subr.mxu0 0.0
        %3131 = vmatpush1.msra.mxu0 0.0
        %3132 = vmatprep.subr.mxu0 0.0
        %3133 = vmatpush1.msra.mxu0 0.0
        %3134 = vmatprep.subr.mxu0 0.0
        %3135 = vmatpush1.msra.mxu0 0.0
        %3136 = vmatprep.subr.mxu0 0.0
        %3137 = vmatpush1.msra.mxu0 0.0
        %3138 = vmatprep.subr.mxu0 0.0
        %3139 = vmatpush1.msra.mxu0 0.0
        %3140 = vmatprep.subr.mxu0 0.0
        %3141 = vmatpush1.msra.mxu0 0.0
        %3142 = vmatprep.subr.mxu0 0.0
        %3143 = vmatpush1.msra.mxu0 0.0
        %3144 = vmatprep.subr.mxu0 0.0
        %3145 = vmatpush1.msra.mxu0 0.0
        %3146 = vmatprep.subr.mxu0 0.0
        %3147 = vmatpush1.msra.mxu0 0.0
        %3148 = vmatprep.subr.mxu0 0.0
        %3149 = vmatpush1.msra.mxu0 0.0
        %3150 = vmatprep.mubr.f32.mxu0 0.0
        %3151 = vmatmul.mubr.f32.gmra.mrb[0].mxu0 %v3084
        %v3152 = vpop.f32.mrb[0].mxu0
        %v3153 = vadd.f32 0.0, %v3152
        %v3154 = vpop.f32.mrb[0].mxu0
        %3155 = vdwg.mxu0
        %v3157 = vsel %vm816, %v2926, 0
        %3159 = vmatprep.subr.mxu0 0.0
        %3160 = vmatpush1.msra.mxu0 %v3008
        %3161 = vmatprep.subr.mxu0 0.0
        %3162 = vmatpush1.msra.mxu0 0.0
        %3163 = vmatprep.subr.mxu0 0.0
        %3164 = vmatpush1.msra.mxu0 0.0
        %3165 = vmatprep.subr.mxu0 0.0
        %3166 = vmatpush1.msra.mxu0 0.0
        %3167 = vmatprep.subr.mxu0 0.0
        %3168 = vmatpush1.msra.mxu0 0.0
        %3169 = vmatprep.subr.mxu0 0.0
        %3170 = vmatpush1.msra.mxu0 0.0
        %3171 = vmatprep.subr.mxu0 0.0
        %3172 = vmatpush1.msra.mxu0 0.0
        %3173 = vmatprep.subr.mxu0 0.0
        %3174 = vmatpush1.msra.mxu0 0.0
        %3175 = vmatprep.subr.mxu0 0.0
        %3176 = vmatpush1.msra.mxu0 0.0
        %3177 = vmatprep.subr.mxu0 0.0
        %3178 = vmatpush1.msra.mxu0 0.0
        %3179 = vmatprep.subr.mxu0 0.0
        %3180 = vmatpush1.msra.mxu0 0.0
        %3181 = vmatprep.subr.mxu0 0.0
        %3182 = vmatpush1.msra.mxu0 0.0
        %3183 = vmatprep.subr.mxu0 0.0
        %3184 = vmatpush1.msra.mxu0 0.0
        %3185 = vmatprep.subr.mxu0 0.0
        %3186 = vmatpush1.msra.mxu0 0.0
        %3187 = vmatprep.subr.mxu0 0.0
        %3188 = vmatpush1.msra.mxu0 0.0
        %3189 = vmatprep.subr.mxu0 0.0
        %3190 = vmatpush1.msra.mxu0 0.0
        %3191 = vmatprep.subr.mxu0 0.0
        %3192 = vmatpush1.msra.mxu0 0.0
        %3193 = vmatprep.subr.mxu0 0.0
        %3194 = vmatpush1.msra.mxu0 0.0
        %3195 = vmatprep.subr.mxu0 0.0
        %3196 = vmatpush1.msra.mxu0 0.0
        %3197 = vmatprep.subr.mxu0 0.0
        %3198 = vmatpush1.msra.mxu0 0.0
        %3199 = vmatprep.subr.mxu0 0.0
        %3200 = vmatpush1.msra.mxu0 0.0
        %3201 = vmatprep.subr.mxu0 0.0
        %3202 = vmatpush1.msra.mxu0 0.0
        %3203 = vmatprep.subr.mxu0 0.0
        %3204 = vmatpush1.msra.mxu0 0.0
        %3205 = vmatprep.subr.mxu0 0.0
        %3206 = vmatpush1.msra.mxu0 0.0
        %3207 = vmatprep.subr.mxu0 0.0
        %3208 = vmatpush1.msra.mxu0 0.0
        %3209 = vmatprep.subr.mxu0 0.0
        %3210 = vmatpush1.msra.mxu0 0.0
        %3211 = vmatprep.subr.mxu0 0.0
        %3212 = vmatpush1.msra.mxu0 0.0
        %3213 = vmatprep.subr.mxu0 0.0
        %3214 = vmatpush1.msra.mxu0 0.0
        %3215 = vmatprep.subr.mxu0 0.0
        %3216 = vmatpush1.msra.mxu0 0.0
        %3217 = vmatprep.subr.mxu0 0.0
        %3218 = vmatpush1.msra.mxu0 0.0
        %3219 = vmatprep.subr.mxu0 0.0
        %3220 = vmatpush1.msra.mxu0 0.0
        %3221 = vmatprep.subr.mxu0 0.0
        %3222 = vmatpush1.msra.mxu0 0.0
        %3223 = vmatprep.mubr.f32.mxu0 0.0
        %3224 = vmatmul.mubr.f32.gmra.mrb[0].mxu0 %v3157
        %v3225 = vpop.f32.mrb[0].mxu0
        %v3226 = vadd.f32 0.0, %v3225
        %v3227 = vpop.f32.mrb[0].mxu0
        %3228 = vdwg.mxu0
        %v3230 = vsel %vm816, %v3002, 0
        %3232 = vmatprep.subr.mxu0 0.0
        %3233 = vmatpush1.msra.mxu0 %v3009
        %3234 = vmatprep.subr.mxu0 0.0
        %3235 = vmatpush1.msra.mxu0 0.0
        %3236 = vmatprep.subr.mxu0 0.0
        %3237 = vmatpush1.msra.mxu0 0.0
        %3238 = vmatprep.subr.mxu0 0.0
        %3239 = vmatpush1.msra.mxu0 0.0
        %3240 = vmatprep.subr.mxu0 0.0
        %3241 = vmatpush1.msra.mxu0 0.0
        %3242 = vmatprep.subr.mxu0 0.0
        %3243 = vmatpush1.msra.mxu0 0.0
        %3244 = vmatprep.subr.mxu0 0.0
        %3245 = vmatpush1.msra.mxu0 0.0
        %3246 = vmatprep.subr.mxu0 0.0
        %3247 = vmatpush1.msra.mxu0 0.0
        %3248 = vmatprep.subr.mxu0 0.0
        %3249 = vmatpush1.msra.mxu0 0.0
        %3250 = vmatprep.subr.mxu0 0.0
        %3251 = vmatpush1.msra.mxu0 0.0
        %3252 = vmatprep.subr.mxu0 0.0
        %3253 = vmatpush1.msra.mxu0 0.0
        %3254 = vmatprep.subr.mxu0 0.0
        %3255 = vmatpush1.msra.mxu0 0.0
        %3256 = vmatprep.subr.mxu0 0.0
        %3257 = vmatpush1.msra.mxu0 0.0
        %3258 = vmatprep.subr.mxu0 0.0
        %3259 = vmatpush1.msra.mxu0 0.0
        %3260 = vmatprep.subr.mxu0 0.0
        %3261 = vmatpush1.msra.mxu0 0.0
        %3262 = vmatprep.subr.mxu0 0.0
        %3263 = vmatpush1.msra.mxu0 0.0
        %3264 = vmatprep.subr.mxu0 0.0
        %3265 = vmatpush1.msra.mxu0 0.0
        %3266 = vmatprep.subr.mxu0 0.0
        %3267 = vmatpush1.msra.mxu0 0.0
        %3268 = vmatprep.subr.mxu0 0.0
        %3269 = vmatpush1.msra.mxu0 0.0
        %3270 = vmatprep.subr.mxu0 0.0
        %3271 = vmatpush1.msra.mxu0 0.0
        %3272 = vmatprep.subr.mxu0 0.0
        %3273 = vmatpush1.msra.mxu0 0.0
        %3274 = vmatprep.subr.mxu0 0.0
        %3275 = vmatpush1.msra.mxu0 0.0
        %3276 = vmatprep.subr.mxu0 0.0
        %3277 = vmatpush1.msra.mxu0 0.0
        %3278 = vmatprep.subr.mxu0 0.0
        %3279 = vmatpush1.msra.mxu0 0.0
        %3280 = vmatprep.subr.mxu0 0.0
        %3281 = vmatpush1.msra.mxu0 0.0
        %3282 = vmatprep.subr.mxu0 0.0
        %3283 = vmatpush1.msra.mxu0 0.0
        %3284 = vmatprep.subr.mxu0 0.0
        %3285 = vmatpush1.msra.mxu0 0.0
        %3286 = vmatprep.subr.mxu0 0.0
        %3287 = vmatpush1.msra.mxu0 0.0
        %3288 = vmatprep.subr.mxu0 0.0
        %3289 = vmatpush1.msra.mxu0 0.0
        %3290 = vmatprep.subr.mxu0 0.0
        %3291 = vmatpush1.msra.mxu0 0.0
        %3292 = vmatprep.subr.mxu0 0.0
        %3293 = vmatpush1.msra.mxu0 0.0
        %3294 = vmatprep.subr.mxu0 0.0
        %3295 = vmatpush1.msra.mxu0 0.0
        %3296 = vmatprep.mubr.f32.mxu0 0.0
        %3297 = vmatmul.mubr.f32.gmra.mrb[0].mxu0 %v3230
        %v3298 = vpop.f32.mrb[0].mxu0
        %v3299 = vadd.f32 0.0, %v3298
        %v3300 = vpop.f32.mrb[0].mxu0
        %3301 = vdwg.mxu0
        %v3302 = vsel %vm523, %v3080, 0.0
        %v3303 = vsel %vm523, %v3153, 0.0
        %v3304 = vadd.f32 %v3302, %v3303
        %v3305 = vsel %vm523, %v3226, 0.0
        %v3306 = vadd.f32 %v3304, %v3305
        %v3307 = vsel %vm523, %v3299, 0.0
        %v3308 = vadd.f32 %v3306, %v3307
        %s3309 = scalar_lea.vmem %s5, 1
        %v3310 = vld [vmem:[%s3309] sm:$0x1]
        %v3312 = vlaneseq
        %v3313 = vshrl.u32 %v3312, 7
        %v3314 = vsub.s32 0, %v3313
        %v3315 = vrot.slane %v3310, %v3314
        %v3317 = vadd.f32 %v3308, %v3315
        %v3318 = vadd.f32 %v3317, %v2019
        %s3319 = scalar_lea.vmem %s6, 1
        %v3320 = vld [vmem:[%s3319] sm:$0x1]
        %s3321 = scalar_lea.vmem %s7, 1
        %v3322 = vld [vmem:[%s3321] sm:$0x1]
        %v3323 = vsel %vm523, %v3318, 0.0
        %3324 = vadd.xlane.f32.xlu0 %v3323
        %v3325 = vpop.xlane.xlu0 %3324
        %v3326 = vmul.f32 %v3325, %v1787
        %v3327 = vsub.f32 %v3318, %v3326
        %v3328 = vmul.f32 %v3327, %v3327
        %v3329 = vsel %vm523, %v3328, 0.0
        %3330 = vadd.xlane.f32.xlu0 %v3329
        %v3331 = vpop.xlane.xlu0 %3330
        %v3332 = vmul.f32 %v3331, %v1787
        %v3333 = vadd.f32 %v3332, 1e-12
        %v3334 = vrsqrt.pop %v3333
        %v3335 = vmul.f32 %v3327, %v3334
        %v3337 = vlaneseq
        %v3338 = vshrl.u32 %v3337, 7
        %v3339 = vsub.s32 0, %v3338
        %v3340 = vrot.slane %v3320, %v3339
        %v3342 = vmul.f32 %v3335, %v3340
        %v3344 = vlaneseq
        %v3345 = vshrl.u32 %v3344, 7
        %v3346 = vsub.s32 0, %v3345
        %v3347 = vrot.slane %v3322, %v3346
        %v3349 = vadd.f32 %v3342, %v3347
        %s3350 = scalar_lea.vmem %s8, 32
        %v3351 = vld [vmem:[%s3350] sm:$0xff]
        %v3352 = vld [vmem:[%s3350 + $0x8] sm:$0xff]
        %v3353 = vld [vmem:[%s3350 + $0x10] sm:$0xff]
        %v3354 = vld [vmem:[%s3350 + $0x18] sm:$0xff]
        %s3355 = scalar_lea.vmem %s9, 1
        %v3356 = vld [vmem:[%s3355] sm:$0x1]
        %v3358 = vlaneseq
        %v3359 = vshrl.u32 %v3358, 7
        %v3360 = vsub.s32 0, %v3359
        %v3361 = vrot.slane %v3356, %v3360
        %v3364 = vsel %vm523, %v3349, 0
        %3366 = vmatprep.subr.mxu0 0.0
        %3367 = vmatpush1.msra.mxu0 %v3351
        %3368 = vmatprep.subr.mxu0 0.0
        %3369 = vmatpush1.msra.mxu0 %v3352
        %3370 = vmatprep.subr.mxu0 0.0
        %3371 = vmatpush1.msra.mxu0 %v3353
        %3372 = vmatprep.subr.mxu0 0.0
        %3373 = vmatpush1.msra.mxu0 %v3354
        %3374 = vmatprep.subr.mxu0 0.0
        %3375 = vmatpush1.msra.mxu0 0.0
        %3376 = vmatprep.subr.mxu0 0.0
        %3377 = vmatpush1.msra.mxu0 0.0
        %3378 = vmatprep.subr.mxu0 0.0
        %3379 = vmatpush1.msra.mxu0 0.0
        %3380 = vmatprep.subr.mxu0 0.0
        %3381 = vmatpush1.msra.mxu0 0.0
        %3382 = vmatprep.subr.mxu0 0.0
        %3383 = vmatpush1.msra.mxu0 0.0
        %3384 = vmatprep.subr.mxu0 0.0
        %3385 = vmatpush1.msra.mxu0 0.0
        %3386 = vmatprep.subr.mxu0 0.0
        %3387 = vmatpush1.msra.mxu0 0.0
        %3388 = vmatprep.subr.mxu0 0.0
        %3389 = vmatpush1.msra.mxu0 0.0
        %3390 = vmatprep.subr.mxu0 0.0
        %3391 = vmatpush1.msra.mxu0 0.0
        %3392 = vmatprep.subr.mxu0 0.0
        %3393 = vmatpush1.msra.mxu0 0.0
        %3394 = vmatprep.subr.mxu0 0.0
        %3395 = vmatpush1.msra.mxu0 0.0
        %3396 = vmatprep.subr.mxu0 0.0
        %3397 = vmatpush1.msra.mxu0 0.0
        %3398 = vmatprep.subr.mxu0 0.0
        %3399 = vmatpush1.msra.mxu0 0.0
        %3400 = vmatprep.subr.mxu0 0.0
        %3401 = vmatpush1.msra.mxu0 0.0
        %3402 = vmatprep.subr.mxu0 0.0
        %3403 = vmatpush1.msra.mxu0 0.0
        %3404 = vmatprep.subr.mxu0 0.0
        %3405 = vmatpush1.msra.mxu0 0.0
        %3406 = vmatprep.subr.mxu0 0.0
        %3407 = vmatpush1.msra.mxu0 0.0
        %3408 = vmatprep.subr.mxu0 0.0
        %3409 = vmatpush1.msra.mxu0 0.0
        %3410 = vmatprep.subr.mxu0 0.0
        %3411 = vmatpush1.msra.mxu0 0.0
        %3412 = vmatprep.subr.mxu0 0.0
        %3413 = vmatpush1.msra.mxu0 0.0
        %3414 = vmatprep.subr.mxu0 0.0
        %3415 = vmatpush1.msra.mxu0 0.0
        %3416 = vmatprep.subr.mxu0 0.0
        %3417 = vmatpush1.msra.mxu0 0.0
        %3418 = vmatprep.subr.mxu0 0.0
        %3419 = vmatpush1.msra.mxu0 0.0
        %3420 = vmatprep.subr.mxu0 0.0
        %3421 = vmatpush1.msra.mxu0 0.0
        %3422 = vmatprep.subr.mxu0 0.0
        %3423 = vmatpush1.msra.mxu0 0.0
        %3424 = vmatprep.subr.mxu0 0.0
        %3425 = vmatpush1.msra.mxu0 0.0
        %3426 = vmatprep.subr.mxu0 0.0
        %3427 = vmatpush1.msra.mxu0 0.0
        %3428 = vmatprep.subr.mxu0 0.0
        %3429 = vmatpush1.msra.mxu0 0.0
        %3430 = vmatprep.mubr.f32.mxu0 0.0
        %3431 = vmatmul.mubr.f32.gmra.mrb[0].mxu0 %v3364
        %v3432 = vpop.f32.mrb[0].mxu0
        %v3433 = vadd.f32 %v3361, %v3432
        %v3434 = vpop.f32.mrb[0].mxu0
        %3435 = vdwg.mxu0
        %v3436 = vmul.f32 %v3433, 0.5
        %v3437 = vmul.f32 %v3433, 0.70710677
        %v3438 = verf.f32.pop %v3437
        %v3439 = vadd.f32 %v3438, 1.0
        %v3440 = vmul.f32 %v3436, %v3439
        %s3441 = scalar_lea.vmem %s10, 64
        %v3442 = vld [vmem:[%s3441] sm:$0xff]
        %v3443 = vld [vmem:[%s3441 + $0x8] sm:$0xff]
        %v3444 = vld [vmem:[%s3441 + $0x10] sm:$0xff]
        %v3445 = vld [vmem:[%s3441 + $0x18] sm:$0xff]
        %v3446 = vld [vmem:[%s3441 + $0x20] sm:$0xff]
        %v3447 = vld [vmem:[%s3441 + $0x28] sm:$0xff]
        %v3448 = vld [vmem:[%s3441 + $0x30] sm:$0xff]
        %v3449 = vld [vmem:[%s3441 + $0x38] sm:$0xff]
        %s3450 = scalar_lea.vmem %s11, 1
        %v3451 = vld [vmem:[%s3450] sm:$0x1]
        %v3453 = vlaneseq
        %v3454 = vshrl.u32 %v3453, 7
        %v3455 = vsub.s32 0, %v3454
        %v3456 = vrot.slane %v3451, %v3455
        %v3459 = vsel %vm1916, %v3440, 0
        %3461 = vmatprep.subr.mxu0 0.0
        %3462 = vmatpush1.msra.mxu0 %v3442
        %3463 = vmatprep.subr.mxu0 0.0
        %3464 = vmatpush1.msra.mxu0 %v3443
        %3465 = vmatprep.subr.mxu0 0.0
        %3466 = vmatpush1.msra.mxu0 %v3444
        %3467 = vmatprep.subr.mxu0 0.0
        %3468 = vmatpush1.msra.mxu0 %v3445
        %3469 = vmatprep.subr.mxu0 0.0
        %3470 = vmatpush1.msra.mxu0 %v3446
        %3471 = vmatprep.subr.mxu0 0.0
        %3472 = vmatpush1.msra.mxu0 %v3447
        %3473 = vmatprep.subr.mxu0 0.0
        %3474 = vmatpush1.msra.mxu0 %v3448
        %3475 = vmatprep.subr.mxu0 0.0
        %3476 = vmatpush1.msra.mxu0 %v3449
        %3477 = vmatprep.subr.mxu0 0.0
        %3478 = vmatpush1.msra.mxu0 0.0
        %3479 = vmatprep.subr.mxu0 0.0
        %3480 = vmatpush1.msra.mxu0 0.0
        %3481 = vmatprep.subr.mxu0 0.0
        %3482 = vmatpush1.msra.mxu0 0.0
        %3483 = vmatprep.subr.mxu0 0.0
        %3484 = vmatpush1.msra.mxu0 0.0
        %3485 = vmatprep.subr.mxu0 0.0
        %3486 = vmatpush1.msra.mxu0 0.0
        %3487 = vmatprep.subr.mxu0 0.0
        %3488 = vmatpush1.msra.mxu0 0.0
        %3489 = vmatprep.subr.mxu0 0.0
        %3490 = vmatpush1.msra.mxu0 0.0
        %3491 = vmatprep.subr.mxu0 0.0
        %3492 = vmatpush1.msra.mxu0 0.0
        %3493 = vmatprep.subr.mxu0 0.0
        %3494 = vmatpush1.msra.mxu0 0.0
        %3495 = vmatprep.subr.mxu0 0.0
        %3496 = vmatpush1.msra.mxu0 0.0
        %3497 = vmatprep.subr.mxu0 0.0
        %3498 = vmatpush1.msra.mxu0 0.0
        %3499 = vmatprep.subr.mxu0 0.0
        %3500 = vmatpush1.msra.mxu0 0.0
        %3501 = vmatprep.subr.mxu0 0.0
        %3502 = vmatpush1.msra.mxu0 0.0
        %3503 = vmatprep.subr.mxu0 0.0
        %3504 = vmatpush1.msra.mxu0 0.0
        %3505 = vmatprep.subr.mxu0 0.0
        %3506 = vmatpush1.msra.mxu0 0.0
        %3507 = vmatprep.subr.mxu0 0.0
        %3508 = vmatpush1.msra.mxu0 0.0
        %3509 = vmatprep.subr.mxu0 0.0
        %3510 = vmatpush1.msra.mxu0 0.0
        %3511 = vmatprep.subr.mxu0 0.0
        %3512 = vmatpush1.msra.mxu0 0.0
        %3513 = vmatprep.subr.mxu0 0.0
        %3514 = vmatpush1.msra.mxu0 0.0
        %3515 = vmatprep.subr.mxu0 0.0
        %3516 = vmatpush1.msra.mxu0 0.0
        %3517 = vmatprep.subr.mxu0 0.0
        %3518 = vmatpush1.msra.mxu0 0.0
        %3519 = vmatprep.subr.mxu0 0.0
        %3520 = vmatpush1.msra.mxu0 0.0
        %3521 = vmatprep.subr.mxu0 0.0
        %3522 = vmatpush1.msra.mxu0 0.0
        %3523 = vmatprep.subr.mxu0 0.0
        %3524 = vmatpush1.msra.mxu0 0.0
        %3525 = vmatprep.mubr.f32.mxu0 0.0
        %3526 = vmatmul.mubr.f32.gmra.mrb[0].mxu0 %v3459
        %v3527 = vpop.f32.mrb[0].mxu0
        %v3528 = vadd.f32 %v3456, %v3527
        %v3529 = vpop.f32.mrb[0].mxu0
        %3530 = vdwg.mxu0
        %v3531 = vadd.f32 %v3528, %v3349
        %s3532 = scalar_lea.vmem %s12, 1
        %v3533 = vld [vmem:[%s3532] sm:$0x1]
        %s3534 = scalar_lea.vmem %s13, 1
        %v3535 = vld [vmem:[%s3534] sm:$0x1]
        %v3536 = vsel %vm523, %v3531, 0.0
        %3537 = vadd.xlane.f32.xlu0 %v3536
        %v3538 = vpop.xlane.xlu0 %3537
        %v3539 = vmul.f32 %v3538, %v1787
        %v3540 = vsub.f32 %v3531, %v3539
        %v3541 = vmul.f32 %v3540, %v3540
        %v3542 = vsel %vm523, %v3541, 0.0
        %3543 = vadd.xlane.f32.xlu0 %v3542
        %v3544 = vpop.xlane.xlu0 %3543
        %v3545 = vmul.f32 %v3544, %v1787
        %v3546 = vadd.f32 %v3545, 1e-12
        %v3547 = vrsqrt.pop %v3546
        %v3548 = vmul.f32 %v3540, %v3547
        %v3550 = vlaneseq
        %v3551 = vshrl.u32 %v3550, 7
        %v3552 = vsub.s32 0, %v3551
        %v3553 = vrot.slane %v3533, %v3552
        %v3555 = vmul.f32 %v3548, %v3553
        %v3557 = vlaneseq
        %v3558 = vshrl.u32 %v3557, 7
        %v3559 = vsub.s32 0, %v3558
        %v3560 = vrot.slane %v3535, %v3559
        %v3562 = vadd.f32 %v3555, %v3560
        %3563 = vst.msk [vmem:[%s469] sm:$0xff] %vm523, %v3562
        %s3564 = sand.u32 %s340, 1
        %s3565 = scalar_lea.sflag [#allocation3], %s3564
        %s3566 = sand.u32 %s340, 1
        %s3567 = smul.addr %s3566, 8
        %s3568 = scalar_lea.vmem [#allocation2], %s3567
        // Predicated region
        $region77: #{tpu_custom_call.1} parent=75 // pred_check
          %p3569 = pneg %p350
        $region78: #{tpu_custom_call.1} parent=75 // pred_check_branch
          %3571 = sbr.rel (%p3569) target = $region80
        $region79: #{tpu_custom_call.1} parent=75 // pred_region
          %s3573 = ssub.s32 128, 128
          %3574 = vsyncadd %s3565, %s3573
          %s3575 = smul.addr %s28, 128
          %s3576 = scalar_lea.hbm %s14, %s3575
          %s3578 = sshll.u32 %s3568, 4
          %s3579 = int_to_ptr.vmem [resolvable:$true] %s3578
          %3581 = dma.vmem_to_hbm [thread:$0]  %s3579, 128, %s3576, %s3565
        $region80: #{tpu_custom_call.1} parent=75 // pred_fallthru
          _
      $region76: #{tpu_custom_call.1} parent=5 // pred_fallthru
        _
      %p3582 = scmp.le.s32.totalorder 2, %s23
      // Predicated region
      $region81: #{tpu_custom_call.1} parent=5 // pred_check
        %p3583 = pneg %p3582
      $region82: #{tpu_custom_call.1} parent=5 // pred_check_branch
        %3585 = sbr.rel (%p3583) target = $region84
      $region83: #{tpu_custom_call.1} parent=5 // pred_region
        %s3586 = ssub.s32 %s23, 2
        // Predicated region
        $region85: #{tpu_custom_call.1} parent=83 // pred_check
          %p3587 = pneg %p356
        $region86: #{tpu_custom_call.1} parent=83 // pred_check_branch
          %3589 = sbr.rel (%p3587) target = $region88
        $region87: #{tpu_custom_call.1} parent=83 // pred_region
          %s3590 = sand.u32 %s341, 1
          %s3591 = scalar_lea.sflag [#allocation3], %s3590
          %s3592 = sand.u32 %s341, 1
          %s3593 = smul.addr %s3592, 8
          %s3594 = scalar_lea.vmem [#allocation2], %s3593
          %3595 = dma.done %s3591, 128
        $region88: #{tpu_custom_call.1} parent=83 // pred_fallthru
          _
      $region84: #{tpu_custom_call.1} parent=5 // pred_fallthru
        _
    $region6: #{tpu_custom_call.1} parent=1 // loop_footer
      %s27 = sadd.s32 1, %s23
    $region7: #{tpu_custom_call.1} parent=1 // loop_footer_branch
      %22 = sbr.rel target = $region3
    $region8: #{tpu_custom_call.1} parent=1 // loop_exit
      _
    %3596 = vsyncpa [#allocation3], 1
    %s3597 = scalar_lea.sflag [#allocation3], 1
    %3598 = vsyncpa %s3597, 1

</llo_original>
